<compile_context>
chip_gen: v6e
topology: v6e:2x2x1
jax: 0.10.0
libtpu: 0.0.40
codegen_flags: <defaults>
</compile_context>

<pallas_src>
import functools
import math
from functools import reduce

import jax
import jax.numpy as jnp
from jax.experimental import pallas as pl
from jax.experimental.pallas import tpu as pltpu

# Small synthetic configuration (DouDizhu-like, but tiny).
STATE_SHAPE = (4, 16)     # -> flattened_state_shape = 64
BATCH       = 2
HIDDEN      = 512
NUM_ACTIONS = 8
NUM_ATOMS   = 51
STD_INIT    = 0.5

ATOM_PAD = 64             # per-action atom block padded 51 -> 64 lanes


# ----------------------------------------------------------------------------
# Pallas kernel
# ----------------------------------------------------------------------------
def rainbow_kernel(x_ref,                      # (BT, Fp)            bf16
                   wfc_ref, bfc_ref,           # (Fp, 512) bf16, (1, 512) f32
                   wh_ref, bh_ref,             # (512, 1024) bf16, (1, 1024) f32  [adv1 | val1]
                   wa2_ref, ba2_ref,           # (512, A*64) bf16, (1, A*64) f32  (pads = 0)
                   wv2_ref, bv2_ref,           # (512, 64)  bf16, (1, 64)  f32    (pads = 0)
                   out_ref,                    # (BT, A*64) f32
                   *, num_actions, num_atoms, lane):
    f32 = jnp.float32
    bf16 = jnp.bfloat16
    hidden = wfc_ref.shape[1]
    bt = x_ref.shape[0]

    # fc: Linear(F, 512) + ReLU  (bf16 operands, f32 accumulate)
    h = jnp.maximum(
        jnp.dot(x_ref[...], wfc_ref[...], preferred_element_type=f32) + bfc_ref[...],
        0.0)

    # fused hidden NoisyLinear layers: one (BT, 1024) matmul -> [a1 | v1]
    hh = jnp.maximum(
        jnp.dot(h.astype(bf16), wh_ref[...], preferred_element_type=f32) + bh_ref[...],
        0.0)
    a1 = hh[:, :hidden].astype(bf16)            # 128-aligned slices
    v1 = hh[:, hidden:].astype(bf16)

    # heads: per-action atom blocks padded to 64 lanes (pad weights/bias = 0,
    # so padded lanes of `adv` are exactly 0).
    adv = jnp.dot(a1, wa2_ref[...], preferred_element_type=f32) + ba2_ref[...]   # (BT, A*64)
    val = jnp.dot(v1, wv2_ref[...], preferred_element_type=f32) + bv2_ref[...]   # (BT, 64)

    # mean over actions, per atom lane
    acc = adv[:, :lane]
    for a in range(1, num_actions):
        acc = acc + adv[:, a * lane:(a + 1) * lane]
    base = val - acc * (1.0 / num_actions)       # val - adv_mean, (BT, 64)

    # valid-atom lane mask (51 real atoms out of 64 lanes)
    atom_mask = jax.lax.broadcasted_iota(jnp.int32, (bt, lane), 1) < num_atoms

    # dueling combine + exactly-normalized softmax over the real atoms;
    # each action block is stored directly (no concatenated slab).
    for a in range(num_actions):
        d = adv[:, a * lane:(a + 1) * lane] + base          # (BT, 64)
        m = jnp.max(d, axis=-1, keepdims=True)              # shift-invariant
        e = jnp.where(atom_mask, jnp.exp(d - m), 0.0)       # padded lanes -> 0
        s = jnp.sum(e, axis=-1, keepdims=True)
        out_ref[:, a * lane:(a + 1) * lane] = e / s         # exact normalization


# ----------------------------------------------------------------------------
# Parameter construction (deterministic, mirrors the torch __init__)
# ----------------------------------------------------------------------------
def _scale_noise(key, size):
    n = jax.random.normal(key, (size,), dtype=jnp.float32)
    return jnp.sign(n) * jnp.sqrt(jnp.abs(n))


def _noisy_linear_effective(key, in_dim, out_dim, std_init=STD_INIT):
    """Effective (W^T, b) of a NoisyLinear layer in training mode. W^T is (in, out)."""
    k_wmu, k_bmu, k_ein, k_eout, k_beps = jax.random.split(key, 5)
    mu_range = 1.0 / math.sqrt(in_dim)
    weight_mu = jax.random.uniform(k_wmu, (out_dim, in_dim),
                                   minval=-mu_range, maxval=mu_range,
                                   dtype=jnp.float32)
    bias_mu = jax.random.uniform(k_bmu, (out_dim,),
                                 minval=-mu_range, maxval=mu_range,
                                 dtype=jnp.float32)
    weight_sigma = jnp.full((out_dim, in_dim), std_init / math.sqrt(in_dim),
                            dtype=jnp.float32)
    bias_sigma = jnp.full((out_dim,), std_init / math.sqrt(in_dim),
                          dtype=jnp.float32)
    eps_in = _scale_noise(k_ein, in_dim)
    eps_out = _scale_noise(k_eout, out_dim)
    weight_epsilon = jnp.outer(eps_out, eps_in)
    bias_epsilon = _scale_noise(k_beps, out_dim)

    w_eff = weight_mu + weight_sigma * weight_epsilon    # (out, in)
    b_eff = bias_mu + bias_sigma * bias_epsilon          # (out,)
    return w_eff.T, b_eff                                # (in, out), (out,)


def _linear(key, in_dim, out_dim):
    k_w, k_b = jax.random.split(key)
    bound = 1.0 / math.sqrt(in_dim)
    w = jax.random.uniform(k_w, (out_dim, in_dim), minval=-bound, maxval=bound,
                           dtype=jnp.float32)
    b = jax.random.uniform(k_b, (out_dim,), minval=-bound, maxval=bound,
                           dtype=jnp.float32)
    return w.T, b                                        # (in, out), (out,)


def make_params(key, flat_dim, num_actions=NUM_ACTIONS, num_atoms=NUM_ATOMS):
    assert num_atoms <= ATOM_PAD
    k_fc, k_a1, k_a2, k_v1, k_v2 = jax.random.split(key, 5)
    wfc, bfc = _linear(k_fc, flat_dim, HIDDEN)
    wa1, ba1 = _noisy_linear_effective(k_a1, HIDDEN, HIDDEN)
    wa2, ba2 = _noisy_linear_effective(k_a2, HIDDEN, num_actions * num_atoms)
    wv1, bv1 = _noisy_linear_effective(k_v1, HIDDEN, HIDDEN)
    wv2, bv2 = _noisy_linear_effective(k_v2, HIDDEN, num_atoms)

    bf16 = jnp.bfloat16

    # Reference params (logical layout; weights pre-cast to bf16 so the
    # reference shares the kernel's matmul numerics).
    ref_params = (wfc.astype(bf16), bfc.reshape(1, -1),
                  wa1.astype(bf16), ba1.reshape(1, -1),
                  wa2.astype(bf16), ba2.reshape(1, -1),
                  wv1.astype(bf16), bv1.reshape(1, -1),
                  wv2.astype(bf16), bv2.reshape(1, -1))

    # --- kernel packing ---
    # fc weights: feature (K) dim zero-padded to a full 128-lane group.
    feat_p = ((flat_dim + 127) // 128) * 128
    wfc_p = jnp.pad(wfc, ((0, feat_p - flat_dim), (0, 0))).astype(bf16)   # (Fp, 512)

    # fused hidden layer [adv1 | val1]
    wh = jnp.concatenate([wa1, wv1], axis=1).astype(bf16)                 # (512, 1024)
    bh = jnp.concatenate([ba1, bv1]).reshape(1, -1)                       # (1, 1024) f32

    # heads: per-action atom blocks padded 51 -> 64 lanes with zeros.
    pad_n = ATOM_PAD - num_atoms
    wa2_p = wa2.reshape(HIDDEN, num_actions, num_atoms)
    wa2_p = jnp.pad(wa2_p, ((0, 0), (0, 0), (0, pad_n)))
    wa2_p = wa2_p.reshape(HIDDEN, num_actions * ATOM_PAD).astype(bf16)    # (512, A*64)
    ba2_p = jnp.pad(ba2.reshape(num_actions, num_atoms), ((0, 0), (0, pad_n)))
    ba2_p = ba2_p.reshape(1, num_actions * ATOM_PAD)                      # (1, A*64) f32

    wv2_p = jnp.pad(wv2, ((0, 0), (0, pad_n))).astype(bf16)               # (512, 64)
    bv2_p = jnp.pad(bv2, (0, pad_n)).reshape(1, ATOM_PAD)                 # (1, 64) f32

    kernel_params = (wfc_p, bfc.reshape(1, -1), wh, bh,
                     wa2_p, ba2_p, wv2_p, bv2_p)
    return kernel_params, ref_params


# ----------------------------------------------------------------------------
# Wrapper
# ----------------------------------------------------------------------------
def rainbow_forward(state, kernel_params, num_actions=NUM_ACTIONS,
                    num_atoms=NUM_ATOMS):
    b = state.shape[0]
    x = state.reshape(b, -1).astype(jnp.float32)   # torch.flatten(state, start_dim=1)
    feat = x.shape[1]
    feat_p = kernel_params[0].shape[0]
    # zero-pad the feature dim to the kernel's lane-aligned K and cast to bf16
    x = jnp.pad(x, ((0, 0), (0, feat_p - feat))).astype(jnp.bfloat16)

    # Batch tile: small batches round up to a sublane multiple (single step);
    # large batches stream 256-row tiles against VMEM-resident weights, which
    # also gives >=2 grid steps so v7x's two TensorCores both get work.
    b8 = ((b + 7) // 8) * 8
    bt = b8 if b8 <= 256 else 256
    b_pad = ((b + bt - 1) // bt) * bt
    if b_pad != b:
        x = jnp.pad(x, ((0, b_pad - b), (0, 0)))

    out_w = num_actions * ATOM_PAD
    kernel = functools.partial(rainbow_kernel, num_actions=num_actions,
                               num_atoms=num_atoms, lane=ATOM_PAD)

    out = pl.pallas_call(
        kernel,
        out_shape=jax.ShapeDtypeStruct((b_pad, out_w), jnp.float32),
        grid_spec=pltpu.PrefetchScalarGridSpec(
            num_scalar_prefetch=0,
            grid=(b_pad // bt,),
            in_specs=[
                pl.BlockSpec((bt, feat_p), lambda i: (i, 0)),           # activations tile
                pl.BlockSpec((feat_p, HIDDEN), lambda i: (0, 0)),       # weights: VMEM-resident
                pl.BlockSpec((1, HIDDEN), lambda i: (0, 0)),
                pl.BlockSpec((HIDDEN, 2 * HIDDEN), lambda i: (0, 0)),
                pl.BlockSpec((1, 2 * HIDDEN), lambda i: (0, 0)),
                pl.BlockSpec((HIDDEN, out_w), lambda i: (0, 0)),
                pl.BlockSpec((1, out_w), lambda i: (0, 0)),
                pl.BlockSpec((HIDDEN, ATOM_PAD), lambda i: (0, 0)),
                pl.BlockSpec((1, ATOM_PAD), lambda i: (0, 0)),
            ],
            out_specs=pl.BlockSpec((bt, out_w), lambda i: (i, 0)),
        ),
        compiler_params=pltpu.CompilerParams(
            dimension_semantics=("parallel",)),
    )(x, *kernel_params)

    # back to PyTorch layout: (B, num_actions, num_atoms)
    dist = out.reshape(b_pad, num_actions, ATOM_PAD)[:b, :, :num_atoms]
    return dist


# Pure-JAX reference (same bf16-weight / f32-accumulate numerics).
def rainbow_reference(state, ref_params, num_actions=NUM_ACTIONS,
                      num_atoms=NUM_ATOMS):
    (wfc, bfc, wa1, ba1, wa2, ba2, wv1, bv1, wv2, bv2) = ref_params
    b = state.shape[0]
    f32, bf16 = jnp.float32, jnp.bfloat16
    x = state.reshape(b, -1).astype(f32)
    dot = lambda a, w: jnp.dot(a.astype(bf16), w, preferred_element_type=f32)
    h = jax.nn.relu(dot(x, wfc) + bfc)
    a1 = jax.nn.relu(dot(h, wa1) + ba1)
    v1 = jax.nn.relu(dot(h, wv1) + bv1)
    adv = (dot(a1, wa2) + ba2).reshape(b, num_actions, num_atoms)
    val = (dot(v1, wv2) + bv2).reshape(b, 1, num_atoms)
    adv_mean = jnp.mean(adv, axis=1, keepdims=True)
    return jax.nn.softmax(adv + val - adv_mean, axis=-1)


if __name__ == "__main__":
    key = jax.random.PRNGKey(0)
    k_state, k_params = jax.random.split(key)

    flat_dim = reduce(lambda a, b: a * b, STATE_SHAPE)
    state = jax.random.normal(k_state, (BATCH,) + STATE_SHAPE, dtype=jnp.float32)
    kernel_params, ref_params = make_params(k_params, flat_dim)

    dist = rainbow_forward(state, kernel_params)
    dist = jax.block_until_ready(dist)

    assert dist.shape == (BATCH, NUM_ACTIONS, NUM_ATOMS), dist.shape
    # probabilities along the atom axis must sum to 1 (exact divide in-kernel)
    row_sums = jnp.sum(dist, axis=-1)
    assert bool(jnp.all(jnp.abs(row_sums - 1.0) < 1e-3)), "softmax rows don't sum to 1"

    ref = rainbow_reference(state, ref_params)
    max_err = jnp.max(jnp.abs(dist - ref))
    assert bool(max_err < 2e-3), f"mismatch vs JAX reference: {max_err}"

    print("KERNEL_OK")
</pallas_src>

<mosaic_0001>
module attributes {stable_mosaic.version = 11 : i64} {
  func.func @rainbow_kernel(%arg0: i32, %arg1: memref<8x128xbf16, #tpu.memory_space<vmem>>, %arg2: memref<128x512xbf16, #tpu.memory_space<vmem>>, %arg3: memref<1x512xf32, #tpu.memory_space<vmem>>, %arg4: memref<512x1024xbf16, #tpu.memory_space<vmem>>, %arg5: memref<1x1024xf32, #tpu.memory_space<vmem>>, %arg6: memref<512x512xbf16, #tpu.memory_space<vmem>>, %arg7: memref<1x512xf32, #tpu.memory_space<vmem>>, %arg8: memref<512x64xbf16, #tpu.memory_space<vmem>>, %arg9: memref<1x64xf32, #tpu.memory_space<vmem>>, %arg10: memref<8x512xf32, #tpu.memory_space<vmem>>) attributes {dimension_semantics = [#tpu.dimension_semantics<parallel>], iteration_bounds = array<i64: 1>, scalar_prefetch = 0 : i64, scratch_operands = 0 : i64, tpu.core_type = #tpu.core_type<tc>, window_params = [{transform_indices = @transform_0, window_bounds = array<i64: 8, 128>}, {pipeline_mode = #tpu.pipeline_mode<synchronous>, transform_indices = @transform_1, window_bounds = array<i64: 128, 512>}, {pipeline_mode = #tpu.pipeline_mode<synchronous>, transform_indices = @transform_2, window_bounds = array<i64: 1, 512>}, {pipeline_mode = #tpu.pipeline_mode<synchronous>, transform_indices = @transform_3, window_bounds = array<i64: 512, 1024>}, {pipeline_mode = #tpu.pipeline_mode<synchronous>, transform_indices = @transform_4, window_bounds = array<i64: 1, 1024>}, {pipeline_mode = #tpu.pipeline_mode<synchronous>, transform_indices = @transform_5, window_bounds = array<i64: 512, 512>}, {pipeline_mode = #tpu.pipeline_mode<synchronous>, transform_indices = @transform_6, window_bounds = array<i64: 1, 512>}, {pipeline_mode = #tpu.pipeline_mode<synchronous>, transform_indices = @transform_7, window_bounds = array<i64: 512, 64>}, {pipeline_mode = #tpu.pipeline_mode<synchronous>, transform_indices = @transform_8, window_bounds = array<i64: 1, 64>}, {transform_indices = @transform_9, window_bounds = array<i64: 8, 512>}]} {
    %c0 = arith.constant 0 : index
    %c0_0 = arith.constant 0 : index
    %0 = vector.load %arg1[%c0, %c0_0] : memref<8x128xbf16, #tpu.memory_space<vmem>>, vector<8x128xbf16>
    %c0_1 = arith.constant 0 : index
    %c0_2 = arith.constant 0 : index
    %1 = vector.load %arg2[%c0_1, %c0_2] : memref<128x512xbf16, #tpu.memory_space<vmem>>, vector<128x512xbf16>
    %cst = arith.constant dense<0.000000e+00> : vector<8x512xf32>
    %2 = tpu.matmul %0, %1, %cst {dimension_numbers = #tpu.dot_dimension_numbers<[1], [0], [0], [1], [0, 0, 1, 1], [], []>} : vector<8x128xbf16>, vector<128x512xbf16>, vector<8x512xf32> -> vector<8x512xf32>
    %c0_3 = arith.constant 0 : index
    %c0_4 = arith.constant 0 : index
    %3 = vector.load %arg3[%c0_3, %c0_4] : memref<1x512xf32, #tpu.memory_space<vmem>>, vector<1x512xf32>
    %4 = vector.broadcast %3 : vector<1x512xf32> to vector<8x512xf32>
    %5 = arith.addf %2, %4 : vector<8x512xf32>
    %cst_5 = arith.constant 0.000000e+00 : f32
    %6 = vector.broadcast %cst_5 : f32 to vector<8x512xf32>
    %7 = arith.maximumf %5, %6 : vector<8x512xf32>
    %8 = arith.truncf %7 : vector<8x512xf32> to vector<8x512xbf16>
    %c0_6 = arith.constant 0 : index
    %c0_7 = arith.constant 0 : index
    %9 = vector.load %arg4[%c0_6, %c0_7] : memref<512x1024xbf16, #tpu.memory_space<vmem>>, vector<512x1024xbf16>
    %cst_8 = arith.constant dense<0.000000e+00> : vector<8x1024xf32>
    %10 = tpu.matmul %8, %9, %cst_8 {dimension_numbers = #tpu.dot_dimension_numbers<[1], [0], [0], [1], [0, 0, 1, 1], [], []>} : vector<8x512xbf16>, vector<512x1024xbf16>, vector<8x1024xf32> -> vector<8x1024xf32>
    %c0_9 = arith.constant 0 : index
    %c0_10 = arith.constant 0 : index
    %11 = vector.load %arg5[%c0_9, %c0_10] : memref<1x1024xf32, #tpu.memory_space<vmem>>, vector<1x1024xf32>
    %12 = vector.broadcast %11 : vector<1x1024xf32> to vector<8x1024xf32>
    %13 = arith.addf %10, %12 : vector<8x1024xf32>
    %cst_11 = arith.constant 0.000000e+00 : f32
    %14 = vector.broadcast %cst_11 : f32 to vector<8x1024xf32>
    %15 = arith.maximumf %13, %14 : vector<8x1024xf32>
    %16 = vector.extract_strided_slice %15 {offsets = [0, 0], sizes = [8, 512], strides = [1, 1]} : vector<8x1024xf32> to vector<8x512xf32>
    %17 = arith.truncf %16 : vector<8x512xf32> to vector<8x512xbf16>
    %18 = vector.extract_strided_slice %15 {offsets = [0, 512], sizes = [8, 512], strides = [1, 1]} : vector<8x1024xf32> to vector<8x512xf32>
    %19 = arith.truncf %18 : vector<8x512xf32> to vector<8x512xbf16>
    %c0_12 = arith.constant 0 : index
    %c0_13 = arith.constant 0 : index
    %20 = vector.load %arg6[%c0_12, %c0_13] : memref<512x512xbf16, #tpu.memory_space<vmem>>, vector<512x512xbf16>
    %cst_14 = arith.constant dense<0.000000e+00> : vector<8x512xf32>
    %21 = tpu.matmul %17, %20, %cst_14 {dimension_numbers = #tpu.dot_dimension_numbers<[1], [0], [0], [1], [0, 0, 1, 1], [], []>} : vector<8x512xbf16>, vector<512x512xbf16>, vector<8x512xf32> -> vector<8x512xf32>
    %c0_15 = arith.constant 0 : index
    %c0_16 = arith.constant 0 : index
    %22 = vector.load %arg7[%c0_15, %c0_16] : memref<1x512xf32, #tpu.memory_space<vmem>>, vector<1x512xf32>
    %23 = vector.broadcast %22 : vector<1x512xf32> to vector<8x512xf32>
    %24 = arith.addf %21, %23 : vector<8x512xf32>
    %c0_17 = arith.constant 0 : index
    %c0_18 = arith.constant 0 : index
    %25 = vector.load %arg8[%c0_17, %c0_18] : memref<512x64xbf16, #tpu.memory_space<vmem>>, vector<512x64xbf16>
    %cst_19 = arith.constant dense<0.000000e+00> : vector<8x64xf32>
    %26 = tpu.matmul %19, %25, %cst_19 {dimension_numbers = #tpu.dot_dimension_numbers<[1], [0], [0], [1], [0, 0, 1, 1], [], []>} : vector<8x512xbf16>, vector<512x64xbf16>, vector<8x64xf32> -> vector<8x64xf32>
    %c0_20 = arith.constant 0 : index
    %c0_21 = arith.constant 0 : index
    %27 = vector.load %arg9[%c0_20, %c0_21] : memref<1x64xf32, #tpu.memory_space<vmem>>, vector<1x64xf32>
    %28 = vector.broadcast %27 : vector<1x64xf32> to vector<8x64xf32>
    %29 = arith.addf %26, %28 : vector<8x64xf32>
    %30 = vector.extract_strided_slice %24 {offsets = [0, 0], sizes = [8, 64], strides = [1, 1]} : vector<8x512xf32> to vector<8x64xf32>
    %31 = vector.extract_strided_slice %24 {offsets = [0, 64], sizes = [8, 64], strides = [1, 1]} : vector<8x512xf32> to vector<8x64xf32>
    %32 = arith.addf %30, %31 : vector<8x64xf32>
    %33 = vector.extract_strided_slice %24 {offsets = [0, 128], sizes = [8, 64], strides = [1, 1]} : vector<8x512xf32> to vector<8x64xf32>
    %34 = arith.addf %32, %33 : vector<8x64xf32>
    %35 = vector.extract_strided_slice %24 {offsets = [0, 192], sizes = [8, 64], strides = [1, 1]} : vector<8x512xf32> to vector<8x64xf32>
    %36 = arith.addf %34, %35 : vector<8x64xf32>
    %37 = vector.extract_strided_slice %24 {offsets = [0, 256], sizes = [8, 64], strides = [1, 1]} : vector<8x512xf32> to vector<8x64xf32>
    %38 = arith.addf %36, %37 : vector<8x64xf32>
    %39 = vector.extract_strided_slice %24 {offsets = [0, 320], sizes = [8, 64], strides = [1, 1]} : vector<8x512xf32> to vector<8x64xf32>
    %40 = arith.addf %38, %39 : vector<8x64xf32>
    %41 = vector.extract_strided_slice %24 {offsets = [0, 384], sizes = [8, 64], strides = [1, 1]} : vector<8x512xf32> to vector<8x64xf32>
    %42 = arith.addf %40, %41 : vector<8x64xf32>
    %43 = vector.extract_strided_slice %24 {offsets = [0, 448], sizes = [8, 64], strides = [1, 1]} : vector<8x512xf32> to vector<8x64xf32>
    %44 = arith.addf %42, %43 : vector<8x64xf32>
    %cst_22 = arith.constant 1.250000e-01 : f32
    %45 = vector.broadcast %cst_22 : f32 to vector<8x64xf32>
    %46 = arith.mulf %44, %45 : vector<8x64xf32>
    %47 = arith.subf %29, %46 : vector<8x64xf32>
    %48 = tpu.iota {dimensions = array<i32: 1>} : vector<8x64xi32>
    %c51_i32 = arith.constant 51 : i32
    %49 = vector.broadcast %c51_i32 : i32 to vector<8x64xi32>
    %50 = arith.cmpi slt, %48, %49 : vector<8x64xi32>
    %51 = vector.extract_strided_slice %24 {offsets = [0, 0], sizes = [8, 64], strides = [1, 1]} : vector<8x512xf32> to vector<8x64xf32>
    %52 = arith.addf %51, %47 : vector<8x64xf32>
    %cst_23 = arith.constant dense<0xFF800000> : vector<8xf32>
    %53 = vector.multi_reduction <maximumf>, %52, %cst_23 [1] : vector<8x64xf32> to vector<8xf32>
    %54 = vector.shape_cast %53 : vector<8xf32> to vector<8x1xf32>
    %55 = vector.broadcast %54 : vector<8x1xf32> to vector<8x64xf32>
    %56 = arith.subf %52, %55 : vector<8x64xf32>
    %57 = math.exp %56 : vector<8x64xf32>
    %cst_24 = arith.constant 0.000000e+00 : f32
    %58 = vector.broadcast %cst_24 : f32 to vector<8x64xf32>
    %59 = arith.select %50, %57, %58 : vector<8x64xi1>, vector<8x64xf32>
    %cst_25 = arith.constant dense<0.000000e+00> : vector<8xf32>
    %60 = vector.multi_reduction <add>, %59, %cst_25 [1] : vector<8x64xf32> to vector<8xf32>
    %61 = vector.shape_cast %60 : vector<8xf32> to vector<8x1xf32>
    %62 = vector.broadcast %61 : vector<8x1xf32> to vector<8x64xf32>
    %63 = arith.divf %59, %62 : vector<8x64xf32>
    %c0_26 = arith.constant 0 : index
    %c0_27 = arith.constant 0 : index
    %64 = vector.load %arg10[%c0_26, %c0_27] : memref<8x512xf32, #tpu.memory_space<vmem>>, vector<8x64xf32>
    tpu.vector_store %arg10[%c0_26, %c0_27], %63 {strides = array<i32>} : memref<8x512xf32, #tpu.memory_space<vmem>>, vector<8x64xf32>,
    %65 = vector.extract_strided_slice %24 {offsets = [0, 64], sizes = [8, 64], strides = [1, 1]} : vector<8x512xf32> to vector<8x64xf32>
    %66 = arith.addf %65, %47 : vector<8x64xf32>
    %cst_28 = arith.constant dense<0xFF800000> : vector<8xf32>
    %67 = vector.multi_reduction <maximumf>, %66, %cst_28 [1] : vector<8x64xf32> to vector<8xf32>
    %68 = vector.shape_cast %67 : vector<8xf32> to vector<8x1xf32>
    %69 = vector.broadcast %68 : vector<8x1xf32> to vector<8x64xf32>
    %70 = arith.subf %66, %69 : vector<8x64xf32>
    %71 = math.exp %70 : vector<8x64xf32>
    %cst_29 = arith.constant 0.000000e+00 : f32
    %72 = vector.broadcast %cst_29 : f32 to vector<8x64xf32>
    %73 = arith.select %50, %71, %72 : vector<8x64xi1>, vector<8x64xf32>
    %cst_30 = arith.constant dense<0.000000e+00> : vector<8xf32>
    %74 = vector.multi_reduction <add>, %73, %cst_30 [1] : vector<8x64xf32> to vector<8xf32>
    %75 = vector.shape_cast %74 : vector<8xf32> to vector<8x1xf32>
    %76 = vector.broadcast %75 : vector<8x1xf32> to vector<8x64xf32>
    %77 = arith.divf %73, %76 : vector<8x64xf32>
    %c0_31 = arith.constant 0 : index
    %c64 = arith.constant 64 : index
    %78 = vector.load %arg10[%c0_31, %c64] : memref<8x512xf32, #tpu.memory_space<vmem>>, vector<8x64xf32>
    tpu.vector_store %arg10[%c0_31, %c64], %77 {strides = array<i32>} : memref<8x512xf32, #tpu.memory_space<vmem>>, vector<8x64xf32>,
    %79 = vector.extract_strided_slice %24 {offsets = [0, 128], sizes = [8, 64], strides = [1, 1]} : vector<8x512xf32> to vector<8x64xf32>
    %80 = arith.addf %79, %47 : vector<8x64xf32>
    %cst_32 = arith.constant dense<0xFF800000> : vector<8xf32>
    %81 = vector.multi_reduction <maximumf>, %80, %cst_32 [1] : vector<8x64xf32> to vector<8xf32>
    %82 = vector.shape_cast %81 : vector<8xf32> to vector<8x1xf32>
    %83 = vector.broadcast %82 : vector<8x1xf32> to vector<8x64xf32>
    %84 = arith.subf %80, %83 : vector<8x64xf32>
    %85 = math.exp %84 : vector<8x64xf32>
    %cst_33 = arith.constant 0.000000e+00 : f32
    %86 = vector.broadcast %cst_33 : f32 to vector<8x64xf32>
    %87 = arith.select %50, %85, %86 : vector<8x64xi1>, vector<8x64xf32>
    %cst_34 = arith.constant dense<0.000000e+00> : vector<8xf32>
    %88 = vector.multi_reduction <add>, %87, %cst_34 [1] : vector<8x64xf32> to vector<8xf32>
    %89 = vector.shape_cast %88 : vector<8xf32> to vector<8x1xf32>
    %90 = vector.broadcast %89 : vector<8x1xf32> to vector<8x64xf32>
    %91 = arith.divf %87, %90 : vector<8x64xf32>
    %c0_35 = arith.constant 0 : index
    %c128 = arith.constant 128 : index
    %92 = vector.load %arg10[%c0_35, %c128] : memref<8x512xf32, #tpu.memory_space<vmem>>, vector<8x64xf32>
    tpu.vector_store %arg10[%c0_35, %c128], %91 {strides = array<i32>} : memref<8x512xf32, #tpu.memory_space<vmem>>, vector<8x64xf32>,
    %93 = vector.extract_strided_slice %24 {offsets = [0, 192], sizes = [8, 64], strides = [1, 1]} : vector<8x512xf32> to vector<8x64xf32>
    %94 = arith.addf %93, %47 : vector<8x64xf32>
    %cst_36 = arith.constant dense<0xFF800000> : vector<8xf32>
    %95 = vector.multi_reduction <maximumf>, %94, %cst_36 [1] : vector<8x64xf32> to vector<8xf32>
    %96 = vector.shape_cast %95 : vector<8xf32> to vector<8x1xf32>
    %97 = vector.broadcast %96 : vector<8x1xf32> to vector<8x64xf32>
    %98 = arith.subf %94, %97 : vector<8x64xf32>
    %99 = math.exp %98 : vector<8x64xf32>
    %cst_37 = arith.constant 0.000000e+00 : f32
    %100 = vector.broadcast %cst_37 : f32 to vector<8x64xf32>
    %101 = arith.select %50, %99, %100 : vector<8x64xi1>, vector<8x64xf32>
    %cst_38 = arith.constant dense<0.000000e+00> : vector<8xf32>
    %102 = vector.multi_reduction <add>, %101, %cst_38 [1] : vector<8x64xf32> to vector<8xf32>
    %103 = vector.shape_cast %102 : vector<8xf32> to vector<8x1xf32>
    %104 = vector.broadcast %103 : vector<8x1xf32> to vector<8x64xf32>
    %105 = arith.divf %101, %104 : vector<8x64xf32>
    %c0_39 = arith.constant 0 : index
    %c192 = arith.constant 192 : index
    %106 = vector.load %arg10[%c0_39, %c192] : memref<8x512xf32, #tpu.memory_space<vmem>>, vector<8x64xf32>
    tpu.vector_store %arg10[%c0_39, %c192], %105 {strides = array<i32>} : memref<8x512xf32, #tpu.memory_space<vmem>>, vector<8x64xf32>,
    %107 = vector.extract_strided_slice %24 {offsets = [0, 256], sizes = [8, 64], strides = [1, 1]} : vector<8x512xf32> to vector<8x64xf32>
    %108 = arith.addf %107, %47 : vector<8x64xf32>
    %cst_40 = arith.constant dense<0xFF800000> : vector<8xf32>
    %109 = vector.multi_reduction <maximumf>, %108, %cst_40 [1] : vector<8x64xf32> to vector<8xf32>
    %110 = vector.shape_cast %109 : vector<8xf32> to vector<8x1xf32>
    %111 = vector.broadcast %110 : vector<8x1xf32> to vector<8x64xf32>
    %112 = arith.subf %108, %111 : vector<8x64xf32>
    %113 = math.exp %112 : vector<8x64xf32>
    %cst_41 = arith.constant 0.000000e+00 : f32
    %114 = vector.broadcast %cst_41 : f32 to vector<8x64xf32>
    %115 = arith.select %50, %113, %114 : vector<8x64xi1>, vector<8x64xf32>
    %cst_42 = arith.constant dense<0.000000e+00> : vector<8xf32>
    %116 = vector.multi_reduction <add>, %115, %cst_42 [1] : vector<8x64xf32> to vector<8xf32>
    %117 = vector.shape_cast %116 : vector<8xf32> to vector<8x1xf32>
    %118 = vector.broadcast %117 : vector<8x1xf32> to vector<8x64xf32>
    %119 = arith.divf %115, %118 : vector<8x64xf32>
    %c0_43 = arith.constant 0 : index
    %c256 = arith.constant 256 : index
    %120 = vector.load %arg10[%c0_43, %c256] : memref<8x512xf32, #tpu.memory_space<vmem>>, vector<8x64xf32>
    tpu.vector_store %arg10[%c0_43, %c256], %119 {strides = array<i32>} : memref<8x512xf32, #tpu.memory_space<vmem>>, vector<8x64xf32>,
    %121 = vector.extract_strided_slice %24 {offsets = [0, 320], sizes = [8, 64], strides = [1, 1]} : vector<8x512xf32> to vector<8x64xf32>
    %122 = arith.addf %121, %47 : vector<8x64xf32>
    %cst_44 = arith.constant dense<0xFF800000> : vector<8xf32>
    %123 = vector.multi_reduction <maximumf>, %122, %cst_44 [1] : vector<8x64xf32> to vector<8xf32>
    %124 = vector.shape_cast %123 : vector<8xf32> to vector<8x1xf32>
    %125 = vector.broadcast %124 : vector<8x1xf32> to vector<8x64xf32>
    %126 = arith.subf %122, %125 : vector<8x64xf32>
    %127 = math.exp %126 : vector<8x64xf32>
    %cst_45 = arith.constant 0.000000e+00 : f32
    %128 = vector.broadcast %cst_45 : f32 to vector<8x64xf32>
    %129 = arith.select %50, %127, %128 : vector<8x64xi1>, vector<8x64xf32>
    %cst_46 = arith.constant dense<0.000000e+00> : vector<8xf32>
    %130 = vector.multi_reduction <add>, %129, %cst_46 [1] : vector<8x64xf32> to vector<8xf32>
    %131 = vector.shape_cast %130 : vector<8xf32> to vector<8x1xf32>
    %132 = vector.broadcast %131 : vector<8x1xf32> to vector<8x64xf32>
    %133 = arith.divf %129, %132 : vector<8x64xf32>
    %c0_47 = arith.constant 0 : index
    %c320 = arith.constant 320 : index
    %134 = vector.load %arg10[%c0_47, %c320] : memref<8x512xf32, #tpu.memory_space<vmem>>, vector<8x64xf32>
    tpu.vector_store %arg10[%c0_47, %c320], %133 {strides = array<i32>} : memref<8x512xf32, #tpu.memory_space<vmem>>, vector<8x64xf32>,
    %135 = vector.extract_strided_slice %24 {offsets = [0, 384], sizes = [8, 64], strides = [1, 1]} : vector<8x512xf32> to vector<8x64xf32>
    %136 = arith.addf %135, %47 : vector<8x64xf32>
    %cst_48 = arith.constant dense<0xFF800000> : vector<8xf32>
    %137 = vector.multi_reduction <maximumf>, %136, %cst_48 [1] : vector<8x64xf32> to vector<8xf32>
    %138 = vector.shape_cast %137 : vector<8xf32> to vector<8x1xf32>
    %139 = vector.broadcast %138 : vector<8x1xf32> to vector<8x64xf32>
    %140 = arith.subf %136, %139 : vector<8x64xf32>
    %141 = math.exp %140 : vector<8x64xf32>
    %cst_49 = arith.constant 0.000000e+00 : f32
    %142 = vector.broadcast %cst_49 : f32 to vector<8x64xf32>
    %143 = arith.select %50, %141, %142 : vector<8x64xi1>, vector<8x64xf32>
    %cst_50 = arith.constant dense<0.000000e+00> : vector<8xf32>
    %144 = vector.multi_reduction <add>, %143, %cst_50 [1] : vector<8x64xf32> to vector<8xf32>
    %145 = vector.shape_cast %144 : vector<8xf32> to vector<8x1xf32>
    %146 = vector.broadcast %145 : vector<8x1xf32> to vector<8x64xf32>
    %147 = arith.divf %143, %146 : vector<8x64xf32>
    %c0_51 = arith.constant 0 : index
    %c384 = arith.constant 384 : index
    %148 = vector.load %arg10[%c0_51, %c384] : memref<8x512xf32, #tpu.memory_space<vmem>>, vector<8x64xf32>
    tpu.vector_store %arg10[%c0_51, %c384], %147 {strides = array<i32>} : memref<8x512xf32, #tpu.memory_space<vmem>>, vector<8x64xf32>,
    %149 = vector.extract_strided_slice %24 {offsets = [0, 448], sizes = [8, 64], strides = [1, 1]} : vector<8x512xf32> to vector<8x64xf32>
    %150 = arith.addf %149, %47 : vector<8x64xf32>
    %cst_52 = arith.constant dense<0xFF800000> : vector<8xf32>
    %151 = vector.multi_reduction <maximumf>, %150, %cst_52 [1] : vector<8x64xf32> to vector<8xf32>
    %152 = vector.shape_cast %151 : vector<8xf32> to vector<8x1xf32>
    %153 = vector.broadcast %152 : vector<8x1xf32> to vector<8x64xf32>
    %154 = arith.subf %150, %153 : vector<8x64xf32>
    %155 = math.exp %154 : vector<8x64xf32>
    %cst_53 = arith.constant 0.000000e+00 : f32
    %156 = vector.broadcast %cst_53 : f32 to vector<8x64xf32>
    %157 = arith.select %50, %155, %156 : vector<8x64xi1>, vector<8x64xf32>
    %cst_54 = arith.constant dense<0.000000e+00> : vector<8xf32>
    %158 = vector.multi_reduction <add>, %157, %cst_54 [1] : vector<8x64xf32> to vector<8xf32>
    %159 = vector.shape_cast %158 : vector<8xf32> to vector<8x1xf32>
    %160 = vector.broadcast %159 : vector<8x1xf32> to vector<8x64xf32>
    %161 = arith.divf %157, %160 : vector<8x64xf32>
    %c0_55 = arith.constant 0 : index
    %c448 = arith.constant 448 : index
    %162 = vector.load %arg10[%c0_55, %c448] : memref<8x512xf32, #tpu.memory_space<vmem>>, vector<8x64xf32>
    tpu.vector_store %arg10[%c0_55, %c448], %161 {strides = array<i32>} : memref<8x512xf32, #tpu.memory_space<vmem>>, vector<8x64xf32>,
    return
  }
  func.func @transform_0(%arg0: i32) -> (i32, i32) {
    %c0_i32 = arith.constant 0 : i32
    %c0_i32_0 = arith.constant 0 : i32
    return %arg0, %c0_i32 : i32, i32
  }
  func.func @transform_1(%arg0: i32) -> (i32, i32) {
    %c0_i32 = arith.constant 0 : i32
    %c0_i32_0 = arith.constant 0 : i32
    %c0_i32_1 = arith.constant 0 : i32
    return %c0_i32, %c0_i32_0 : i32, i32
  }
  func.func @transform_2(%arg0: i32) -> (i32, i32) {
    %c0_i32 = arith.constant 0 : i32
    %c0_i32_0 = arith.constant 0 : i32
    %c0_i32_1 = arith.constant 0 : i32
    return %c0_i32, %c0_i32_0 : i32, i32
  }
  func.func @transform_3(%arg0: i32) -> (i32, i32) {
    %c0_i32 = arith.constant 0 : i32
    %c0_i32_0 = arith.constant 0 : i32
    %c0_i32_1 = arith.constant 0 : i32
    return %c0_i32, %c0_i32_0 : i32, i32
  }
  func.func @transform_4(%arg0: i32) -> (i32, i32) {
    %c0_i32 = arith.constant 0 : i32
    %c0_i32_0 = arith.constant 0 : i32
    %c0_i32_1 = arith.constant 0 : i32
    return %c0_i32, %c0_i32_0 : i32, i32
  }
  func.func @transform_5(%arg0: i32) -> (i32, i32) {
    %c0_i32 = arith.constant 0 : i32
    %c0_i32_0 = arith.constant 0 : i32
    %c0_i32_1 = arith.constant 0 : i32
    return %c0_i32, %c0_i32_0 : i32, i32
  }
  func.func @transform_6(%arg0: i32) -> (i32, i32) {
    %c0_i32 = arith.constant 0 : i32
    %c0_i32_0 = arith.constant 0 : i32
    %c0_i32_1 = arith.constant 0 : i32
    return %c0_i32, %c0_i32_0 : i32, i32
  }
  func.func @transform_7(%arg0: i32) -> (i32, i32) {
    %c0_i32 = arith.constant 0 : i32
    %c0_i32_0 = arith.constant 0 : i32
    %c0_i32_1 = arith.constant 0 : i32
    return %c0_i32, %c0_i32_0 : i32, i32
  }
  func.func @transform_8(%arg0: i32) -> (i32, i32) {
    %c0_i32 = arith.constant 0 : i32
    %c0_i32_0 = arith.constant 0 : i32
    %c0_i32_1 = arith.constant 0 : i32
    return %c0_i32, %c0_i32_0 : i32, i32
  }
  func.func @transform_9(%arg0: i32) -> (i32, i32) {
    %c0_i32 = arith.constant 0 : i32
    %c0_i32_0 = arith.constant 0 : i32
    return %arg0, %c0_i32 : i32, i32
  }
}

</mosaic_0001>

<llo_original>
// kernel: tpu_custom_call.1
$region0: #{tpu_custom_call.1}
  #allocation0 [shape = 'u32[]', space=smem, size = 0x4, offset = 0x4, fixed_abs, tag = 'smem constant byte address 0x4 - core index']
  #allocation1 [shape = 'u32[144,128]{1,0:T(1,128)}', space=vmem, size = 0x12000, scoped, tag = 'internal scratch']
  %s0 = inlined_call_operand.vmem [shape: bf16[8,128], index: 0, kind: input, shape index: {}]
  %s1 = inlined_call_operand.vmem [shape: bf16[128,512], index: 1, kind: input, shape index: {}]
  %s2 = inlined_call_operand.vmem [shape: f32[1,512], index: 2, kind: input, shape index: {}]
  %s3 = inlined_call_operand.hbm [shape: bf16[512,1024], index: 3, kind: input, shape index: {}]
  %s4 = inlined_call_operand.vmem [shape: f32[1,1024], index: 4, kind: input, shape index: {}]
  %s5 = inlined_call_operand.hbm [shape: bf16[512,512], index: 5, kind: input, shape index: {}]
  %s6 = inlined_call_operand.vmem [shape: f32[1,512], index: 6, kind: input, shape index: {}]
  %s7 = inlined_call_operand.vmem [shape: bf16[512,64], index: 7, kind: input, shape index: {}]
  %s8 = inlined_call_operand.vmem [shape: f32[1,64], index: 8, kind: input, shape index: {}]
  %s9 = inlined_call_operand.hbm [shape: f32[8,512], index: 9, kind: output, shape index: {}]
  %s10 = sld [smem:[#allocation0]]
  $region54: #{tpu_custom_call.1} parent=0
    _
  %s12 = ssub.s32 1, %s10
  %s13 = scalar_select 0, %s12, %s10
  $region1: #{tpu_custom_call.1} parent=0
    #allocation2 [shape = 'u8[1048576]{0}', space=vmem, size = 0x100000, scoped, tag = 'input window, operand 3, single buffered']
    #allocation3 [shape = 's32[1]{0}', space=sflag, size = 0x4, scoped, tag = 'scoped memory for tpu_custom_call.1']
    #allocation4 [shape = 's32[1]{0}', space=sflag, size = 0x4, scoped, tag = 'scoped memory for tpu_custom_call.1']
    #allocation5 [shape = 'u8[524288]{0}', space=vmem, size = 0x80000, scoped, tag = 'input window, operand 5, single buffered']
    #allocation6 [shape = 's32[1]{0}', space=sflag, size = 0x4, scoped, tag = 'scoped memory for tpu_custom_call.1']
    #allocation7 [shape = 'u8[16384]{0}', space=vmem, size = 0x4000, scoped, tag = 'output window, operand 0, single buffered']
    %14 = vsyncpa [#allocation3], 0
    %15 = vsyncpa [#allocation6], 0
    %16 = vsyncpa [#allocation4], 0
    // Predicated region
    $region2: #{tpu_custom_call.1} parent=1 // pred_check
      _
    $region3: #{tpu_custom_call.1} parent=1 // pred_check_branch
      %18 = sbr.rel (0) target = $region5
    $region4: #{tpu_custom_call.1} parent=1 // pred_region
      _
    $region5: #{tpu_custom_call.1} parent=1 // pred_fallthru
      _
    // Predicated region
    $region6: #{tpu_custom_call.1} parent=1 // pred_check
      _
    $region7: #{tpu_custom_call.1} parent=1 // pred_check_branch
      %20 = sbr.rel (0) target = $region9
    $region8: #{tpu_custom_call.1} parent=1 // pred_region
      _
    $region9: #{tpu_custom_call.1} parent=1 // pred_fallthru
      _
    // Predicated region
    $region10: #{tpu_custom_call.1} parent=1 // pred_check
      _
    $region11: #{tpu_custom_call.1} parent=1 // pred_check_branch
      %22 = sbr.rel (0) target = $region13
    $region12: #{tpu_custom_call.1} parent=1 // pred_region
      _
    $region13: #{tpu_custom_call.1} parent=1 // pred_fallthru
      _
    // Predicated region
    $region14: #{tpu_custom_call.1} parent=1 // pred_check
      _
    $region15: #{tpu_custom_call.1} parent=1 // pred_check_branch
      %24 = sbr.rel (0) target = $region17
    $region16: #{tpu_custom_call.1} parent=1 // pred_region
      %s26 = ssub.s32 32768, 32768
      %27 = vsyncadd [#allocation3], %s26
      %s28 = sshll.u32 [#allocation2], 4
      %s29 = int_to_ptr.vmem [resolvable:$true] %s28
      %34 = dma.hbm_to_vmem [thread:$0]  %s3, 32768, %s29, [#allocation3], 512, 512, 32
    $region17: #{tpu_custom_call.1} parent=1 // pred_fallthru
      _
    // Predicated region
    $region18: #{tpu_custom_call.1} parent=1 // pred_check
      _
    $region19: #{tpu_custom_call.1} parent=1 // pred_check_branch
      %36 = sbr.rel (0) target = $region21
    $region20: #{tpu_custom_call.1} parent=1 // pred_region
      _
    $region21: #{tpu_custom_call.1} parent=1 // pred_fallthru
      _
    // Predicated region
    $region22: #{tpu_custom_call.1} parent=1 // pred_check
      _
    $region23: #{tpu_custom_call.1} parent=1 // pred_check_branch
      %38 = sbr.rel (0) target = $region25
    $region24: #{tpu_custom_call.1} parent=1 // pred_region
      %s40 = ssub.s32 16384, 16384
      %41 = vsyncadd [#allocation6], %s40
      %s42 = sshll.u32 [#allocation5], 4
      %s43 = int_to_ptr.vmem [resolvable:$true] %s42
      %48 = dma.hbm_to_vmem [thread:$0]  %s5, 16384, %s43, [#allocation6], 256, 256, 16
    $region25: #{tpu_custom_call.1} parent=1 // pred_fallthru
      _
    // Predicated region
    $region26: #{tpu_custom_call.1} parent=1 // pred_check
      _
    $region27: #{tpu_custom_call.1} parent=1 // pred_check_branch
      %50 = sbr.rel (0) target = $region29
    $region28: #{tpu_custom_call.1} parent=1 // pred_region
      _
    $region29: #{tpu_custom_call.1} parent=1 // pred_fallthru
      _
    // Predicated region
    $region30: #{tpu_custom_call.1} parent=1 // pred_check
      _
    $region31: #{tpu_custom_call.1} parent=1 // pred_check_branch
      %52 = sbr.rel (0) target = $region33
    $region32: #{tpu_custom_call.1} parent=1 // pred_region
      _
    $region33: #{tpu_custom_call.1} parent=1 // pred_fallthru
      _
    // Predicated region
    $region34: #{tpu_custom_call.1} parent=1 // pred_check
      _
    $region35: #{tpu_custom_call.1} parent=1 // pred_check_branch
      %54 = sbr.rel (0) target = $region37
    $region36: #{tpu_custom_call.1} parent=1 // pred_region
      _
    $region37: #{tpu_custom_call.1} parent=1 // pred_fallthru
      _
    // Predicated region
    $region38: #{tpu_custom_call.1} parent=1 // pred_check
      _
    $region39: #{tpu_custom_call.1} parent=1 // pred_check_branch
      %56 = sbr.rel (0) target = $region41
    $region40: #{tpu_custom_call.1} parent=1 // pred_region
      %57 = dma.done [#allocation3], 32768
    $region41: #{tpu_custom_call.1} parent=1 // pred_fallthru
      _
    // Predicated region
    $region42: #{tpu_custom_call.1} parent=1 // pred_check
      _
    $region43: #{tpu_custom_call.1} parent=1 // pred_check_branch
      %59 = sbr.rel (0) target = $region45
    $region44: #{tpu_custom_call.1} parent=1 // pred_region
      %60 = dma.done [#allocation6], 16384
    $region45: #{tpu_custom_call.1} parent=1 // pred_fallthru
      _
    %v62 = vld [vmem:[%s0] sm:$0xf]
    %v63 = vld [vmem:[%s1] sm:$0xff]
    %v64 = vld [vmem:[%s1 + $0x8] sm:$0xff]
    %v65 = vld [vmem:[%s1 + $0x10] sm:$0xff]
    %v66 = vld [vmem:[%s1 + $0x18] sm:$0xff]
    %v67 = vld [vmem:[%s1 + $0x20] sm:$0xff]
    %v68 = vld [vmem:[%s1 + $0x28] sm:$0xff]
    %v69 = vld [vmem:[%s1 + $0x30] sm:$0xff]
    %v70 = vld [vmem:[%s1 + $0x38] sm:$0xff]
    %v71 = vld [vmem:[%s1 + $0x40] sm:$0xff]
    %v72 = vld [vmem:[%s1 + $0x48] sm:$0xff]
    %v73 = vld [vmem:[%s1 + $0x50] sm:$0xff]
    %v74 = vld [vmem:[%s1 + $0x58] sm:$0xff]
    %v75 = vld [vmem:[%s1 + $0x60] sm:$0xff]
    %v76 = vld [vmem:[%s1 + $0x68] sm:$0xff]
    %v77 = vld [vmem:[%s1 + $0x70] sm:$0xff]
    %v78 = vld [vmem:[%s1 + $0x78] sm:$0xff]
    %v79 = vld [vmem:[%s1 + $0x80] sm:$0xff]
    %v80 = vld [vmem:[%s1 + $0x88] sm:$0xff]
    %v81 = vld [vmem:[%s1 + $0x90] sm:$0xff]
    %v82 = vld [vmem:[%s1 + $0x98] sm:$0xff]
    %v83 = vld [vmem:[%s1 + $0xa0] sm:$0xff]
    %v84 = vld [vmem:[%s1 + $0xa8] sm:$0xff]
    %v85 = vld [vmem:[%s1 + $0xb0] sm:$0xff]
    %v86 = vld [vmem:[%s1 + $0xb8] sm:$0xff]
    %v87 = vld [vmem:[%s1 + $0xc0] sm:$0xff]
    %v88 = vld [vmem:[%s1 + $0xc8] sm:$0xff]
    %v89 = vld [vmem:[%s1 + $0xd0] sm:$0xff]
    %v90 = vld [vmem:[%s1 + $0xd8] sm:$0xff]
    %v91 = vld [vmem:[%s1 + $0xe0] sm:$0xff]
    %v92 = vld [vmem:[%s1 + $0xe8] sm:$0xff]
    %v93 = vld [vmem:[%s1 + $0xf0] sm:$0xff]
    %v94 = vld [vmem:[%s1 + $0xf8] sm:$0xff]
    %v95 = vld [vmem:[%s2] sm:$0xf]
    %v97 = vlaneseq
    %v98 = vshrl.u32 %v97, 7
    %v99 = vsub.s32 0, %v98
    %v100 = vrot.slane %v95, %v99
    %v101 = vlaneseq
    %v102 = vshrl.u32 %v101, 7
    %v103 = vsub.s32 1, %v102
    %v104 = vrot.slane %v95, %v103
    %v105 = vlaneseq
    %v106 = vshrl.u32 %v105, 7
    %v107 = vsub.s32 2, %v106
    %v108 = vrot.slane %v95, %v107
    %v109 = vlaneseq
    %v110 = vshrl.u32 %v109, 7
    %v111 = vsub.s32 3, %v110
    %v112 = vrot.slane %v95, %v111
    %v149 = vunpack.c.l.b16 %v63
    %v150 = vunpack.c.h.b16 %v63
    %v151 = vunpack.c.l.b16 %v64
    %v152 = vunpack.c.h.b16 %v64
    %v153 = vunpack.c.l.b16 %v65
    %v154 = vunpack.c.h.b16 %v65
    %v155 = vunpack.c.l.b16 %v66
    %v156 = vunpack.c.h.b16 %v66
    %v157 = vunpack.c.l.b16 %v67
    %v158 = vunpack.c.h.b16 %v67
    %v159 = vunpack.c.l.b16 %v68
    %v160 = vunpack.c.h.b16 %v68
    %v161 = vunpack.c.l.b16 %v69
    %v162 = vunpack.c.h.b16 %v69
    %v163 = vunpack.c.l.b16 %v70
    %v164 = vunpack.c.h.b16 %v70
    %v165 = vunpack.c.l.b16 %v71
    %v166 = vunpack.c.h.b16 %v71
    %v167 = vunpack.c.l.b16 %v72
    %v168 = vunpack.c.h.b16 %v72
    %v169 = vunpack.c.l.b16 %v73
    %v170 = vunpack.c.h.b16 %v73
    %v171 = vunpack.c.l.b16 %v74
    %v172 = vunpack.c.h.b16 %v74
    %v173 = vunpack.c.l.b16 %v75
    %v174 = vunpack.c.h.b16 %v75
    %v175 = vunpack.c.l.b16 %v76
    %v176 = vunpack.c.h.b16 %v76
    %v177 = vunpack.c.l.b16 %v77
    %v178 = vunpack.c.h.b16 %v77
    %v179 = vunpack.c.l.b16 %v78
    %v180 = vunpack.c.h.b16 %v78
    %v181 = vunpack.c.l.b16 %v79
    %v182 = vunpack.c.h.b16 %v79
    %v183 = vunpack.c.l.b16 %v80
    %v184 = vunpack.c.h.b16 %v80
    %v185 = vunpack.c.l.b16 %v81
    %v186 = vunpack.c.h.b16 %v81
    %v187 = vunpack.c.l.b16 %v82
    %v188 = vunpack.c.h.b16 %v82
    %v189 = vunpack.c.l.b16 %v83
    %v190 = vunpack.c.h.b16 %v83
    %v191 = vunpack.c.l.b16 %v84
    %v192 = vunpack.c.h.b16 %v84
    %v193 = vunpack.c.l.b16 %v85
    %v194 = vunpack.c.h.b16 %v85
    %v195 = vunpack.c.l.b16 %v86
    %v196 = vunpack.c.h.b16 %v86
    %v197 = vunpack.c.l.b16 %v87
    %v198 = vunpack.c.h.b16 %v87
    %v199 = vunpack.c.l.b16 %v88
    %v200 = vunpack.c.h.b16 %v88
    %v201 = vunpack.c.l.b16 %v89
    %v202 = vunpack.c.h.b16 %v89
    %v203 = vunpack.c.l.b16 %v90
    %v204 = vunpack.c.h.b16 %v90
    %v205 = vunpack.c.l.b16 %v91
    %v206 = vunpack.c.h.b16 %v91
    %v207 = vunpack.c.l.b16 %v92
    %v208 = vunpack.c.h.b16 %v92
    %v209 = vunpack.c.l.b16 %v93
    %v210 = vunpack.c.h.b16 %v93
    %v211 = vunpack.c.l.b16 %v94
    %v212 = vunpack.c.h.b16 %v94
    %v213 = vpack.c.b16 %v153, %v149
    %v214 = vpack.c.b16 %v154, %v150
    %v215 = vpack.c.b16 %v155, %v151
    %v216 = vpack.c.b16 %v156, %v152
    %v217 = vpack.c.b16 %v161, %v157
    %v218 = vpack.c.b16 %v162, %v158
    %v219 = vpack.c.b16 %v163, %v159
    %v220 = vpack.c.b16 %v164, %v160
    %v221 = vpack.c.b16 %v169, %v165
    %v222 = vpack.c.b16 %v170, %v166
    %v223 = vpack.c.b16 %v171, %v167
    %v224 = vpack.c.b16 %v172, %v168
    %v225 = vpack.c.b16 %v177, %v173
    %v226 = vpack.c.b16 %v178, %v174
    %v227 = vpack.c.b16 %v179, %v175
    %v228 = vpack.c.b16 %v180, %v176
    %v229 = vpack.c.b16 %v185, %v181
    %v230 = vpack.c.b16 %v186, %v182
    %v231 = vpack.c.b16 %v187, %v183
    %v232 = vpack.c.b16 %v188, %v184
    %v233 = vpack.c.b16 %v193, %v189
    %v234 = vpack.c.b16 %v194, %v190
    %v235 = vpack.c.b16 %v195, %v191
    %v236 = vpack.c.b16 %v196, %v192
    %v237 = vpack.c.b16 %v201, %v197
    %v238 = vpack.c.b16 %v202, %v198
    %v239 = vpack.c.b16 %v203, %v199
    %v240 = vpack.c.b16 %v204, %v200
    %v241 = vpack.c.b16 %v209, %v205
    %v242 = vpack.c.b16 %v210, %v206
    %v243 = vpack.c.b16 %v211, %v207
    %v244 = vpack.c.b16 %v212, %v208
    %277 = vmatprep.subr.bf16.mxu0 %v242
    %278 = vmatpush1.bf16.msra.mxu0 %v241
    %279 = vmatprep.subr.bf16.mxu0 %v238
    %280 = vmatpush1.bf16.msra.mxu0 %v237
    %281 = vmatprep.subr.bf16.mxu0 %v234
    %282 = vmatpush1.bf16.msra.mxu0 %v233
    %283 = vmatprep.subr.bf16.mxu0 %v230
    %284 = vmatpush1.bf16.msra.mxu0 %v229
    %285 = vmatprep.subr.bf16.mxu0 %v226
    %286 = vmatpush1.bf16.msra.mxu0 %v225
    %287 = vmatprep.subr.bf16.mxu0 %v222
    %288 = vmatpush1.bf16.msra.mxu0 %v221
    %289 = vmatprep.subr.bf16.mxu0 %v218
    %290 = vmatpush1.bf16.msra.mxu0 %v217
    %291 = vmatprep.subr.bf16.mxu0 %v214
    %292 = vmatpush1.bf16.msra.mxu0 %v213
    %293 = vmatprep.subr.bf16.mxu0 0
    %294 = vmatpush2.bf16.msra.mxu0 0
    %295 = vmatprep.subr.bf16.mxu0 0
    %296 = vmatpush2.bf16.msra.mxu0 0
    %297 = vmatprep.subr.bf16.mxu0 0
    %298 = vmatpush2.bf16.msra.mxu0 0
    %299 = vmatprep.subr.bf16.mxu0 0
    %300 = vmatpush2.bf16.msra.mxu0 0
    %301 = vmatprep.subr.bf16.mxu0 0
    %302 = vmatpush2.bf16.msra.mxu0 0
    %303 = vmatprep.subr.bf16.mxu0 0
    %304 = vmatpush2.bf16.msra.mxu0 0
    %305 = vmatprep.subr.bf16.mxu0 0
    %306 = vmatpush2.bf16.msra.mxu0 0
    %307 = vmatprep.subr.bf16.mxu0 0
    %308 = vmatpush2.bf16.msra.mxu0 0
    %309 = vmatprep.mubr.bf16.mxu0 0
    %310 = vmatmul.mubr.bf16.gmra.mxu0 %v62
    %v311 = vpop.f32.mrf.mxu0
    %v312 = vadd.f32 %v100, %v311
    %v313 = vpop.f32.mrf.mxu0
    %v314 = vadd.f32 %v104, %v313
    %v315 = vpop.f32.mrf.mxu0
    %v316 = vpop.f32.mrf.mxu0
    %317 = vdwg.mxu0
    %318 = vmatprep.subr.bf16.mxu0 %v244
    %319 = vmatpush1.bf16.msra.mxu0 %v243
    %320 = vmatprep.subr.bf16.mxu0 %v240
    %321 = vmatpush1.bf16.msra.mxu0 %v239
    %322 = vmatprep.subr.bf16.mxu0 %v236
    %323 = vmatpush1.bf16.msra.mxu0 %v235
    %324 = vmatprep.subr.bf16.mxu0 %v232
    %325 = vmatpush1.bf16.msra.mxu0 %v231
    %326 = vmatprep.subr.bf16.mxu0 %v228
    %327 = vmatpush1.bf16.msra.mxu0 %v227
    %328 = vmatprep.subr.bf16.mxu0 %v224
    %329 = vmatpush1.bf16.msra.mxu0 %v223
    %330 = vmatprep.subr.bf16.mxu0 %v220
    %331 = vmatpush1.bf16.msra.mxu0 %v219
    %332 = vmatprep.subr.bf16.mxu0 %v216
    %333 = vmatpush1.bf16.msra.mxu0 %v215
    %334 = vmatprep.subr.bf16.mxu0 0
    %335 = vmatpush2.bf16.msra.mxu0 0
    %336 = vmatprep.subr.bf16.mxu0 0
    %337 = vmatpush2.bf16.msra.mxu0 0
    %338 = vmatprep.subr.bf16.mxu0 0
    %339 = vmatpush2.bf16.msra.mxu0 0
    %340 = vmatprep.subr.bf16.mxu0 0
    %341 = vmatpush2.bf16.msra.mxu0 0
    %342 = vmatprep.subr.bf16.mxu0 0
    %343 = vmatpush2.bf16.msra.mxu0 0
    %344 = vmatprep.subr.bf16.mxu0 0
    %345 = vmatpush2.bf16.msra.mxu0 0
    %346 = vmatprep.subr.bf16.mxu0 0
    %347 = vmatpush2.bf16.msra.mxu0 0
    %348 = vmatprep.subr.bf16.mxu0 0
    %349 = vmatpush2.bf16.msra.mxu0 0
    %350 = vmatprep.mubr.bf16.mxu0 0
    %351 = vmatmul.mubr.bf16.gmra.mxu0 %v62
    %v352 = vpop.f32.mrf.mxu0
    %v353 = vadd.f32 %v108, %v352
    %v354 = vpop.f32.mrf.mxu0
    %v355 = vadd.f32 %v112, %v354
    %v356 = vpop.f32.mrf.mxu0
    %v357 = vpop.f32.mrf.mxu0
    %358 = vdwg.mxu0
    %v359 = vmax.f32 %v312, 0.0
    %v360 = vmax.f32 %v314, 0.0
    %v361 = vmax.f32 %v353, 0.0
    %v362 = vmax.f32 %v355, 0.0
    %v363 = vpack.c.bf16 %v359, %v359
    %v364 = vpack.c.bf16 %v360, %v360
    %v365 = vpack.c.bf16 %v361, %v361
    %v366 = vpack.c.bf16 %v362, %v362
    %v367 = vld [vmem:[#allocation2] sm:$0xff]
    %v368 = vld [vmem:[#allocation2 + $0x8] sm:$0xff]
    %v369 = vld [vmem:[#allocation2 + $0x10] sm:$0xff]
    %v370 = vld [vmem:[#allocation2 + $0x18] sm:$0xff]
    %v371 = vld [vmem:[#allocation2 + $0x20] sm:$0xff]
    %v372 = vld [vmem:[#allocation2 + $0x28] sm:$0xff]
    %v373 = vld [vmem:[#allocation2 + $0x30] sm:$0xff]
    %v374 = vld [vmem:[#allocation2 + $0x38] sm:$0xff]
    %v375 = vld [vmem:[#allocation2 + $0x40] sm:$0xff]
    %v376 = vld [vmem:[#allocation2 + $0x48] sm:$0xff]
    %v377 = vld [vmem:[#allocation2 + $0x50] sm:$0xff]
    %v378 = vld [vmem:[#allocation2 + $0x58] sm:$0xff]
    %v379 = vld [vmem:[#allocation2 + $0x60] sm:$0xff]
    %v380 = vld [vmem:[#allocation2 + $0x68] sm:$0xff]
    %v381 = vld [vmem:[#allocation2 + $0x70] sm:$0xff]
    %v382 = vld [vmem:[#allocation2 + $0x78] sm:$0xff]
    %v383 = vld [vmem:[#allocation2 + $0x80] sm:$0xff]
    %v384 = vld [vmem:[#allocation2 + $0x88] sm:$0xff]
    %v385 = vld [vmem:[#allocation2 + $0x90] sm:$0xff]
    %v386 = vld [vmem:[#allocation2 + $0x98] sm:$0xff]
    %v387 = vld [vmem:[#allocation2 + $0xa0] sm:$0xff]
    %v388 = vld [vmem:[#allocation2 + $0xa8] sm:$0xff]
    %v389 = vld [vmem:[#allocation2 + $0xb0] sm:$0xff]
    %v390 = vld [vmem:[#allocation2 + $0xb8] sm:$0xff]
    %v391 = vld [vmem:[#allocation2 + $0xc0] sm:$0xff]
    %v392 = vld [vmem:[#allocation2 + $0xc8] sm:$0xff]
    %v393 = vld [vmem:[#allocation2 + $0xd0] sm:$0xff]
    %v394 = vld [vmem:[#allocation2 + $0xd8] sm:$0xff]
    %v395 = vld [vmem:[#allocation2 + $0xe0] sm:$0xff]
    %v396 = vld [vmem:[#allocation2 + $0xe8] sm:$0xff]
    %v397 = vld [vmem:[#allocation2 + $0xf0] sm:$0xff]
    %v398 = vld [vmem:[#allocation2 + $0xf8] sm:$0xff]
    %v399 = vld [vmem:[#allocation2 + $0x100] sm:$0xff]
    %v400 = vld [vmem:[#allocation2 + $0x108] sm:$0xff]
    %v401 = vld [vmem:[#allocation2 + $0x110] sm:$0xff]
    %v402 = vld [vmem:[#allocation2 + $0x118] sm:$0xff]
    %v403 = vld [vmem:[#allocation2 + $0x120] sm:$0xff]
    %v404 = vld [vmem:[#allocation2 + $0x128] sm:$0xff]
    %v405 = vld [vmem:[#allocation2 + $0x130] sm:$0xff]
    %v406 = vld [vmem:[#allocation2 + $0x138] sm:$0xff]
    %v407 = vld [vmem:[#allocation2 + $0x140] sm:$0xff]
    %v408 = vld [vmem:[#allocation2 + $0x148] sm:$0xff]
    %v409 = vld [vmem:[#allocation2 + $0x150] sm:$0xff]
    %v410 = vld [vmem:[#allocation2 + $0x158] sm:$0xff]
    %v411 = vld [vmem:[#allocation2 + $0x160] sm:$0xff]
    %v412 = vld [vmem:[#allocation2 + $0x168] sm:$0xff]
    %v413 = vld [vmem:[#allocation2 + $0x170] sm:$0xff]
    %v414 = vld [vmem:[#allocation2 + $0x178] sm:$0xff]
    %v415 = vld [vmem:[#allocation2 + $0x180] sm:$0xff]
    %v416 = vld [vmem:[#allocation2 + $0x188] sm:$0xff]
    %v417 = vld [vmem:[#allocation2 + $0x190] sm:$0xff]
    %v418 = vld [vmem:[#allocation2 + $0x198] sm:$0xff]
    %v419 = vld [vmem:[#allocation2 + $0x1a0] sm:$0xff]
    %v420 = vld [vmem:[#allocation2 + $0x1a8] sm:$0xff]
    %v421 = vld [vmem:[#allocation2 + $0x1b0] sm:$0xff]
    %v422 = vld [vmem:[#allocation2 + $0x1b8] sm:$0xff]
    %v423 = vld [vmem:[#allocation2 + $0x1c0] sm:$0xff]
    %v424 = vld [vmem:[#allocation2 + $0x1c8] sm:$0xff]
    %v425 = vld [vmem:[#allocation2 + $0x1d0] sm:$0xff]
    %v426 = vld [vmem:[#allocation2 + $0x1d8] sm:$0xff]
    %v427 = vld [vmem:[#allocation2 + $0x1e0] sm:$0xff]
    %v428 = vld [vmem:[#allocation2 + $0x1e8] sm:$0xff]
    %v429 = vld [vmem:[#allocation2 + $0x1f0] sm:$0xff]
    %v430 = vld [vmem:[#allocation2 + $0x1f8] sm:$0xff]
    %v431 = vld [vmem:[#allocation2 + $0x200] sm:$0xff]
    %v432 = vld [vmem:[#allocation2 + $0x208] sm:$0xff]
    %v433 = vld [vmem:[#allocation2 + $0x210] sm:$0xff]
    %v434 = vld [vmem:[#allocation2 + $0x218] sm:$0xff]
    %v435 = vld [vmem:[#allocation2 + $0x220] sm:$0xff]
    %v436 = vld [vmem:[#allocation2 + $0x228] sm:$0xff]
    %v437 = vld [vmem:[#allocation2 + $0x230] sm:$0xff]
    %v438 = vld [vmem:[#allocation2 + $0x238] sm:$0xff]
    %v439 = vld [vmem:[#allocation2 + $0x240] sm:$0xff]
    %v440 = vld [vmem:[#allocation2 + $0x248] sm:$0xff]
    %v441 = vld [vmem:[#allocation2 + $0x250] sm:$0xff]
    %v442 = vld [vmem:[#allocation2 + $0x258] sm:$0xff]
    %v443 = vld [vmem:[#allocation2 + $0x260] sm:$0xff]
    %v444 = vld [vmem:[#allocation2 + $0x268] sm:$0xff]
    %v445 = vld [vmem:[#allocation2 + $0x270] sm:$0xff]
    %v446 = vld [vmem:[#allocation2 + $0x278] sm:$0xff]
    %v447 = vld [vmem:[#allocation2 + $0x280] sm:$0xff]
    %v448 = vld [vmem:[#allocation2 + $0x288] sm:$0xff]
    %v449 = vld [vmem:[#allocation2 + $0x290] sm:$0xff]
    %v450 = vld [vmem:[#allocation2 + $0x298] sm:$0xff]
    %v451 = vld [vmem:[#allocation2 + $0x2a0] sm:$0xff]
    %v452 = vld [vmem:[#allocation2 + $0x2a8] sm:$0xff]
    %v453 = vld [vmem:[#allocation2 + $0x2b0] sm:$0xff]
    %v454 = vld [vmem:[#allocation2 + $0x2b8] sm:$0xff]
    %v455 = vld [vmem:[#allocation2 + $0x2c0] sm:$0xff]
    %v456 = vld [vmem:[#allocation2 + $0x2c8] sm:$0xff]
    %v457 = vld [vmem:[#allocation2 + $0x2d0] sm:$0xff]
    %v458 = vld [vmem:[#allocation2 + $0x2d8] sm:$0xff]
    %v459 = vld [vmem:[#allocation2 + $0x2e0] sm:$0xff]
    %v460 = vld [vmem:[#allocation2 + $0x2e8] sm:$0xff]
    %v461 = vld [vmem:[#allocation2 + $0x2f0] sm:$0xff]
    %v462 = vld [vmem:[#allocation2 + $0x2f8] sm:$0xff]
    %v463 = vld [vmem:[#allocation2 + $0x300] sm:$0xff]
    %v464 = vld [vmem:[#allocation2 + $0x308] sm:$0xff]
    %v465 = vld [vmem:[#allocation2 + $0x310] sm:$0xff]
    %v466 = vld [vmem:[#allocation2 + $0x318] sm:$0xff]
    %v467 = vld [vmem:[#allocation2 + $0x320] sm:$0xff]
    %v468 = vld [vmem:[#allocation2 + $0x328] sm:$0xff]
    %v469 = vld [vmem:[#allocation2 + $0x330] sm:$0xff]
    %v470 = vld [vmem:[#allocation2 + $0x338] sm:$0xff]
    %v471 = vld [vmem:[#allocation2 + $0x340] sm:$0xff]
    %v472 = vld [vmem:[#allocation2 + $0x348] sm:$0xff]
    %v473 = vld [vmem:[#allocation2 + $0x350] sm:$0xff]
    %v474 = vld [vmem:[#allocation2 + $0x358] sm:$0xff]
    %v475 = vld [vmem:[#allocation2 + $0x360] sm:$0xff]
    %v476 = vld [vmem:[#allocation2 + $0x368] sm:$0xff]
    %v477 = vld [vmem:[#allocation2 + $0x370] sm:$0xff]
    %v478 = vld [vmem:[#allocation2 + $0x378] sm:$0xff]
    %v479 = vld [vmem:[#allocation2 + $0x380] sm:$0xff]
    %v480 = vld [vmem:[#allocation2 + $0x388] sm:$0xff]
    %v481 = vld [vmem:[#allocation2 + $0x390] sm:$0xff]
    %v482 = vld [vmem:[#allocation2 + $0x398] sm:$0xff]
    %v483 = vld [vmem:[#allocation2 + $0x3a0] sm:$0xff]
    %v484 = vld [vmem:[#allocation2 + $0x3a8] sm:$0xff]
    %v485 = vld [vmem:[#allocation2 + $0x3b0] sm:$0xff]
    %v486 = vld [vmem:[#allocation2 + $0x3b8] sm:$0xff]
    %v487 = vld [vmem:[#allocation2 + $0x3c0] sm:$0xff]
    %v488 = vld [vmem:[#allocation2 + $0x3c8] sm:$0xff]
    %v489 = vld [vmem:[#allocation2 + $0x3d0] sm:$0xff]
    %v490 = vld [vmem:[#allocation2 + $0x3d8] sm:$0xff]
    %v491 = vld [vmem:[#allocation2 + $0x3e0] sm:$0xff]
    %v492 = vld [vmem:[#allocation2 + $0x3e8] sm:$0xff]
    %v493 = vld [vmem:[#allocation2 + $0x3f0] sm:$0xff]
    %v494 = vld [vmem:[#allocation2 + $0x3f8] sm:$0xff]
    %v495 = vld [vmem:[#allocation2 + $0x400] sm:$0xff]
    %v496 = vld [vmem:[#allocation2 + $0x408] sm:$0xff]
    %v497 = vld [vmem:[#allocation2 + $0x410] sm:$0xff]
    %v498 = vld [vmem:[#allocation2 + $0x418] sm:$0xff]
    %v499 = vld [vmem:[#allocation2 + $0x420] sm:$0xff]
    %v500 = vld [vmem:[#allocation2 + $0x428] sm:$0xff]
    %v501 = vld [vmem:[#allocation2 + $0x430] sm:$0xff]
    %v502 = vld [vmem:[#allocation2 + $0x438] sm:$0xff]
    %v503 = vld [vmem:[#allocation2 + $0x440] sm:$0xff]
    %v504 = vld [vmem:[#allocation2 + $0x448] sm:$0xff]
    %v505 = vld [vmem:[#allocation2 + $0x450] sm:$0xff]
    %v506 = vld [vmem:[#allocation2 + $0x458] sm:$0xff]
    %v507 = vld [vmem:[#allocation2 + $0x460] sm:$0xff]
    %v508 = vld [vmem:[#allocation2 + $0x468] sm:$0xff]
    %v509 = vld [vmem:[#allocation2 + $0x470] sm:$0xff]
    %v510 = vld [vmem:[#allocation2 + $0x478] sm:$0xff]
    %v511 = vld [vmem:[#allocation2 + $0x480] sm:$0xff]
    %v512 = vld [vmem:[#allocation2 + $0x488] sm:$0xff]
    %v513 = vld [vmem:[#allocation2 + $0x490] sm:$0xff]
    %v514 = vld [vmem:[#allocation2 + $0x498] sm:$0xff]
    %v515 = vld [vmem:[#allocation2 + $0x4a0] sm:$0xff]
    %v516 = vld [vmem:[#allocation2 + $0x4a8] sm:$0xff]
    %v517 = vld [vmem:[#allocation2 + $0x4b0] sm:$0xff]
    %v518 = vld [vmem:[#allocation2 + $0x4b8] sm:$0xff]
    %v519 = vld [vmem:[#allocation2 + $0x4c0] sm:$0xff]
    %v520 = vld [vmem:[#allocation2 + $0x4c8] sm:$0xff]
    %v521 = vld [vmem:[#allocation2 + $0x4d0] sm:$0xff]
    %v522 = vld [vmem:[#allocation2 + $0x4d8] sm:$0xff]
    %v523 = vld [vmem:[#allocation2 + $0x4e0] sm:$0xff]
    %v524 = vld [vmem:[#allocation2 + $0x4e8] sm:$0xff]
    %v525 = vld [vmem:[#allocation2 + $0x4f0] sm:$0xff]
    %v526 = vld [vmem:[#allocation2 + $0x4f8] sm:$0xff]
    %v527 = vld [vmem:[#allocation2 + $0x500] sm:$0xff]
    %v528 = vld [vmem:[#allocation2 + $0x508] sm:$0xff]
    %v529 = vld [vmem:[#allocation2 + $0x510] sm:$0xff]
    %v530 = vld [vmem:[#allocation2 + $0x518] sm:$0xff]
    %v531 = vld [vmem:[#allocation2 + $0x520] sm:$0xff]
    %v532 = vld [vmem:[#allocation2 + $0x528] sm:$0xff]
    %v533 = vld [vmem:[#allocation2 + $0x530] sm:$0xff]
    %v534 = vld [vmem:[#allocation2 + $0x538] sm:$0xff]
    %v535 = vld [vmem:[#allocation2 + $0x540] sm:$0xff]
    %v536 = vld [vmem:[#allocation2 + $0x548] sm:$0xff]
    %v537 = vld [vmem:[#allocation2 + $0x550] sm:$0xff]
    %v538 = vld [vmem:[#allocation2 + $0x558] sm:$0xff]
    %v539 = vld [vmem:[#allocation2 + $0x560] sm:$0xff]
    %v540 = vld [vmem:[#allocation2 + $0x568] sm:$0xff]
    %v541 = vld [vmem:[#allocation2 + $0x570] sm:$0xff]
    %v542 = vld [vmem:[#allocation2 + $0x578] sm:$0xff]
    %v543 = vld [vmem:[#allocation2 + $0x580] sm:$0xff]
    %v544 = vld [vmem:[#allocation2 + $0x588] sm:$0xff]
    %v545 = vld [vmem:[#allocation2 + $0x590] sm:$0xff]
    %v546 = vld [vmem:[#allocation2 + $0x598] sm:$0xff]
    %v547 = vld [vmem:[#allocation2 + $0x5a0] sm:$0xff]
    %v548 = vld [vmem:[#allocation2 + $0x5a8] sm:$0xff]
    %v549 = vld [vmem:[#allocation2 + $0x5b0] sm:$0xff]
    %v550 = vld [vmem:[#allocation2 + $0x5b8] sm:$0xff]
    %v551 = vld [vmem:[#allocation2 + $0x5c0] sm:$0xff]
    %v552 = vld [vmem:[#allocation2 + $0x5c8] sm:$0xff]
    %v553 = vld [vmem:[#allocation2 + $0x5d0] sm:$0xff]
    %v554 = vld [vmem:[#allocation2 + $0x5d8] sm:$0xff]
    %v555 = vld [vmem:[#allocation2 + $0x5e0] sm:$0xff]
    %v556 = vld [vmem:[#allocation2 + $0x5e8] sm:$0xff]
    %v557 = vld [vmem:[#allocation2 + $0x5f0] sm:$0xff]
    %v558 = vld [vmem:[#allocation2 + $0x5f8] sm:$0xff]
    %v559 = vld [vmem:[#allocation2 + $0x600] sm:$0xff]
    %v560 = vld [vmem:[#allocation2 + $0x608] sm:$0xff]
    %v561 = vld [vmem:[#allocation2 + $0x610] sm:$0xff]
    %v562 = vld [vmem:[#allocation2 + $0x618] sm:$0xff]
    %v563 = vld [vmem:[#allocation2 + $0x620] sm:$0xff]
    %v564 = vld [vmem:[#allocation2 + $0x628] sm:$0xff]
    %v565 = vld [vmem:[#allocation2 + $0x630] sm:$0xff]
    %v566 = vld [vmem:[#allocation2 + $0x638] sm:$0xff]
    %v567 = vld [vmem:[#allocation2 + $0x640] sm:$0xff]
    %v568 = vld [vmem:[#allocation2 + $0x648] sm:$0xff]
    %v569 = vld [vmem:[#allocation2 + $0x650] sm:$0xff]
    %v570 = vld [vmem:[#allocation2 + $0x658] sm:$0xff]
    %v571 = vld [vmem:[#allocation2 + $0x660] sm:$0xff]
    %v572 = vld [vmem:[#allocation2 + $0x668] sm:$0xff]
    %v573 = vld [vmem:[#allocation2 + $0x670] sm:$0xff]
    %v574 = vld [vmem:[#allocation2 + $0x678] sm:$0xff]
    %v575 = vld [vmem:[#allocation2 + $0x680] sm:$0xff]
    %v576 = vld [vmem:[#allocation2 + $0x688] sm:$0xff]
    %v577 = vld [vmem:[#allocation2 + $0x690] sm:$0xff]
    %v578 = vld [vmem:[#allocation2 + $0x698] sm:$0xff]
    %v579 = vld [vmem:[#allocation2 + $0x6a0] sm:$0xff]
    %v580 = vld [vmem:[#allocation2 + $0x6a8] sm:$0xff]
    %v581 = vld [vmem:[#allocation2 + $0x6b0] sm:$0xff]
    %v582 = vld [vmem:[#allocation2 + $0x6b8] sm:$0xff]
    %v583 = vld [vmem:[#allocation2 + $0x6c0] sm:$0xff]
    %v584 = vld [vmem:[#allocation2 + $0x6c8] sm:$0xff]
    %v585 = vld [vmem:[#allocation2 + $0x6d0] sm:$0xff]
    %v586 = vld [vmem:[#allocation2 + $0x6d8] sm:$0xff]
    %v587 = vld [vmem:[#allocation2 + $0x6e0] sm:$0xff]
    %v588 = vld [vmem:[#allocation2 + $0x6e8] sm:$0xff]
    %v589 = vld [vmem:[#allocation2 + $0x6f0] sm:$0xff]
    %v590 = vld [vmem:[#allocation2 + $0x6f8] sm:$0xff]
    %v591 = vld [vmem:[#allocation2 + $0x700] sm:$0xff]
    %v592 = vld [vmem:[#allocation2 + $0x708] sm:$0xff]
    %v593 = vld [vmem:[#allocation2 + $0x710] sm:$0xff]
    %v594 = vld [vmem:[#allocation2 + $0x718] sm:$0xff]
    %v595 = vld [vmem:[#allocation2 + $0x720] sm:$0xff]
    %v596 = vld [vmem:[#allocation2 + $0x728] sm:$0xff]
    %v597 = vld [vmem:[#allocation2 + $0x730] sm:$0xff]
    %v598 = vld [vmem:[#allocation2 + $0x738] sm:$0xff]
    %v599 = vld [vmem:[#allocation2 + $0x740] sm:$0xff]
    %v600 = vld [vmem:[#allocation2 + $0x748] sm:$0xff]
    %v601 = vld [vmem:[#allocation2 + $0x750] sm:$0xff]
    %v602 = vld [vmem:[#allocation2 + $0x758] sm:$0xff]
    %v603 = vld [vmem:[#allocation2 + $0x760] sm:$0xff]
    %v604 = vld [vmem:[#allocation2 + $0x768] sm:$0xff]
    %v605 = vld [vmem:[#allocation2 + $0x770] sm:$0xff]
    %v606 = vld [vmem:[#allocation2 + $0x778] sm:$0xff]
    %v607 = vld [vmem:[#allocation2 + $0x780] sm:$0xff]
    %v608 = vld [vmem:[#allocation2 + $0x788] sm:$0xff]
    %v609 = vld [vmem:[#allocation2 + $0x790] sm:$0xff]
    %v610 = vld [vmem:[#allocation2 + $0x798] sm:$0xff]
    %v611 = vld [vmem:[#allocation2 + $0x7a0] sm:$0xff]
    %v612 = vld [vmem:[#allocation2 + $0x7a8] sm:$0xff]
    %v613 = vld [vmem:[#allocation2 + $0x7b0] sm:$0xff]
    %v614 = vld [vmem:[#allocation2 + $0x7b8] sm:$0xff]
    %v615 = vld [vmem:[#allocation2 + $0x7c0] sm:$0xff]
    %v616 = vld [vmem:[#allocation2 + $0x7c8] sm:$0xff]
    %v617 = vld [vmem:[#allocation2 + $0x7d0] sm:$0xff]
    %v618 = vld [vmem:[#allocation2 + $0x7d8] sm:$0xff]
    %v619 = vld [vmem:[#allocation2 + $0x7e0] sm:$0xff]
    %v620 = vld [vmem:[#allocation2 + $0x7e8] sm:$0xff]
    %v621 = vld [vmem:[#allocation2 + $0x7f0] sm:$0xff]
    %v622 = vld [vmem:[#allocation2 + $0x7f8] sm:$0xff]
    %v623 = vld [vmem:[%s4] sm:$0xff]
    %v625 = vlaneseq
    %v626 = vshrl.u32 %v625, 7
    %v627 = vsub.s32 0, %v626
    %v628 = vrot.slane %v623, %v627
    %v629 = vlaneseq
    %v630 = vshrl.u32 %v629, 7
    %v631 = vsub.s32 1, %v630
    %v632 = vrot.slane %v623, %v631
    %v633 = vlaneseq
    %v634 = vshrl.u32 %v633, 7
    %v635 = vsub.s32 2, %v634
    %v636 = vrot.slane %v623, %v635
    %v637 = vlaneseq
    %v638 = vshrl.u32 %v637, 7
    %v639 = vsub.s32 3, %v638
    %v640 = vrot.slane %v623, %v639
    %v641 = vlaneseq
    %v642 = vshrl.u32 %v641, 7
    %v643 = vsub.s32 4, %v642
    %v644 = vrot.slane %v623, %v643
    %v645 = vlaneseq
    %v646 = vshrl.u32 %v645, 7
    %v647 = vsub.s32 5, %v646
    %v648 = vrot.slane %v623, %v647
    %v649 = vlaneseq
    %v650 = vshrl.u32 %v649, 7
    %v651 = vsub.s32 6, %v650
    %v652 = vrot.slane %v623, %v651
    %v653 = vlaneseq
    %v654 = vshrl.u32 %v653, 7
    %v655 = vsub.s32 7, %v654
    %v656 = vrot.slane %v623, %v655
    %v921 = vunpack.c.l.b16 %v367
    %v922 = vunpack.c.h.b16 %v367
    %v923 = vunpack.c.l.b16 %v368
    %v924 = vunpack.c.h.b16 %v368
    %v925 = vunpack.c.l.b16 %v369
    %v926 = vunpack.c.h.b16 %v369
    %v927 = vunpack.c.l.b16 %v370
    %v928 = vunpack.c.h.b16 %v370
    %v929 = vunpack.c.l.b16 %v371
    %v930 = vunpack.c.h.b16 %v371
    %v931 = vunpack.c.l.b16 %v372
    %v932 = vunpack.c.h.b16 %v372
    %v933 = vunpack.c.l.b16 %v373
    %v934 = vunpack.c.h.b16 %v373
    %v935 = vunpack.c.l.b16 %v374
    %v936 = vunpack.c.h.b16 %v374
    %v937 = vunpack.c.l.b16 %v375
    %v938 = vunpack.c.h.b16 %v375
    %v939 = vunpack.c.l.b16 %v376
    %v940 = vunpack.c.h.b16 %v376
    %v941 = vunpack.c.l.b16 %v377
    %v942 = vunpack.c.h.b16 %v377
    %v943 = vunpack.c.l.b16 %v378
    %v944 = vunpack.c.h.b16 %v378
    %v945 = vunpack.c.l.b16 %v379
    %v946 = vunpack.c.h.b16 %v379
    %v947 = vunpack.c.l.b16 %v380
    %v948 = vunpack.c.h.b16 %v380
    %v949 = vunpack.c.l.b16 %v381
    %v950 = vunpack.c.h.b16 %v381
    %v951 = vunpack.c.l.b16 %v382
    %v952 = vunpack.c.h.b16 %v382
    %v953 = vunpack.c.l.b16 %v383
    %v954 = vunpack.c.h.b16 %v383
    %v955 = vunpack.c.l.b16 %v384
    %v956 = vunpack.c.h.b16 %v384
    %v957 = vunpack.c.l.b16 %v385
    %v958 = vunpack.c.h.b16 %v385
    %v959 = vunpack.c.l.b16 %v386
    %v960 = vunpack.c.h.b16 %v386
    %v961 = vunpack.c.l.b16 %v387
    %v962 = vunpack.c.h.b16 %v387
    %v963 = vunpack.c.l.b16 %v388
    %v964 = vunpack.c.h.b16 %v388
    %v965 = vunpack.c.l.b16 %v389
    %v966 = vunpack.c.h.b16 %v389
    %v967 = vunpack.c.l.b16 %v390
    %v968 = vunpack.c.h.b16 %v390
    %v969 = vunpack.c.l.b16 %v391
    %v970 = vunpack.c.h.b16 %v391
    %v971 = vunpack.c.l.b16 %v392
    %v972 = vunpack.c.h.b16 %v392
    %v973 = vunpack.c.l.b16 %v393
    %v974 = vunpack.c.h.b16 %v393
    %v975 = vunpack.c.l.b16 %v394
    %v976 = vunpack.c.h.b16 %v394
    %v977 = vunpack.c.l.b16 %v395
    %v978 = vunpack.c.h.b16 %v395
    %v979 = vunpack.c.l.b16 %v396
    %v980 = vunpack.c.h.b16 %v396
    %v981 = vunpack.c.l.b16 %v397
    %v982 = vunpack.c.h.b16 %v397
    %v983 = vunpack.c.l.b16 %v398
    %v984 = vunpack.c.h.b16 %v398
    %v985 = vunpack.c.l.b16 %v399
    %v986 = vunpack.c.h.b16 %v399
    %v987 = vunpack.c.l.b16 %v400
    %v988 = vunpack.c.h.b16 %v400
    %v989 = vunpack.c.l.b16 %v401
    %v990 = vunpack.c.h.b16 %v401
    %v991 = vunpack.c.l.b16 %v402
    %v992 = vunpack.c.h.b16 %v402
    %v993 = vunpack.c.l.b16 %v403
    %v994 = vunpack.c.h.b16 %v403
    %v995 = vunpack.c.l.b16 %v404
    %v996 = vunpack.c.h.b16 %v404
    %v997 = vunpack.c.l.b16 %v405
    %v998 = vunpack.c.h.b16 %v405
    %v999 = vunpack.c.l.b16 %v406
    %v1000 = vunpack.c.h.b16 %v406
    %v1001 = vunpack.c.l.b16 %v407
    %v1002 = vunpack.c.h.b16 %v407
    %v1003 = vunpack.c.l.b16 %v408
    %v1004 = vunpack.c.h.b16 %v408
    %v1005 = vunpack.c.l.b16 %v409
    %v1006 = vunpack.c.h.b16 %v409
    %v1007 = vunpack.c.l.b16 %v410
    %v1008 = vunpack.c.h.b16 %v410
    %v1009 = vunpack.c.l.b16 %v411
    %v1010 = vunpack.c.h.b16 %v411
    %v1011 = vunpack.c.l.b16 %v412
    %v1012 = vunpack.c.h.b16 %v412
    %v1013 = vunpack.c.l.b16 %v413
    %v1014 = vunpack.c.h.b16 %v413
    %v1015 = vunpack.c.l.b16 %v414
    %v1016 = vunpack.c.h.b16 %v414
    %v1017 = vunpack.c.l.b16 %v415
    %v1018 = vunpack.c.h.b16 %v415
    %v1019 = vunpack.c.l.b16 %v416
    %v1020 = vunpack.c.h.b16 %v416
    %v1021 = vunpack.c.l.b16 %v417
    %v1022 = vunpack.c.h.b16 %v417
    %v1023 = vunpack.c.l.b16 %v418
    %v1024 = vunpack.c.h.b16 %v418
    %v1025 = vunpack.c.l.b16 %v419
    %v1026 = vunpack.c.h.b16 %v419
    %v1027 = vunpack.c.l.b16 %v420
    %v1028 = vunpack.c.h.b16 %v420
    %v1029 = vunpack.c.l.b16 %v421
    %v1030 = vunpack.c.h.b16 %v421
    %v1031 = vunpack.c.l.b16 %v422
    %v1032 = vunpack.c.h.b16 %v422
    %v1033 = vunpack.c.l.b16 %v423
    %v1034 = vunpack.c.h.b16 %v423
    %v1035 = vunpack.c.l.b16 %v424
    %v1036 = vunpack.c.h.b16 %v424
    %v1037 = vunpack.c.l.b16 %v425
    %v1038 = vunpack.c.h.b16 %v425
    %v1039 = vunpack.c.l.b16 %v426
    %v1040 = vunpack.c.h.b16 %v426
    %v1041 = vunpack.c.l.b16 %v427
    %v1042 = vunpack.c.h.b16 %v427
    %v1043 = vunpack.c.l.b16 %v428
    %v1044 = vunpack.c.h.b16 %v428
    %v1045 = vunpack.c.l.b16 %v429
    %v1046 = vunpack.c.h.b16 %v429
    %v1047 = vunpack.c.l.b16 %v430
    %v1048 = vunpack.c.h.b16 %v430
    %v1049 = vunpack.c.l.b16 %v431
    %v1050 = vunpack.c.h.b16 %v431
    %v1051 = vunpack.c.l.b16 %v432
    %v1052 = vunpack.c.h.b16 %v432
    %v1053 = vunpack.c.l.b16 %v433
    %v1054 = vunpack.c.h.b16 %v433
    %v1055 = vunpack.c.l.b16 %v434
    %v1056 = vunpack.c.h.b16 %v434
    %v1057 = vunpack.c.l.b16 %v435
    %v1058 = vunpack.c.h.b16 %v435
    %v1059 = vunpack.c.l.b16 %v436
    %v1060 = vunpack.c.h.b16 %v436
    %v1061 = vunpack.c.l.b16 %v437
    %v1062 = vunpack.c.h.b16 %v437
    %v1063 = vunpack.c.l.b16 %v438
    %v1064 = vunpack.c.h.b16 %v438
    %v1065 = vunpack.c.l.b16 %v439
    %v1066 = vunpack.c.h.b16 %v439
    %v1067 = vunpack.c.l.b16 %v440
    %v1068 = vunpack.c.h.b16 %v440
    %v1069 = vunpack.c.l.b16 %v441
    %v1070 = vunpack.c.h.b16 %v441
    %v1071 = vunpack.c.l.b16 %v442
    %v1072 = vunpack.c.h.b16 %v442
    %v1073 = vunpack.c.l.b16 %v443
    %v1074 = vunpack.c.h.b16 %v443
    %v1075 = vunpack.c.l.b16 %v444
    %v1076 = vunpack.c.h.b16 %v444
    %v1077 = vunpack.c.l.b16 %v445
    %v1078 = vunpack.c.h.b16 %v445
    %v1079 = vunpack.c.l.b16 %v446
    %v1080 = vunpack.c.h.b16 %v446
    %v1081 = vunpack.c.l.b16 %v447
    %v1082 = vunpack.c.h.b16 %v447
    %v1083 = vunpack.c.l.b16 %v448
    %v1084 = vunpack.c.h.b16 %v448
    %v1085 = vunpack.c.l.b16 %v449
    %v1086 = vunpack.c.h.b16 %v449
    %v1087 = vunpack.c.l.b16 %v450
    %v1088 = vunpack.c.h.b16 %v450
    %v1089 = vunpack.c.l.b16 %v451
    %v1090 = vunpack.c.h.b16 %v451
    %v1091 = vunpack.c.l.b16 %v452
    %v1092 = vunpack.c.h.b16 %v452
    %v1093 = vunpack.c.l.b16 %v453
    %v1094 = vunpack.c.h.b16 %v453
    %v1095 = vunpack.c.l.b16 %v454
    %v1096 = vunpack.c.h.b16 %v454
    %v1097 = vunpack.c.l.b16 %v455
    %v1098 = vunpack.c.h.b16 %v455
    %v1099 = vunpack.c.l.b16 %v456
    %v1100 = vunpack.c.h.b16 %v456
    %v1101 = vunpack.c.l.b16 %v457
    %v1102 = vunpack.c.h.b16 %v457
    %v1103 = vunpack.c.l.b16 %v458
    %v1104 = vunpack.c.h.b16 %v458
    %v1105 = vunpack.c.l.b16 %v459
    %v1106 = vunpack.c.h.b16 %v459
    %v1107 = vunpack.c.l.b16 %v460
    %v1108 = vunpack.c.h.b16 %v460
    %v1109 = vunpack.c.l.b16 %v461
    %v1110 = vunpack.c.h.b16 %v461
    %v1111 = vunpack.c.l.b16 %v462
    %v1112 = vunpack.c.h.b16 %v462
    %v1113 = vunpack.c.l.b16 %v463
    %v1114 = vunpack.c.h.b16 %v463
    %v1115 = vunpack.c.l.b16 %v464
    %v1116 = vunpack.c.h.b16 %v464
    %v1117 = vunpack.c.l.b16 %v465
    %v1118 = vunpack.c.h.b16 %v465
    %v1119 = vunpack.c.l.b16 %v466
    %v1120 = vunpack.c.h.b16 %v466
    %v1121 = vunpack.c.l.b16 %v467
    %v1122 = vunpack.c.h.b16 %v467
    %v1123 = vunpack.c.l.b16 %v468
    %v1124 = vunpack.c.h.b16 %v468
    %v1125 = vunpack.c.l.b16 %v469
    %v1126 = vunpack.c.h.b16 %v469
    %v1127 = vunpack.c.l.b16 %v470
    %v1128 = vunpack.c.h.b16 %v470
    %v1129 = vunpack.c.l.b16 %v471
    %v1130 = vunpack.c.h.b16 %v471
    %v1131 = vunpack.c.l.b16 %v472
    %v1132 = vunpack.c.h.b16 %v472
    %v1133 = vunpack.c.l.b16 %v473
    %v1134 = vunpack.c.h.b16 %v473
    %v1135 = vunpack.c.l.b16 %v474
    %v1136 = vunpack.c.h.b16 %v474
    %v1137 = vunpack.c.l.b16 %v475
    %v1138 = vunpack.c.h.b16 %v475
    %v1139 = vunpack.c.l.b16 %v476
    %v1140 = vunpack.c.h.b16 %v476
    %v1141 = vunpack.c.l.b16 %v477
    %v1142 = vunpack.c.h.b16 %v477
    %v1143 = vunpack.c.l.b16 %v478
    %v1144 = vunpack.c.h.b16 %v478
    %v1145 = vunpack.c.l.b16 %v479
    %v1146 = vunpack.c.h.b16 %v479
    %v1147 = vunpack.c.l.b16 %v480
    %v1148 = vunpack.c.h.b16 %v480
    %v1149 = vunpack.c.l.b16 %v481
    %v1150 = vunpack.c.h.b16 %v481
    %v1151 = vunpack.c.l.b16 %v482
    %v1152 = vunpack.c.h.b16 %v482
    %v1153 = vunpack.c.l.b16 %v483
    %v1154 = vunpack.c.h.b16 %v483
    %v1155 = vunpack.c.l.b16 %v484
    %v1156 = vunpack.c.h.b16 %v484
    %v1157 = vunpack.c.l.b16 %v485
    %v1158 = vunpack.c.h.b16 %v485
    %v1159 = vunpack.c.l.b16 %v486
    %v1160 = vunpack.c.h.b16 %v486
    %v1161 = vunpack.c.l.b16 %v487
    %v1162 = vunpack.c.h.b16 %v487
    %v1163 = vunpack.c.l.b16 %v488
    %v1164 = vunpack.c.h.b16 %v488
    %v1165 = vunpack.c.l.b16 %v489
    %v1166 = vunpack.c.h.b16 %v489
    %v1167 = vunpack.c.l.b16 %v490
    %v1168 = vunpack.c.h.b16 %v490
    %v1169 = vunpack.c.l.b16 %v491
    %v1170 = vunpack.c.h.b16 %v491
    %v1171 = vunpack.c.l.b16 %v492
    %v1172 = vunpack.c.h.b16 %v492
    %v1173 = vunpack.c.l.b16 %v493
    %v1174 = vunpack.c.h.b16 %v493
    %v1175 = vunpack.c.l.b16 %v494
    %v1176 = vunpack.c.h.b16 %v494
    %v1177 = vunpack.c.l.b16 %v495
    %v1178 = vunpack.c.h.b16 %v495
    %v1179 = vunpack.c.l.b16 %v496
    %v1180 = vunpack.c.h.b16 %v496
    %v1181 = vunpack.c.l.b16 %v497
    %v1182 = vunpack.c.h.b16 %v497
    %v1183 = vunpack.c.l.b16 %v498
    %v1184 = vunpack.c.h.b16 %v498
    %v1185 = vunpack.c.l.b16 %v499
    %v1186 = vunpack.c.h.b16 %v499
    %v1187 = vunpack.c.l.b16 %v500
    %v1188 = vunpack.c.h.b16 %v500
    %v1189 = vunpack.c.l.b16 %v501
    %v1190 = vunpack.c.h.b16 %v501
    %v1191 = vunpack.c.l.b16 %v502
    %v1192 = vunpack.c.h.b16 %v502
    %v1193 = vunpack.c.l.b16 %v503
    %v1194 = vunpack.c.h.b16 %v503
    %v1195 = vunpack.c.l.b16 %v504
    %v1196 = vunpack.c.h.b16 %v504
    %v1197 = vunpack.c.l.b16 %v505
    %v1198 = vunpack.c.h.b16 %v505
    %v1199 = vunpack.c.l.b16 %v506
    %v1200 = vunpack.c.h.b16 %v506
    %v1201 = vunpack.c.l.b16 %v507
    %v1202 = vunpack.c.h.b16 %v507
    %v1203 = vunpack.c.l.b16 %v508
    %v1204 = vunpack.c.h.b16 %v508
    %v1205 = vunpack.c.l.b16 %v509
    %v1206 = vunpack.c.h.b16 %v509
    %v1207 = vunpack.c.l.b16 %v510
    %v1208 = vunpack.c.h.b16 %v510
    %v1209 = vunpack.c.l.b16 %v511
    %v1210 = vunpack.c.h.b16 %v511
    %v1211 = vunpack.c.l.b16 %v512
    %v1212 = vunpack.c.h.b16 %v512
    %v1213 = vunpack.c.l.b16 %v513
    %v1214 = vunpack.c.h.b16 %v513
    %v1215 = vunpack.c.l.b16 %v514
    %v1216 = vunpack.c.h.b16 %v514
    %v1217 = vunpack.c.l.b16 %v515
    %v1218 = vunpack.c.h.b16 %v515
    %v1219 = vunpack.c.l.b16 %v516
    %v1220 = vunpack.c.h.b16 %v516
    %v1221 = vunpack.c.l.b16 %v517
    %v1222 = vunpack.c.h.b16 %v517
    %v1223 = vunpack.c.l.b16 %v518
    %v1224 = vunpack.c.h.b16 %v518
    %v1225 = vunpack.c.l.b16 %v519
    %v1226 = vunpack.c.h.b16 %v519
    %v1227 = vunpack.c.l.b16 %v520
    %v1228 = vunpack.c.h.b16 %v520
    %v1229 = vunpack.c.l.b16 %v521
    %v1230 = vunpack.c.h.b16 %v521
    %v1231 = vunpack.c.l.b16 %v522
    %v1232 = vunpack.c.h.b16 %v522
    %v1233 = vunpack.c.l.b16 %v523
    %v1234 = vunpack.c.h.b16 %v523
    %v1235 = vunpack.c.l.b16 %v524
    %v1236 = vunpack.c.h.b16 %v524
    %v1237 = vunpack.c.l.b16 %v525
    %v1238 = vunpack.c.h.b16 %v525
    %v1239 = vunpack.c.l.b16 %v526
    %v1240 = vunpack.c.h.b16 %v526
    %v1241 = vunpack.c.l.b16 %v527
    %v1242 = vunpack.c.h.b16 %v527
    %v1243 = vunpack.c.l.b16 %v528
    %v1244 = vunpack.c.h.b16 %v528
    %v1245 = vunpack.c.l.b16 %v529
    %v1246 = vunpack.c.h.b16 %v529
    %v1247 = vunpack.c.l.b16 %v530
    %v1248 = vunpack.c.h.b16 %v530
    %v1249 = vunpack.c.l.b16 %v531
    %v1250 = vunpack.c.h.b16 %v531
    %v1251 = vunpack.c.l.b16 %v532
    %v1252 = vunpack.c.h.b16 %v532
    %v1253 = vunpack.c.l.b16 %v533
    %v1254 = vunpack.c.h.b16 %v533
    %v1255 = vunpack.c.l.b16 %v534
    %v1256 = vunpack.c.h.b16 %v534
    %v1257 = vunpack.c.l.b16 %v535
    %v1258 = vunpack.c.h.b16 %v535
    %v1259 = vunpack.c.l.b16 %v536
    %v1260 = vunpack.c.h.b16 %v536
    %v1261 = vunpack.c.l.b16 %v537
    %v1262 = vunpack.c.h.b16 %v537
    %v1263 = vunpack.c.l.b16 %v538
    %v1264 = vunpack.c.h.b16 %v538
    %v1265 = vunpack.c.l.b16 %v539
    %v1266 = vunpack.c.h.b16 %v539
    %v1267 = vunpack.c.l.b16 %v540
    %v1268 = vunpack.c.h.b16 %v540
    %v1269 = vunpack.c.l.b16 %v541
    %v1270 = vunpack.c.h.b16 %v541
    %v1271 = vunpack.c.l.b16 %v542
    %v1272 = vunpack.c.h.b16 %v542
    %v1273 = vunpack.c.l.b16 %v543
    %v1274 = vunpack.c.h.b16 %v543
    %v1275 = vunpack.c.l.b16 %v544
    %v1276 = vunpack.c.h.b16 %v544
    %v1277 = vunpack.c.l.b16 %v545
    %v1278 = vunpack.c.h.b16 %v545
    %v1279 = vunpack.c.l.b16 %v546
    %v1280 = vunpack.c.h.b16 %v546
    %v1281 = vunpack.c.l.b16 %v547
    %v1282 = vunpack.c.h.b16 %v547
    %v1283 = vunpack.c.l.b16 %v548
    %v1284 = vunpack.c.h.b16 %v548
    %v1285 = vunpack.c.l.b16 %v549
    %v1286 = vunpack.c.h.b16 %v549
    %v1287 = vunpack.c.l.b16 %v550
    %v1288 = vunpack.c.h.b16 %v550
    %v1289 = vunpack.c.l.b16 %v551
    %v1290 = vunpack.c.h.b16 %v551
    %v1291 = vunpack.c.l.b16 %v552
    %v1292 = vunpack.c.h.b16 %v552
    %v1293 = vunpack.c.l.b16 %v553
    %v1294 = vunpack.c.h.b16 %v553
    %v1295 = vunpack.c.l.b16 %v554
    %v1296 = vunpack.c.h.b16 %v554
    %v1297 = vunpack.c.l.b16 %v555
    %v1298 = vunpack.c.h.b16 %v555
    %v1299 = vunpack.c.l.b16 %v556
    %v1300 = vunpack.c.h.b16 %v556
    %v1301 = vunpack.c.l.b16 %v557
    %v1302 = vunpack.c.h.b16 %v557
    %v1303 = vunpack.c.l.b16 %v558
    %v1304 = vunpack.c.h.b16 %v558
    %v1305 = vunpack.c.l.b16 %v559
    %v1306 = vunpack.c.h.b16 %v559
    %v1307 = vunpack.c.l.b16 %v560
    %v1308 = vunpack.c.h.b16 %v560
    %v1309 = vunpack.c.l.b16 %v561
    %v1310 = vunpack.c.h.b16 %v561
    %v1311 = vunpack.c.l.b16 %v562
    %v1312 = vunpack.c.h.b16 %v562
    %v1313 = vunpack.c.l.b16 %v563
    %v1314 = vunpack.c.h.b16 %v563
    %v1315 = vunpack.c.l.b16 %v564
    %v1316 = vunpack.c.h.b16 %v564
    %v1317 = vunpack.c.l.b16 %v565
    %v1318 = vunpack.c.h.b16 %v565
    %v1319 = vunpack.c.l.b16 %v566
    %v1320 = vunpack.c.h.b16 %v566
    %v1321 = vunpack.c.l.b16 %v567
    %v1322 = vunpack.c.h.b16 %v567
    %v1323 = vunpack.c.l.b16 %v568
    %v1324 = vunpack.c.h.b16 %v568
    %v1325 = vunpack.c.l.b16 %v569
    %v1326 = vunpack.c.h.b16 %v569
    %v1327 = vunpack.c.l.b16 %v570
    %v1328 = vunpack.c.h.b16 %v570
    %v1329 = vunpack.c.l.b16 %v571
    %v1330 = vunpack.c.h.b16 %v571
    %v1331 = vunpack.c.l.b16 %v572
    %v1332 = vunpack.c.h.b16 %v572
    %v1333 = vunpack.c.l.b16 %v573
    %v1334 = vunpack.c.h.b16 %v573
    %v1335 = vunpack.c.l.b16 %v574
    %v1336 = vunpack.c.h.b16 %v574
    %v1337 = vunpack.c.l.b16 %v575
    %v1338 = vunpack.c.h.b16 %v575
    %v1339 = vunpack.c.l.b16 %v576
    %v1340 = vunpack.c.h.b16 %v576
    %v1341 = vunpack.c.l.b16 %v577
    %v1342 = vunpack.c.h.b16 %v577
    %v1343 = vunpack.c.l.b16 %v578
    %v1344 = vunpack.c.h.b16 %v578
    %v1345 = vunpack.c.l.b16 %v579
    %v1346 = vunpack.c.h.b16 %v579
    %v1347 = vunpack.c.l.b16 %v580
    %v1348 = vunpack.c.h.b16 %v580
    %v1349 = vunpack.c.l.b16 %v581
    %v1350 = vunpack.c.h.b16 %v581
    %v1351 = vunpack.c.l.b16 %v582
    %v1352 = vunpack.c.h.b16 %v582
    %v1353 = vunpack.c.l.b16 %v583
    %v1354 = vunpack.c.h.b16 %v583
    %v1355 = vunpack.c.l.b16 %v584
    %v1356 = vunpack.c.h.b16 %v584
    %v1357 = vunpack.c.l.b16 %v585
    %v1358 = vunpack.c.h.b16 %v585
    %v1359 = vunpack.c.l.b16 %v586
    %v1360 = vunpack.c.h.b16 %v586
    %v1361 = vunpack.c.l.b16 %v587
    %v1362 = vunpack.c.h.b16 %v587
    %v1363 = vunpack.c.l.b16 %v588
    %v1364 = vunpack.c.h.b16 %v588
    %v1365 = vunpack.c.l.b16 %v589
    %v1366 = vunpack.c.h.b16 %v589
    %v1367 = vunpack.c.l.b16 %v590
    %v1368 = vunpack.c.h.b16 %v590
    %v1369 = vunpack.c.l.b16 %v591
    %v1370 = vunpack.c.h.b16 %v591
    %v1371 = vunpack.c.l.b16 %v592
    %v1372 = vunpack.c.h.b16 %v592
    %v1373 = vunpack.c.l.b16 %v593
    %v1374 = vunpack.c.h.b16 %v593
    %v1375 = vunpack.c.l.b16 %v594
    %v1376 = vunpack.c.h.b16 %v594
    %v1377 = vunpack.c.l.b16 %v595
    %v1378 = vunpack.c.h.b16 %v595
    %v1379 = vunpack.c.l.b16 %v596
    %v1380 = vunpack.c.h.b16 %v596
    %v1381 = vunpack.c.l.b16 %v597
    %v1382 = vunpack.c.h.b16 %v597
    %v1383 = vunpack.c.l.b16 %v598
    %v1384 = vunpack.c.h.b16 %v598
    %v1385 = vunpack.c.l.b16 %v599
    %v1386 = vunpack.c.h.b16 %v599
    %v1387 = vunpack.c.l.b16 %v600
    %v1388 = vunpack.c.h.b16 %v600
    %v1389 = vunpack.c.l.b16 %v601
    %v1390 = vunpack.c.h.b16 %v601
    %v1391 = vunpack.c.l.b16 %v602
    %v1392 = vunpack.c.h.b16 %v602
    %v1393 = vunpack.c.l.b16 %v603
    %v1394 = vunpack.c.h.b16 %v603
    %v1395 = vunpack.c.l.b16 %v604
    %v1396 = vunpack.c.h.b16 %v604
    %v1397 = vunpack.c.l.b16 %v605
    %v1398 = vunpack.c.h.b16 %v605
    %v1399 = vunpack.c.l.b16 %v606
    %v1400 = vunpack.c.h.b16 %v606
    %v1401 = vunpack.c.l.b16 %v607
    %v1402 = vunpack.c.h.b16 %v607
    %v1403 = vunpack.c.l.b16 %v608
    %v1404 = vunpack.c.h.b16 %v608
    %v1405 = vunpack.c.l.b16 %v609
    %v1406 = vunpack.c.h.b16 %v609
    %v1407 = vunpack.c.l.b16 %v610
    %v1408 = vunpack.c.h.b16 %v610
    %v1409 = vunpack.c.l.b16 %v611
    %v1410 = vunpack.c.h.b16 %v611
    %v1411 = vunpack.c.l.b16 %v612
    %v1412 = vunpack.c.h.b16 %v612
    %v1413 = vunpack.c.l.b16 %v613
    %v1414 = vunpack.c.h.b16 %v613
    %v1415 = vunpack.c.l.b16 %v614
    %v1416 = vunpack.c.h.b16 %v614
    %v1417 = vunpack.c.l.b16 %v615
    %v1418 = vunpack.c.h.b16 %v615
    %v1419 = vunpack.c.l.b16 %v616
    %v1420 = vunpack.c.h.b16 %v616
    %v1421 = vunpack.c.l.b16 %v617
    %v1422 = vunpack.c.h.b16 %v617
    %v1423 = vunpack.c.l.b16 %v618
    %v1424 = vunpack.c.h.b16 %v618
    %v1425 = vunpack.c.l.b16 %v619
    %v1426 = vunpack.c.h.b16 %v619
    %v1427 = vunpack.c.l.b16 %v620
    %v1428 = vunpack.c.h.b16 %v620
    %v1429 = vunpack.c.l.b16 %v621
    %v1430 = vunpack.c.h.b16 %v621
    %v1431 = vunpack.c.l.b16 %v622
    %v1432 = vunpack.c.h.b16 %v622
    %v1433 = vpack.c.b16 %v929, %v921
    %v1434 = vpack.c.b16 %v930, %v922
    %v1435 = vpack.c.b16 %v931, %v923
    %v1436 = vpack.c.b16 %v932, %v924
    %v1437 = vpack.c.b16 %v933, %v925
    %v1438 = vpack.c.b16 %v934, %v926
    %v1439 = vpack.c.b16 %v935, %v927
    %v1440 = vpack.c.b16 %v936, %v928
    %v1441 = vpack.c.b16 %v945, %v937
    %v1442 = vpack.c.b16 %v946, %v938
    %v1443 = vpack.c.b16 %v947, %v939
    %v1444 = vpack.c.b16 %v948, %v940
    %v1445 = vpack.c.b16 %v949, %v941
    %v1446 = vpack.c.b16 %v950, %v942
    %v1447 = vpack.c.b16 %v951, %v943
    %v1448 = vpack.c.b16 %v952, %v944
    %v1449 = vpack.c.b16 %v961, %v953
    %v1450 = vpack.c.b16 %v962, %v954
    %v1451 = vpack.c.b16 %v963, %v955
    %v1452 = vpack.c.b16 %v964, %v956
    %v1453 = vpack.c.b16 %v965, %v957
    %v1454 = vpack.c.b16 %v966, %v958
    %v1455 = vpack.c.b16 %v967, %v959
    %v1456 = vpack.c.b16 %v968, %v960
    %v1457 = vpack.c.b16 %v977, %v969
    %v1458 = vpack.c.b16 %v978, %v970
    %v1459 = vpack.c.b16 %v979, %v971
    %v1460 = vpack.c.b16 %v980, %v972
    %v1461 = vpack.c.b16 %v981, %v973
    %v1462 = vpack.c.b16 %v982, %v974
    %v1463 = vpack.c.b16 %v983, %v975
    %v1464 = vpack.c.b16 %v984, %v976
    %v1465 = vpack.c.b16 %v993, %v985
    %v1466 = vpack.c.b16 %v994, %v986
    %v1467 = vpack.c.b16 %v995, %v987
    %v1468 = vpack.c.b16 %v996, %v988
    %v1469 = vpack.c.b16 %v997, %v989
    %v1470 = vpack.c.b16 %v998, %v990
    %v1471 = vpack.c.b16 %v999, %v991
    %v1472 = vpack.c.b16 %v1000, %v992
    %v1473 = vpack.c.b16 %v1009, %v1001
    %v1474 = vpack.c.b16 %v1010, %v1002
    %v1475 = vpack.c.b16 %v1011, %v1003
    %v1476 = vpack.c.b16 %v1012, %v1004
    %v1477 = vpack.c.b16 %v1013, %v1005
    %v1478 = vpack.c.b16 %v1014, %v1006
    %v1479 = vpack.c.b16 %v1015, %v1007
    %v1480 = vpack.c.b16 %v1016, %v1008
    %v1481 = vpack.c.b16 %v1025, %v1017
    %v1482 = vpack.c.b16 %v1026, %v1018
    %v1483 = vpack.c.b16 %v1027, %v1019
    %v1484 = vpack.c.b16 %v1028, %v1020
    %v1485 = vpack.c.b16 %v1029, %v1021
    %v1486 = vpack.c.b16 %v1030, %v1022
    %v1487 = vpack.c.b16 %v1031, %v1023
    %v1488 = vpack.c.b16 %v1032, %v1024
    %v1489 = vpack.c.b16 %v1041, %v1033
    %v1490 = vpack.c.b16 %v1042, %v1034
    %v1491 = vpack.c.b16 %v1043, %v1035
    %v1492 = vpack.c.b16 %v1044, %v1036
    %v1493 = vpack.c.b16 %v1045, %v1037
    %v1494 = vpack.c.b16 %v1046, %v1038
    %v1495 = vpack.c.b16 %v1047, %v1039
    %v1496 = vpack.c.b16 %v1048, %v1040
    %v1497 = vpack.c.b16 %v1057, %v1049
    %v1498 = vpack.c.b16 %v1058, %v1050
    %v1499 = vpack.c.b16 %v1059, %v1051
    %v1500 = vpack.c.b16 %v1060, %v1052
    %v1501 = vpack.c.b16 %v1061, %v1053
    %v1502 = vpack.c.b16 %v1062, %v1054
    %v1503 = vpack.c.b16 %v1063, %v1055
    %v1504 = vpack.c.b16 %v1064, %v1056
    %v1505 = vpack.c.b16 %v1073, %v1065
    %v1506 = vpack.c.b16 %v1074, %v1066
    %v1507 = vpack.c.b16 %v1075, %v1067
    %v1508 = vpack.c.b16 %v1076, %v1068
    %v1509 = vpack.c.b16 %v1077, %v1069
    %v1510 = vpack.c.b16 %v1078, %v1070
    %v1511 = vpack.c.b16 %v1079, %v1071
    %v1512 = vpack.c.b16 %v1080, %v1072
    %v1513 = vpack.c.b16 %v1089, %v1081
    %v1514 = vpack.c.b16 %v1090, %v1082
    %v1515 = vpack.c.b16 %v1091, %v1083
    %v1516 = vpack.c.b16 %v1092, %v1084
    %v1517 = vpack.c.b16 %v1093, %v1085
    %v1518 = vpack.c.b16 %v1094, %v1086
    %v1519 = vpack.c.b16 %v1095, %v1087
    %v1520 = vpack.c.b16 %v1096, %v1088
    %v1521 = vpack.c.b16 %v1105, %v1097
    %v1522 = vpack.c.b16 %v1106, %v1098
    %v1523 = vpack.c.b16 %v1107, %v1099
    %v1524 = vpack.c.b16 %v1108, %v1100
    %v1525 = vpack.c.b16 %v1109, %v1101
    %v1526 = vpack.c.b16 %v1110, %v1102
    %v1527 = vpack.c.b16 %v1111, %v1103
    %v1528 = vpack.c.b16 %v1112, %v1104
    %v1529 = vpack.c.b16 %v1121, %v1113
    %v1530 = vpack.c.b16 %v1122, %v1114
    %v1531 = vpack.c.b16 %v1123, %v1115
    %v1532 = vpack.c.b16 %v1124, %v1116
    %v1533 = vpack.c.b16 %v1125, %v1117
    %v1534 = vpack.c.b16 %v1126, %v1118
    %v1535 = vpack.c.b16 %v1127, %v1119
    %v1536 = vpack.c.b16 %v1128, %v1120
    %v1537 = vpack.c.b16 %v1137, %v1129
    %v1538 = vpack.c.b16 %v1138, %v1130
    %v1539 = vpack.c.b16 %v1139, %v1131
    %v1540 = vpack.c.b16 %v1140, %v1132
    %v1541 = vpack.c.b16 %v1141, %v1133
    %v1542 = vpack.c.b16 %v1142, %v1134
    %v1543 = vpack.c.b16 %v1143, %v1135
    %v1544 = vpack.c.b16 %v1144, %v1136
    %v1545 = vpack.c.b16 %v1153, %v1145
    %v1546 = vpack.c.b16 %v1154, %v1146
    %v1547 = vpack.c.b16 %v1155, %v1147
    %v1548 = vpack.c.b16 %v1156, %v1148
    %v1549 = vpack.c.b16 %v1157, %v1149
    %v1550 = vpack.c.b16 %v1158, %v1150
    %v1551 = vpack.c.b16 %v1159, %v1151
    %v1552 = vpack.c.b16 %v1160, %v1152
    %v1553 = vpack.c.b16 %v1169, %v1161
    %v1554 = vpack.c.b16 %v1170, %v1162
    %v1555 = vpack.c.b16 %v1171, %v1163
    %v1556 = vpack.c.b16 %v1172, %v1164
    %v1557 = vpack.c.b16 %v1173, %v1165
    %v1558 = vpack.c.b16 %v1174, %v1166
    %v1559 = vpack.c.b16 %v1175, %v1167
    %v1560 = vpack.c.b16 %v1176, %v1168
    %v1561 = vpack.c.b16 %v1185, %v1177
    %v1562 = vpack.c.b16 %v1186, %v1178
    %v1563 = vpack.c.b16 %v1187, %v1179
    %v1564 = vpack.c.b16 %v1188, %v1180
    %v1565 = vpack.c.b16 %v1189, %v1181
    %v1566 = vpack.c.b16 %v1190, %v1182
    %v1567 = vpack.c.b16 %v1191, %v1183
    %v1568 = vpack.c.b16 %v1192, %v1184
    %v1569 = vpack.c.b16 %v1201, %v1193
    %v1570 = vpack.c.b16 %v1202, %v1194
    %v1571 = vpack.c.b16 %v1203, %v1195
    %v1572 = vpack.c.b16 %v1204, %v1196
    %v1573 = vpack.c.b16 %v1205, %v1197
    %v1574 = vpack.c.b16 %v1206, %v1198
    %v1575 = vpack.c.b16 %v1207, %v1199
    %v1576 = vpack.c.b16 %v1208, %v1200
    %v1577 = vpack.c.b16 %v1217, %v1209
    %v1578 = vpack.c.b16 %v1218, %v1210
    %v1579 = vpack.c.b16 %v1219, %v1211
    %v1580 = vpack.c.b16 %v1220, %v1212
    %v1581 = vpack.c.b16 %v1221, %v1213
    %v1582 = vpack.c.b16 %v1222, %v1214
    %v1583 = vpack.c.b16 %v1223, %v1215
    %v1584 = vpack.c.b16 %v1224, %v1216
    %v1585 = vpack.c.b16 %v1233, %v1225
    %v1586 = vpack.c.b16 %v1234, %v1226
    %v1587 = vpack.c.b16 %v1235, %v1227
    %v1588 = vpack.c.b16 %v1236, %v1228
    %v1589 = vpack.c.b16 %v1237, %v1229
    %v1590 = vpack.c.b16 %v1238, %v1230
    %v1591 = vpack.c.b16 %v1239, %v1231
    %v1592 = vpack.c.b16 %v1240, %v1232
    %v1593 = vpack.c.b16 %v1249, %v1241
    %v1594 = vpack.c.b16 %v1250, %v1242
    %v1595 = vpack.c.b16 %v1251, %v1243
    %v1596 = vpack.c.b16 %v1252, %v1244
    %v1597 = vpack.c.b16 %v1253, %v1245
    %v1598 = vpack.c.b16 %v1254, %v1246
    %v1599 = vpack.c.b16 %v1255, %v1247
    %v1600 = vpack.c.b16 %v1256, %v1248
    %v1601 = vpack.c.b16 %v1265, %v1257
    %v1602 = vpack.c.b16 %v1266, %v1258
    %v1603 = vpack.c.b16 %v1267, %v1259
    %v1604 = vpack.c.b16 %v1268, %v1260
    %v1605 = vpack.c.b16 %v1269, %v1261
    %v1606 = vpack.c.b16 %v1270, %v1262
    %v1607 = vpack.c.b16 %v1271, %v1263
    %v1608 = vpack.c.b16 %v1272, %v1264
    %v1609 = vpack.c.b16 %v1281, %v1273
    %v1610 = vpack.c.b16 %v1282, %v1274
    %v1611 = vpack.c.b16 %v1283, %v1275
    %v1612 = vpack.c.b16 %v1284, %v1276
    %v1613 = vpack.c.b16 %v1285, %v1277
    %v1614 = vpack.c.b16 %v1286, %v1278
    %v1615 = vpack.c.b16 %v1287, %v1279
    %v1616 = vpack.c.b16 %v1288, %v1280
    %v1617 = vpack.c.b16 %v1297, %v1289
    %v1618 = vpack.c.b16 %v1298, %v1290
    %v1619 = vpack.c.b16 %v1299, %v1291
    %v1620 = vpack.c.b16 %v1300, %v1292
    %v1621 = vpack.c.b16 %v1301, %v1293
    %v1622 = vpack.c.b16 %v1302, %v1294
    %v1623 = vpack.c.b16 %v1303, %v1295
    %v1624 = vpack.c.b16 %v1304, %v1296
    %v1625 = vpack.c.b16 %v1313, %v1305
    %v1626 = vpack.c.b16 %v1314, %v1306
    %v1627 = vpack.c.b16 %v1315, %v1307
    %v1628 = vpack.c.b16 %v1316, %v1308
    %v1629 = vpack.c.b16 %v1317, %v1309
    %v1630 = vpack.c.b16 %v1318, %v1310
    %v1631 = vpack.c.b16 %v1319, %v1311
    %v1632 = vpack.c.b16 %v1320, %v1312
    %v1633 = vpack.c.b16 %v1329, %v1321
    %v1634 = vpack.c.b16 %v1330, %v1322
    %v1635 = vpack.c.b16 %v1331, %v1323
    %v1636 = vpack.c.b16 %v1332, %v1324
    %v1637 = vpack.c.b16 %v1333, %v1325
    %v1638 = vpack.c.b16 %v1334, %v1326
    %v1639 = vpack.c.b16 %v1335, %v1327
    %v1640 = vpack.c.b16 %v1336, %v1328
    %v1641 = vpack.c.b16 %v1345, %v1337
    %v1642 = vpack.c.b16 %v1346, %v1338
    %v1643 = vpack.c.b16 %v1347, %v1339
    %v1644 = vpack.c.b16 %v1348, %v1340
    %v1645 = vpack.c.b16 %v1349, %v1341
    %v1646 = vpack.c.b16 %v1350, %v1342
    %v1647 = vpack.c.b16 %v1351, %v1343
    %v1648 = vpack.c.b16 %v1352, %v1344
    %v1649 = vpack.c.b16 %v1361, %v1353
    %v1650 = vpack.c.b16 %v1362, %v1354
    %v1651 = vpack.c.b16 %v1363, %v1355
    %v1652 = vpack.c.b16 %v1364, %v1356
    %v1653 = vpack.c.b16 %v1365, %v1357
    %v1654 = vpack.c.b16 %v1366, %v1358
    %v1655 = vpack.c.b16 %v1367, %v1359
    %v1656 = vpack.c.b16 %v1368, %v1360
    %v1657 = vpack.c.b16 %v1377, %v1369
    %v1658 = vpack.c.b16 %v1378, %v1370
    %v1659 = vpack.c.b16 %v1379, %v1371
    %v1660 = vpack.c.b16 %v1380, %v1372
    %v1661 = vpack.c.b16 %v1381, %v1373
    %v1662 = vpack.c.b16 %v1382, %v1374
    %v1663 = vpack.c.b16 %v1383, %v1375
    %v1664 = vpack.c.b16 %v1384, %v1376
    %v1665 = vpack.c.b16 %v1393, %v1385
    %v1666 = vpack.c.b16 %v1394, %v1386
    %v1667 = vpack.c.b16 %v1395, %v1387
    %v1668 = vpack.c.b16 %v1396, %v1388
    %v1669 = vpack.c.b16 %v1397, %v1389
    %v1670 = vpack.c.b16 %v1398, %v1390
    %v1671 = vpack.c.b16 %v1399, %v1391
    %v1672 = vpack.c.b16 %v1400, %v1392
    %v1673 = vpack.c.b16 %v1409, %v1401
    %v1674 = vpack.c.b16 %v1410, %v1402
    %v1675 = vpack.c.b16 %v1411, %v1403
    %v1676 = vpack.c.b16 %v1412, %v1404
    %v1677 = vpack.c.b16 %v1413, %v1405
    %v1678 = vpack.c.b16 %v1414, %v1406
    %v1679 = vpack.c.b16 %v1415, %v1407
    %v1680 = vpack.c.b16 %v1416, %v1408
    %v1681 = vpack.c.b16 %v1425, %v1417
    %v1682 = vpack.c.b16 %v1426, %v1418
    %v1683 = vpack.c.b16 %v1427, %v1419
    %v1684 = vpack.c.b16 %v1428, %v1420
    %v1685 = vpack.c.b16 %v1429, %v1421
    %v1686 = vpack.c.b16 %v1430, %v1422
    %v1687 = vpack.c.b16 %v1431, %v1423
    %v1688 = vpack.c.b16 %v1432, %v1424
    %1945 = vmatprep.subr.bf16.mxu0 %v1490
    %1946 = vmatpush1.bf16.msra.mxu0 %v1489
    %1947 = vmatprep.subr.bf16.mxu0 %v1482
    %1948 = vmatpush1.bf16.msra.mxu0 %v1481
    %1949 = vmatprep.subr.bf16.mxu0 %v1474
    %1950 = vmatpush1.bf16.msra.mxu0 %v1473
    %1951 = vmatprep.subr.bf16.mxu0 %v1466
    %1952 = vmatpush1.bf16.msra.mxu0 %v1465
    %1953 = vmatprep.subr.bf16.mxu0 %v1458
    %1954 = vmatpush1.bf16.msra.mxu0 %v1457
    %1955 = vmatprep.subr.bf16.mxu0 %v1450
    %1956 = vmatpush1.bf16.msra.mxu0 %v1449
    %1957 = vmatprep.subr.bf16.mxu0 %v1442
    %1958 = vmatpush1.bf16.msra.mxu0 %v1441
    %1959 = vmatprep.subr.bf16.mxu0 %v1434
    %1960 = vmatpush1.bf16.msra.mxu0 %v1433
    %1961 = vmatprep.subr.bf16.mxu0 %v1554
    %1962 = vmatpush2.bf16.msra.mxu0 %v1553
    %1963 = vmatprep.subr.bf16.mxu0 %v1546
    %1964 = vmatpush2.bf16.msra.mxu0 %v1545
    %1965 = vmatprep.subr.bf16.mxu0 %v1538
    %1966 = vmatpush2.bf16.msra.mxu0 %v1537
    %1967 = vmatprep.subr.bf16.mxu0 %v1530
    %1968 = vmatpush2.bf16.msra.mxu0 %v1529
    %1969 = vmatprep.subr.bf16.mxu0 %v1522
    %1970 = vmatpush2.bf16.msra.mxu0 %v1521
    %1971 = vmatprep.subr.bf16.mxu0 %v1514
    %1972 = vmatpush2.bf16.msra.mxu0 %v1513
    %1973 = vmatprep.subr.bf16.mxu0 %v1506
    %1974 = vmatpush2.bf16.msra.mxu0 %v1505
    %1975 = vmatprep.subr.bf16.mxu0 %v1498
    %1976 = vmatpush2.bf16.msra.mxu0 %v1497
    %1977 = vmatprep.mubr.bf16.mxu0 %v364
    %1978 = vmatmul.mubr.bf16.gmra.mxu0 %v363
    %v1979 = vpop.f32.mrf.mxu0
    %v1980 = vadd.f32 %v628, %v1979
    %v1981 = vpop.f32.mrf.mxu0
    %v1982 = vadd.f32 %v632, %v1981
    %v1983 = vpop.f32.mrf.mxu0
    %v1984 = vpop.f32.mrf.mxu0
    %1985 = vdwg.mxu0
    %1986 = vmatprep.subr.bf16.mxu0 %v1618
    %1987 = vmatpush1.bf16.msra.mxu0 %v1617
    %1988 = vmatprep.subr.bf16.mxu0 %v1610
    %1989 = vmatpush1.bf16.msra.mxu0 %v1609
    %1990 = vmatprep.subr.bf16.mxu0 %v1602
    %1991 = vmatpush1.bf16.msra.mxu0 %v1601
    %1992 = vmatprep.subr.bf16.mxu0 %v1594
    %1993 = vmatpush1.bf16.msra.mxu0 %v1593
    %1994 = vmatprep.subr.bf16.mxu0 %v1586
    %1995 = vmatpush1.bf16.msra.mxu0 %v1585
    %1996 = vmatprep.subr.bf16.mxu0 %v1578
    %1997 = vmatpush1.bf16.msra.mxu0 %v1577
    %1998 = vmatprep.subr.bf16.mxu0 %v1570
    %1999 = vmatpush1.bf16.msra.mxu0 %v1569
    %2000 = vmatprep.subr.bf16.mxu0 %v1562
    %2001 = vmatpush1.bf16.msra.mxu0 %v1561
    %2002 = vmatprep.subr.bf16.mxu0 %v1682
    %2003 = vmatpush2.bf16.msra.mxu0 %v1681
    %2004 = vmatprep.subr.bf16.mxu0 %v1674
    %2005 = vmatpush2.bf16.msra.mxu0 %v1673
    %2006 = vmatprep.subr.bf16.mxu0 %v1666
    %2007 = vmatpush2.bf16.msra.mxu0 %v1665
    %2008 = vmatprep.subr.bf16.mxu0 %v1658
    %2009 = vmatpush2.bf16.msra.mxu0 %v1657
    %2010 = vmatprep.subr.bf16.mxu0 %v1650
    %2011 = vmatpush2.bf16.msra.mxu0 %v1649
    %2012 = vmatprep.subr.bf16.mxu0 %v1642
    %2013 = vmatpush2.bf16.msra.mxu0 %v1641
    %2014 = vmatprep.subr.bf16.mxu0 %v1634
    %2015 = vmatpush2.bf16.msra.mxu0 %v1633
    %2016 = vmatprep.subr.bf16.mxu0 %v1626
    %2017 = vmatpush2.bf16.msra.mxu0 %v1625
    %2018 = vmatprep.mubr.bf16.mxu0 %v366
    %2019 = vmatmul.mubr.bf16.gmra.mxu0 %v365
    %v2020 = vpop.f32.mrf.mxu0
    %v2021 = vadd.f32 %v1980, %v2020
    %v2022 = vpop.f32.mrf.mxu0
    %v2023 = vadd.f32 %v1982, %v2022
    %v2024 = vpop.f32.mrf.mxu0
    %v2025 = vpop.f32.mrf.mxu0
    %2026 = vdwg.mxu0
    %2027 = vmatprep.subr.bf16.mxu0 %v1492
    %2028 = vmatpush1.bf16.msra.mxu0 %v1491
    %2029 = vmatprep.subr.bf16.mxu0 %v1484
    %2030 = vmatpush1.bf16.msra.mxu0 %v1483
    %2031 = vmatprep.subr.bf16.mxu0 %v1476
    %2032 = vmatpush1.bf16.msra.mxu0 %v1475
    %2033 = vmatprep.subr.bf16.mxu0 %v1468
    %2034 = vmatpush1.bf16.msra.mxu0 %v1467
    %2035 = vmatprep.subr.bf16.mxu0 %v1460
    %2036 = vmatpush1.bf16.msra.mxu0 %v1459
    %2037 = vmatprep.subr.bf16.mxu0 %v1452
    %2038 = vmatpush1.bf16.msra.mxu0 %v1451
    %2039 = vmatprep.subr.bf16.mxu0 %v1444
    %2040 = vmatpush1.bf16.msra.mxu0 %v1443
    %2041 = vmatprep.subr.bf16.mxu0 %v1436
    %2042 = vmatpush1.bf16.msra.mxu0 %v1435
    %2043 = vmatprep.subr.bf16.mxu0 %v1556
    %2044 = vmatpush2.bf16.msra.mxu0 %v1555
    %2045 = vmatprep.subr.bf16.mxu0 %v1548
    %2046 = vmatpush2.bf16.msra.mxu0 %v1547
    %2047 = vmatprep.subr.bf16.mxu0 %v1540
    %2048 = vmatpush2.bf16.msra.mxu0 %v1539
    %2049 = vmatprep.subr.bf16.mxu0 %v1532
    %2050 = vmatpush2.bf16.msra.mxu0 %v1531
    %2051 = vmatprep.subr.bf16.mxu0 %v1524
    %2052 = vmatpush2.bf16.msra.mxu0 %v1523
    %2053 = vmatprep.subr.bf16.mxu0 %v1516
    %2054 = vmatpush2.bf16.msra.mxu0 %v1515
    %2055 = vmatprep.subr.bf16.mxu0 %v1508
    %2056 = vmatpush2.bf16.msra.mxu0 %v1507
    %2057 = vmatprep.subr.bf16.mxu0 %v1500
    %2058 = vmatpush2.bf16.msra.mxu0 %v1499
    %2059 = vmatprep.mubr.bf16.mxu0 %v364
    %2060 = vmatmul.mubr.bf16.gmra.mxu0 %v363
    %v2061 = vpop.f32.mrf.mxu0
    %v2062 = vadd.f32 %v636, %v2061
    %v2063 = vpop.f32.mrf.mxu0
    %v2064 = vadd.f32 %v640, %v2063
    %v2065 = vpop.f32.mrf.mxu0
    %v2066 = vpop.f32.mrf.mxu0
    %2067 = vdwg.mxu0
    %2068 = vmatprep.subr.bf16.mxu0 %v1620
    %2069 = vmatpush1.bf16.msra.mxu0 %v1619
    %2070 = vmatprep.subr.bf16.mxu0 %v1612
    %2071 = vmatpush1.bf16.msra.mxu0 %v1611
    %2072 = vmatprep.subr.bf16.mxu0 %v1604
    %2073 = vmatpush1.bf16.msra.mxu0 %v1603
    %2074 = vmatprep.subr.bf16.mxu0 %v1596
    %2075 = vmatpush1.bf16.msra.mxu0 %v1595
    %2076 = vmatprep.subr.bf16.mxu0 %v1588
    %2077 = vmatpush1.bf16.msra.mxu0 %v1587
    %2078 = vmatprep.subr.bf16.mxu0 %v1580
    %2079 = vmatpush1.bf16.msra.mxu0 %v1579
    %2080 = vmatprep.subr.bf16.mxu0 %v1572
    %2081 = vmatpush1.bf16.msra.mxu0 %v1571
    %2082 = vmatprep.subr.bf16.mxu0 %v1564
    %2083 = vmatpush1.bf16.msra.mxu0 %v1563
    %2084 = vmatprep.subr.bf16.mxu0 %v1684
    %2085 = vmatpush2.bf16.msra.mxu0 %v1683
    %2086 = vmatprep.subr.bf16.mxu0 %v1676
    %2087 = vmatpush2.bf16.msra.mxu0 %v1675
    %2088 = vmatprep.subr.bf16.mxu0 %v1668
    %2089 = vmatpush2.bf16.msra.mxu0 %v1667
    %2090 = vmatprep.subr.bf16.mxu0 %v1660
    %2091 = vmatpush2.bf16.msra.mxu0 %v1659
    %2092 = vmatprep.subr.bf16.mxu0 %v1652
    %2093 = vmatpush2.bf16.msra.mxu0 %v1651
    %2094 = vmatprep.subr.bf16.mxu0 %v1644
    %2095 = vmatpush2.bf16.msra.mxu0 %v1643
    %2096 = vmatprep.subr.bf16.mxu0 %v1636
    %2097 = vmatpush2.bf16.msra.mxu0 %v1635
    %2098 = vmatprep.subr.bf16.mxu0 %v1628
    %2099 = vmatpush2.bf16.msra.mxu0 %v1627
    %2100 = vmatprep.mubr.bf16.mxu0 %v366
    %2101 = vmatmul.mubr.bf16.gmra.mxu0 %v365
    %v2102 = vpop.f32.mrf.mxu0
    %v2103 = vadd.f32 %v2062, %v2102
    %v2104 = vpop.f32.mrf.mxu0
    %v2105 = vadd.f32 %v2064, %v2104
    %v2106 = vpop.f32.mrf.mxu0
    %v2107 = vpop.f32.mrf.mxu0
    %2108 = vdwg.mxu0
    %2109 = vmatprep.subr.bf16.mxu0 %v1494
    %2110 = vmatpush1.bf16.msra.mxu0 %v1493
    %2111 = vmatprep.subr.bf16.mxu0 %v1486
    %2112 = vmatpush1.bf16.msra.mxu0 %v1485
    %2113 = vmatprep.subr.bf16.mxu0 %v1478
    %2114 = vmatpush1.bf16.msra.mxu0 %v1477
    %2115 = vmatprep.subr.bf16.mxu0 %v1470
    %2116 = vmatpush1.bf16.msra.mxu0 %v1469
    %2117 = vmatprep.subr.bf16.mxu0 %v1462
    %2118 = vmatpush1.bf16.msra.mxu0 %v1461
    %2119 = vmatprep.subr.bf16.mxu0 %v1454
    %2120 = vmatpush1.bf16.msra.mxu0 %v1453
    %2121 = vmatprep.subr.bf16.mxu0 %v1446
    %2122 = vmatpush1.bf16.msra.mxu0 %v1445
    %2123 = vmatprep.subr.bf16.mxu0 %v1438
    %2124 = vmatpush1.bf16.msra.mxu0 %v1437
    %2125 = vmatprep.subr.bf16.mxu0 %v1558
    %2126 = vmatpush2.bf16.msra.mxu0 %v1557
    %2127 = vmatprep.subr.bf16.mxu0 %v1550
    %2128 = vmatpush2.bf16.msra.mxu0 %v1549
    %2129 = vmatprep.subr.bf16.mxu0 %v1542
    %2130 = vmatpush2.bf16.msra.mxu0 %v1541
    %2131 = vmatprep.subr.bf16.mxu0 %v1534
    %2132 = vmatpush2.bf16.msra.mxu0 %v1533
    %2133 = vmatprep.subr.bf16.mxu0 %v1526
    %2134 = vmatpush2.bf16.msra.mxu0 %v1525
    %2135 = vmatprep.subr.bf16.mxu0 %v1518
    %2136 = vmatpush2.bf16.msra.mxu0 %v1517
    %2137 = vmatprep.subr.bf16.mxu0 %v1510
    %2138 = vmatpush2.bf16.msra.mxu0 %v1509
    %2139 = vmatprep.subr.bf16.mxu0 %v1502
    %2140 = vmatpush2.bf16.msra.mxu0 %v1501
    %2141 = vmatprep.mubr.bf16.mxu0 %v364
    %2142 = vmatmul.mubr.bf16.gmra.mxu0 %v363
    %v2143 = vpop.f32.mrf.mxu0
    %v2144 = vadd.f32 %v644, %v2143
    %v2145 = vpop.f32.mrf.mxu0
    %v2146 = vadd.f32 %v648, %v2145
    %v2147 = vpop.f32.mrf.mxu0
    %v2148 = vpop.f32.mrf.mxu0
    %2149 = vdwg.mxu0
    %2150 = vmatprep.subr.bf16.mxu0 %v1622
    %2151 = vmatpush1.bf16.msra.mxu0 %v1621
    %2152 = vmatprep.subr.bf16.mxu0 %v1614
    %2153 = vmatpush1.bf16.msra.mxu0 %v1613
    %2154 = vmatprep.subr.bf16.mxu0 %v1606
    %2155 = vmatpush1.bf16.msra.mxu0 %v1605
    %2156 = vmatprep.subr.bf16.mxu0 %v1598
    %2157 = vmatpush1.bf16.msra.mxu0 %v1597
    %2158 = vmatprep.subr.bf16.mxu0 %v1590
    %2159 = vmatpush1.bf16.msra.mxu0 %v1589
    %2160 = vmatprep.subr.bf16.mxu0 %v1582
    %2161 = vmatpush1.bf16.msra.mxu0 %v1581
    %2162 = vmatprep.subr.bf16.mxu0 %v1574
    %2163 = vmatpush1.bf16.msra.mxu0 %v1573
    %2164 = vmatprep.subr.bf16.mxu0 %v1566
    %2165 = vmatpush1.bf16.msra.mxu0 %v1565
    %2166 = vmatprep.subr.bf16.mxu0 %v1686
    %2167 = vmatpush2.bf16.msra.mxu0 %v1685
    %2168 = vmatprep.subr.bf16.mxu0 %v1678
    %2169 = vmatpush2.bf16.msra.mxu0 %v1677
    %2170 = vmatprep.subr.bf16.mxu0 %v1670
    %2171 = vmatpush2.bf16.msra.mxu0 %v1669
    %2172 = vmatprep.subr.bf16.mxu0 %v1662
    %2173 = vmatpush2.bf16.msra.mxu0 %v1661
    %2174 = vmatprep.subr.bf16.mxu0 %v1654
    %2175 = vmatpush2.bf16.msra.mxu0 %v1653
    %2176 = vmatprep.subr.bf16.mxu0 %v1646
    %2177 = vmatpush2.bf16.msra.mxu0 %v1645
    %2178 = vmatprep.subr.bf16.mxu0 %v1638
    %2179 = vmatpush2.bf16.msra.mxu0 %v1637
    %2180 = vmatprep.subr.bf16.mxu0 %v1630
    %2181 = vmatpush2.bf16.msra.mxu0 %v1629
    %2182 = vmatprep.mubr.bf16.mxu0 %v366
    %2183 = vmatmul.mubr.bf16.gmra.mxu0 %v365
    %v2184 = vpop.f32.mrf.mxu0
    %v2185 = vadd.f32 %v2144, %v2184
    %v2186 = vpop.f32.mrf.mxu0
    %v2187 = vadd.f32 %v2146, %v2186
    %v2188 = vpop.f32.mrf.mxu0
    %v2189 = vpop.f32.mrf.mxu0
    %2190 = vdwg.mxu0
    %2191 = vmatprep.subr.bf16.mxu0 %v1496
    %2192 = vmatpush1.bf16.msra.mxu0 %v1495
    %2193 = vmatprep.subr.bf16.mxu0 %v1488
    %2194 = vmatpush1.bf16.msra.mxu0 %v1487
    %2195 = vmatprep.subr.bf16.mxu0 %v1480
    %2196 = vmatpush1.bf16.msra.mxu0 %v1479
    %2197 = vmatprep.subr.bf16.mxu0 %v1472
    %2198 = vmatpush1.bf16.msra.mxu0 %v1471
    %2199 = vmatprep.subr.bf16.mxu0 %v1464
    %2200 = vmatpush1.bf16.msra.mxu0 %v1463
    %2201 = vmatprep.subr.bf16.mxu0 %v1456
    %2202 = vmatpush1.bf16.msra.mxu0 %v1455
    %2203 = vmatprep.subr.bf16.mxu0 %v1448
    %2204 = vmatpush1.bf16.msra.mxu0 %v1447
    %2205 = vmatprep.subr.bf16.mxu0 %v1440
    %2206 = vmatpush1.bf16.msra.mxu0 %v1439
    %2207 = vmatprep.subr.bf16.mxu0 %v1560
    %2208 = vmatpush2.bf16.msra.mxu0 %v1559
    %2209 = vmatprep.subr.bf16.mxu0 %v1552
    %2210 = vmatpush2.bf16.msra.mxu0 %v1551
    %2211 = vmatprep.subr.bf16.mxu0 %v1544
    %2212 = vmatpush2.bf16.msra.mxu0 %v1543
    %2213 = vmatprep.subr.bf16.mxu0 %v1536
    %2214 = vmatpush2.bf16.msra.mxu0 %v1535
    %2215 = vmatprep.subr.bf16.mxu0 %v1528
    %2216 = vmatpush2.bf16.msra.mxu0 %v1527
    %2217 = vmatprep.subr.bf16.mxu0 %v1520
    %2218 = vmatpush2.bf16.msra.mxu0 %v1519
    %2219 = vmatprep.subr.bf16.mxu0 %v1512
    %2220 = vmatpush2.bf16.msra.mxu0 %v1511
    %2221 = vmatprep.subr.bf16.mxu0 %v1504
    %2222 = vmatpush2.bf16.msra.mxu0 %v1503
    %2223 = vmatprep.mubr.bf16.mxu0 %v364
    %2224 = vmatmul.mubr.bf16.gmra.mxu0 %v363
    %v2225 = vpop.f32.mrf.mxu0
    %v2226 = vadd.f32 %v652, %v2225
    %v2227 = vpop.f32.mrf.mxu0
    %v2228 = vadd.f32 %v656, %v2227
    %v2229 = vpop.f32.mrf.mxu0
    %v2230 = vpop.f32.mrf.mxu0
    %2231 = vdwg.mxu0
    %2232 = vmatprep.subr.bf16.mxu0 %v1624
    %2233 = vmatpush1.bf16.msra.mxu0 %v1623
    %2234 = vmatprep.subr.bf16.mxu0 %v1616
    %2235 = vmatpush1.bf16.msra.mxu0 %v1615
    %2236 = vmatprep.subr.bf16.mxu0 %v1608
    %2237 = vmatpush1.bf16.msra.mxu0 %v1607
    %2238 = vmatprep.subr.bf16.mxu0 %v1600
    %2239 = vmatpush1.bf16.msra.mxu0 %v1599
    %2240 = vmatprep.subr.bf16.mxu0 %v1592
    %2241 = vmatpush1.bf16.msra.mxu0 %v1591
    %2242 = vmatprep.subr.bf16.mxu0 %v1584
    %2243 = vmatpush1.bf16.msra.mxu0 %v1583
    %2244 = vmatprep.subr.bf16.mxu0 %v1576
    %2245 = vmatpush1.bf16.msra.mxu0 %v1575
    %2246 = vmatprep.subr.bf16.mxu0 %v1568
    %2247 = vmatpush1.bf16.msra.mxu0 %v1567
    %2248 = vmatprep.subr.bf16.mxu0 %v1688
    %2249 = vmatpush2.bf16.msra.mxu0 %v1687
    %2250 = vmatprep.subr.bf16.mxu0 %v1680
    %2251 = vmatpush2.bf16.msra.mxu0 %v1679
    %2252 = vmatprep.subr.bf16.mxu0 %v1672
    %2253 = vmatpush2.bf16.msra.mxu0 %v1671
    %2254 = vmatprep.subr.bf16.mxu0 %v1664
    %2255 = vmatpush2.bf16.msra.mxu0 %v1663
    %2256 = vmatprep.subr.bf16.mxu0 %v1656
    %2257 = vmatpush2.bf16.msra.mxu0 %v1655
    %2258 = vmatprep.subr.bf16.mxu0 %v1648
    %2259 = vmatpush2.bf16.msra.mxu0 %v1647
    %2260 = vmatprep.subr.bf16.mxu0 %v1640
    %2261 = vmatpush2.bf16.msra.mxu0 %v1639
    %2262 = vmatprep.subr.bf16.mxu0 %v1632
    %2263 = vmatpush2.bf16.msra.mxu0 %v1631
    %2264 = vmatprep.mubr.bf16.mxu0 %v366
    %2265 = vmatmul.mubr.bf16.gmra.mxu0 %v365
    %v2266 = vpop.f32.mrf.mxu0
    %v2267 = vadd.f32 %v2226, %v2266
    %v2268 = vpop.f32.mrf.mxu0
    %v2269 = vadd.f32 %v2228, %v2268
    %v2270 = vpop.f32.mrf.mxu0
    %v2271 = vpop.f32.mrf.mxu0
    %2272 = vdwg.mxu0
    %v2273 = vmax.f32 %v2021, 0.0
    %v2274 = vmax.f32 %v2023, 0.0
    %v2275 = vmax.f32 %v2103, 0.0
    %v2276 = vmax.f32 %v2105, 0.0
    %v2277 = vmax.f32 %v2185, 0.0
    %v2278 = vmax.f32 %v2187, 0.0
    %v2279 = vmax.f32 %v2267, 0.0
    %v2280 = vmax.f32 %v2269, 0.0
    %v2281 = vpack.c.bf16 %v2273, %v2273
    %v2282 = vpack.c.bf16 %v2274, %v2274
    %v2283 = vpack.c.bf16 %v2275, %v2275
    %v2284 = vpack.c.bf16 %v2276, %v2276
    %v2285 = vpack.c.bf16 %v2277, %v2277
    %v2286 = vpack.c.bf16 %v2278, %v2278
    %v2287 = vpack.c.bf16 %v2279, %v2279
    %v2288 = vpack.c.bf16 %v2280, %v2280
    %v2289 = vld [vmem:[#allocation5] sm:$0xff]
    %v2290 = vld [vmem:[#allocation5 + $0x8] sm:$0xff]
    %v2291 = vld [vmem:[#allocation5 + $0x10] sm:$0xff]
    %v2292 = vld [vmem:[#allocation5 + $0x18] sm:$0xff]
    %v2293 = vld [vmem:[#allocation5 + $0x20] sm:$0xff]
    %v2294 = vld [vmem:[#allocation5 + $0x28] sm:$0xff]
    %v2295 = vld [vmem:[#allocation5 + $0x30] sm:$0xff]
    %v2296 = vld [vmem:[#allocation5 + $0x38] sm:$0xff]
    %v2297 = vld [vmem:[#allocation5 + $0x40] sm:$0xff]
    %v2298 = vld [vmem:[#allocation5 + $0x48] sm:$0xff]
    %v2299 = vld [vmem:[#allocation5 + $0x50] sm:$0xff]
    %v2300 = vld [vmem:[#allocation5 + $0x58] sm:$0xff]
    %v2301 = vld [vmem:[#allocation5 + $0x60] sm:$0xff]
    %v2302 = vld [vmem:[#allocation5 + $0x68] sm:$0xff]
    %v2303 = vld [vmem:[#allocation5 + $0x70] sm:$0xff]
    %v2304 = vld [vmem:[#allocation5 + $0x78] sm:$0xff]
    %v2305 = vld [vmem:[#allocation5 + $0x80] sm:$0xff]
    %v2306 = vld [vmem:[#allocation5 + $0x88] sm:$0xff]
    %v2307 = vld [vmem:[#allocation5 + $0x90] sm:$0xff]
    %v2308 = vld [vmem:[#allocation5 + $0x98] sm:$0xff]
    %v2309 = vld [vmem:[#allocation5 + $0xa0] sm:$0xff]
    %v2310 = vld [vmem:[#allocation5 + $0xa8] sm:$0xff]
    %v2311 = vld [vmem:[#allocation5 + $0xb0] sm:$0xff]
    %v2312 = vld [vmem:[#allocation5 + $0xb8] sm:$0xff]
    %v2313 = vld [vmem:[#allocation5 + $0xc0] sm:$0xff]
    %v2314 = vld [vmem:[#allocation5 + $0xc8] sm:$0xff]
    %v2315 = vld [vmem:[#allocation5 + $0xd0] sm:$0xff]
    %v2316 = vld [vmem:[#allocation5 + $0xd8] sm:$0xff]
    %v2317 = vld [vmem:[#allocation5 + $0xe0] sm:$0xff]
    %v2318 = vld [vmem:[#allocation5 + $0xe8] sm:$0xff]
    %v2319 = vld [vmem:[#allocation5 + $0xf0] sm:$0xff]
    %v2320 = vld [vmem:[#allocation5 + $0xf8] sm:$0xff]
    %v2321 = vld [vmem:[#allocation5 + $0x100] sm:$0xff]
    %v2322 = vld [vmem:[#allocation5 + $0x108] sm:$0xff]
    %v2323 = vld [vmem:[#allocation5 + $0x110] sm:$0xff]
    %v2324 = vld [vmem:[#allocation5 + $0x118] sm:$0xff]
    %v2325 = vld [vmem:[#allocation5 + $0x120] sm:$0xff]
    %v2326 = vld [vmem:[#allocation5 + $0x128] sm:$0xff]
    %v2327 = vld [vmem:[#allocation5 + $0x130] sm:$0xff]
    %v2328 = vld [vmem:[#allocation5 + $0x138] sm:$0xff]
    %v2329 = vld [vmem:[#allocation5 + $0x140] sm:$0xff]
    %v2330 = vld [vmem:[#allocation5 + $0x148] sm:$0xff]
    %v2331 = vld [vmem:[#allocation5 + $0x150] sm:$0xff]
    %v2332 = vld [vmem:[#allocation5 + $0x158] sm:$0xff]
    %v2333 = vld [vmem:[#allocation5 + $0x160] sm:$0xff]
    %v2334 = vld [vmem:[#allocation5 + $0x168] sm:$0xff]
    %v2335 = vld [vmem:[#allocation5 + $0x170] sm:$0xff]
    %v2336 = vld [vmem:[#allocation5 + $0x178] sm:$0xff]
    %v2337 = vld [vmem:[#allocation5 + $0x180] sm:$0xff]
    %v2338 = vld [vmem:[#allocation5 + $0x188] sm:$0xff]
    %v2339 = vld [vmem:[#allocation5 + $0x190] sm:$0xff]
    %v2340 = vld [vmem:[#allocation5 + $0x198] sm:$0xff]
    %v2341 = vld [vmem:[#allocation5 + $0x1a0] sm:$0xff]
    %v2342 = vld [vmem:[#allocation5 + $0x1a8] sm:$0xff]
    %v2343 = vld [vmem:[#allocation5 + $0x1b0] sm:$0xff]
    %v2344 = vld [vmem:[#allocation5 + $0x1b8] sm:$0xff]
    %v2345 = vld [vmem:[#allocation5 + $0x1c0] sm:$0xff]
    %v2346 = vld [vmem:[#allocation5 + $0x1c8] sm:$0xff]
    %v2347 = vld [vmem:[#allocation5 + $0x1d0] sm:$0xff]
    %v2348 = vld [vmem:[#allocation5 + $0x1d8] sm:$0xff]
    %v2349 = vld [vmem:[#allocation5 + $0x1e0] sm:$0xff]
    %v2350 = vld [vmem:[#allocation5 + $0x1e8] sm:$0xff]
    %v2351 = vld [vmem:[#allocation5 + $0x1f0] sm:$0xff]
    %v2352 = vld [vmem:[#allocation5 + $0x1f8] sm:$0xff]
    %v2353 = vld [vmem:[#allocation5 + $0x200] sm:$0xff]
    %v2354 = vld [vmem:[#allocation5 + $0x208] sm:$0xff]
    %v2355 = vld [vmem:[#allocation5 + $0x210] sm:$0xff]
    %v2356 = vld [vmem:[#allocation5 + $0x218] sm:$0xff]
    %v2357 = vld [vmem:[#allocation5 + $0x220] sm:$0xff]
    %v2358 = vld [vmem:[#allocation5 + $0x228] sm:$0xff]
    %v2359 = vld [vmem:[#allocation5 + $0x230] sm:$0xff]
    %v2360 = vld [vmem:[#allocation5 + $0x238] sm:$0xff]
    %v2361 = vld [vmem:[#allocation5 + $0x240] sm:$0xff]
    %v2362 = vld [vmem:[#allocation5 + $0x248] sm:$0xff]
    %v2363 = vld [vmem:[#allocation5 + $0x250] sm:$0xff]
    %v2364 = vld [vmem:[#allocation5 + $0x258] sm:$0xff]
    %v2365 = vld [vmem:[#allocation5 + $0x260] sm:$0xff]
    %v2366 = vld [vmem:[#allocation5 + $0x268] sm:$0xff]
    %v2367 = vld [vmem:[#allocation5 + $0x270] sm:$0xff]
    %v2368 = vld [vmem:[#allocation5 + $0x278] sm:$0xff]
    %v2369 = vld [vmem:[#allocation5 + $0x280] sm:$0xff]
    %v2370 = vld [vmem:[#allocation5 + $0x288] sm:$0xff]
    %v2371 = vld [vmem:[#allocation5 + $0x290] sm:$0xff]
    %v2372 = vld [vmem:[#allocation5 + $0x298] sm:$0xff]
    %v2373 = vld [vmem:[#allocation5 + $0x2a0] sm:$0xff]
    %v2374 = vld [vmem:[#allocation5 + $0x2a8] sm:$0xff]
    %v2375 = vld [vmem:[#allocation5 + $0x2b0] sm:$0xff]
    %v2376 = vld [vmem:[#allocation5 + $0x2b8] sm:$0xff]
    %v2377 = vld [vmem:[#allocation5 + $0x2c0] sm:$0xff]
    %v2378 = vld [vmem:[#allocation5 + $0x2c8] sm:$0xff]
    %v2379 = vld [vmem:[#allocation5 + $0x2d0] sm:$0xff]
    %v2380 = vld [vmem:[#allocation5 + $0x2d8] sm:$0xff]
    %v2381 = vld [vmem:[#allocation5 + $0x2e0] sm:$0xff]
    %v2382 = vld [vmem:[#allocation5 + $0x2e8] sm:$0xff]
    %v2383 = vld [vmem:[#allocation5 + $0x2f0] sm:$0xff]
    %v2384 = vld [vmem:[#allocation5 + $0x2f8] sm:$0xff]
    %v2385 = vld [vmem:[#allocation5 + $0x300] sm:$0xff]
    %v2386 = vld [vmem:[#allocation5 + $0x308] sm:$0xff]
    %v2387 = vld [vmem:[#allocation5 + $0x310] sm:$0xff]
    %v2388 = vld [vmem:[#allocation5 + $0x318] sm:$0xff]
    %v2389 = vld [vmem:[#allocation5 + $0x320] sm:$0xff]
    %v2390 = vld [vmem:[#allocation5 + $0x328] sm:$0xff]
    %v2391 = vld [vmem:[#allocation5 + $0x330] sm:$0xff]
    %v2392 = vld [vmem:[#allocation5 + $0x338] sm:$0xff]
    %v2393 = vld [vmem:[#allocation5 + $0x340] sm:$0xff]
    %v2394 = vld [vmem:[#allocation5 + $0x348] sm:$0xff]
    %v2395 = vld [vmem:[#allocation5 + $0x350] sm:$0xff]
    %v2396 = vld [vmem:[#allocation5 + $0x358] sm:$0xff]
    %v2397 = vld [vmem:[#allocation5 + $0x360] sm:$0xff]
    %v2398 = vld [vmem:[#allocation5 + $0x368] sm:$0xff]
    %v2399 = vld [vmem:[#allocation5 + $0x370] sm:$0xff]
    %v2400 = vld [vmem:[#allocation5 + $0x378] sm:$0xff]
    %v2401 = vld [vmem:[#allocation5 + $0x380] sm:$0xff]
    %v2402 = vld [vmem:[#allocation5 + $0x388] sm:$0xff]
    %v2403 = vld [vmem:[#allocation5 + $0x390] sm:$0xff]
    %v2404 = vld [vmem:[#allocation5 + $0x398] sm:$0xff]
    %v2405 = vld [vmem:[#allocation5 + $0x3a0] sm:$0xff]
    %v2406 = vld [vmem:[#allocation5 + $0x3a8] sm:$0xff]
    %v2407 = vld [vmem:[#allocation5 + $0x3b0] sm:$0xff]
    %v2408 = vld [vmem:[#allocation5 + $0x3b8] sm:$0xff]
    %v2409 = vld [vmem:[#allocation5 + $0x3c0] sm:$0xff]
    %v2410 = vld [vmem:[#allocation5 + $0x3c8] sm:$0xff]
    %v2411 = vld [vmem:[#allocation5 + $0x3d0] sm:$0xff]
    %v2412 = vld [vmem:[#allocation5 + $0x3d8] sm:$0xff]
    %v2413 = vld [vmem:[#allocation5 + $0x3e0] sm:$0xff]
    %v2414 = vld [vmem:[#allocation5 + $0x3e8] sm:$0xff]
    %v2415 = vld [vmem:[#allocation5 + $0x3f0] sm:$0xff]
    %v2416 = vld [vmem:[#allocation5 + $0x3f8] sm:$0xff]
    %v2417 = vld [vmem:[%s6] sm:$0xf]
    %v2419 = vlaneseq
    %v2420 = vshrl.u32 %v2419, 7
    %v2421 = vsub.s32 0, %v2420
    %v2422 = vrot.slane %v2417, %v2421
    %v2423 = vlaneseq
    %v2424 = vshrl.u32 %v2423, 7
    %v2425 = vsub.s32 1, %v2424
    %v2426 = vrot.slane %v2417, %v2425
    %v2427 = vlaneseq
    %v2428 = vshrl.u32 %v2427, 7
    %v2429 = vsub.s32 2, %v2428
    %v2430 = vrot.slane %v2417, %v2429
    %v2431 = vlaneseq
    %v2432 = vshrl.u32 %v2431, 7
    %v2433 = vsub.s32 3, %v2432
    %v2434 = vrot.slane %v2417, %v2433
    %v2567 = vunpack.c.l.b16 %v2289
    %v2568 = vunpack.c.h.b16 %v2289
    %v2569 = vunpack.c.l.b16 %v2290
    %v2570 = vunpack.c.h.b16 %v2290
    %v2571 = vunpack.c.l.b16 %v2291
    %v2572 = vunpack.c.h.b16 %v2291
    %v2573 = vunpack.c.l.b16 %v2292
    %v2574 = vunpack.c.h.b16 %v2292
    %v2575 = vunpack.c.l.b16 %v2293
    %v2576 = vunpack.c.h.b16 %v2293
    %v2577 = vunpack.c.l.b16 %v2294
    %v2578 = vunpack.c.h.b16 %v2294
    %v2579 = vunpack.c.l.b16 %v2295
    %v2580 = vunpack.c.h.b16 %v2295
    %v2581 = vunpack.c.l.b16 %v2296
    %v2582 = vunpack.c.h.b16 %v2296
    %v2583 = vunpack.c.l.b16 %v2297
    %v2584 = vunpack.c.h.b16 %v2297
    %v2585 = vunpack.c.l.b16 %v2298
    %v2586 = vunpack.c.h.b16 %v2298
    %v2587 = vunpack.c.l.b16 %v2299
    %v2588 = vunpack.c.h.b16 %v2299
    %v2589 = vunpack.c.l.b16 %v2300
    %v2590 = vunpack.c.h.b16 %v2300
    %v2591 = vunpack.c.l.b16 %v2301
    %v2592 = vunpack.c.h.b16 %v2301
    %v2593 = vunpack.c.l.b16 %v2302
    %v2594 = vunpack.c.h.b16 %v2302
    %v2595 = vunpack.c.l.b16 %v2303
    %v2596 = vunpack.c.h.b16 %v2303
    %v2597 = vunpack.c.l.b16 %v2304
    %v2598 = vunpack.c.h.b16 %v2304
    %v2599 = vunpack.c.l.b16 %v2305
    %v2600 = vunpack.c.h.b16 %v2305
    %v2601 = vunpack.c.l.b16 %v2306
    %v2602 = vunpack.c.h.b16 %v2306
    %v2603 = vunpack.c.l.b16 %v2307
    %v2604 = vunpack.c.h.b16 %v2307
    %v2605 = vunpack.c.l.b16 %v2308
    %v2606 = vunpack.c.h.b16 %v2308
    %v2607 = vunpack.c.l.b16 %v2309
    %v2608 = vunpack.c.h.b16 %v2309
    %v2609 = vunpack.c.l.b16 %v2310
    %v2610 = vunpack.c.h.b16 %v2310
    %v2611 = vunpack.c.l.b16 %v2311
    %v2612 = vunpack.c.h.b16 %v2311
    %v2613 = vunpack.c.l.b16 %v2312
    %v2614 = vunpack.c.h.b16 %v2312
    %v2615 = vunpack.c.l.b16 %v2313
    %v2616 = vunpack.c.h.b16 %v2313
    %v2617 = vunpack.c.l.b16 %v2314
    %v2618 = vunpack.c.h.b16 %v2314
    %v2619 = vunpack.c.l.b16 %v2315
    %v2620 = vunpack.c.h.b16 %v2315
    %v2621 = vunpack.c.l.b16 %v2316
    %v2622 = vunpack.c.h.b16 %v2316
    %v2623 = vunpack.c.l.b16 %v2317
    %v2624 = vunpack.c.h.b16 %v2317
    %v2625 = vunpack.c.l.b16 %v2318
    %v2626 = vunpack.c.h.b16 %v2318
    %v2627 = vunpack.c.l.b16 %v2319
    %v2628 = vunpack.c.h.b16 %v2319
    %v2629 = vunpack.c.l.b16 %v2320
    %v2630 = vunpack.c.h.b16 %v2320
    %v2631 = vunpack.c.l.b16 %v2321
    %v2632 = vunpack.c.h.b16 %v2321
    %v2633 = vunpack.c.l.b16 %v2322
    %v2634 = vunpack.c.h.b16 %v2322
    %v2635 = vunpack.c.l.b16 %v2323
    %v2636 = vunpack.c.h.b16 %v2323
    %v2637 = vunpack.c.l.b16 %v2324
    %v2638 = vunpack.c.h.b16 %v2324
    %v2639 = vunpack.c.l.b16 %v2325
    %v2640 = vunpack.c.h.b16 %v2325
    %v2641 = vunpack.c.l.b16 %v2326
    %v2642 = vunpack.c.h.b16 %v2326
    %v2643 = vunpack.c.l.b16 %v2327
    %v2644 = vunpack.c.h.b16 %v2327
    %v2645 = vunpack.c.l.b16 %v2328
    %v2646 = vunpack.c.h.b16 %v2328
    %v2647 = vunpack.c.l.b16 %v2329
    %v2648 = vunpack.c.h.b16 %v2329
    %v2649 = vunpack.c.l.b16 %v2330
    %v2650 = vunpack.c.h.b16 %v2330
    %v2651 = vunpack.c.l.b16 %v2331
    %v2652 = vunpack.c.h.b16 %v2331
    %v2653 = vunpack.c.l.b16 %v2332
    %v2654 = vunpack.c.h.b16 %v2332
    %v2655 = vunpack.c.l.b16 %v2333
    %v2656 = vunpack.c.h.b16 %v2333
    %v2657 = vunpack.c.l.b16 %v2334
    %v2658 = vunpack.c.h.b16 %v2334
    %v2659 = vunpack.c.l.b16 %v2335
    %v2660 = vunpack.c.h.b16 %v2335
    %v2661 = vunpack.c.l.b16 %v2336
    %v2662 = vunpack.c.h.b16 %v2336
    %v2663 = vunpack.c.l.b16 %v2337
    %v2664 = vunpack.c.h.b16 %v2337
    %v2665 = vunpack.c.l.b16 %v2338
    %v2666 = vunpack.c.h.b16 %v2338
    %v2667 = vunpack.c.l.b16 %v2339
    %v2668 = vunpack.c.h.b16 %v2339
    %v2669 = vunpack.c.l.b16 %v2340
    %v2670 = vunpack.c.h.b16 %v2340
    %v2671 = vunpack.c.l.b16 %v2341
    %v2672 = vunpack.c.h.b16 %v2341
    %v2673 = vunpack.c.l.b16 %v2342
    %v2674 = vunpack.c.h.b16 %v2342
    %v2675 = vunpack.c.l.b16 %v2343
    %v2676 = vunpack.c.h.b16 %v2343
    %v2677 = vunpack.c.l.b16 %v2344
    %v2678 = vunpack.c.h.b16 %v2344
    %v2679 = vunpack.c.l.b16 %v2345
    %v2680 = vunpack.c.h.b16 %v2345
    %v2681 = vunpack.c.l.b16 %v2346
    %v2682 = vunpack.c.h.b16 %v2346
    %v2683 = vunpack.c.l.b16 %v2347
    %v2684 = vunpack.c.h.b16 %v2347
    %v2685 = vunpack.c.l.b16 %v2348
    %v2686 = vunpack.c.h.b16 %v2348
    %v2687 = vunpack.c.l.b16 %v2349
    %v2688 = vunpack.c.h.b16 %v2349
    %v2689 = vunpack.c.l.b16 %v2350
    %v2690 = vunpack.c.h.b16 %v2350
    %v2691 = vunpack.c.l.b16 %v2351
    %v2692 = vunpack.c.h.b16 %v2351
    %v2693 = vunpack.c.l.b16 %v2352
    %v2694 = vunpack.c.h.b16 %v2352
    %v2695 = vunpack.c.l.b16 %v2353
    %v2696 = vunpack.c.h.b16 %v2353
    %v2697 = vunpack.c.l.b16 %v2354
    %v2698 = vunpack.c.h.b16 %v2354
    %v2699 = vunpack.c.l.b16 %v2355
    %v2700 = vunpack.c.h.b16 %v2355
    %v2701 = vunpack.c.l.b16 %v2356
    %v2702 = vunpack.c.h.b16 %v2356
    %v2703 = vunpack.c.l.b16 %v2357
    %v2704 = vunpack.c.h.b16 %v2357
    %v2705 = vunpack.c.l.b16 %v2358
    %v2706 = vunpack.c.h.b16 %v2358
    %v2707 = vunpack.c.l.b16 %v2359
    %v2708 = vunpack.c.h.b16 %v2359
    %v2709 = vunpack.c.l.b16 %v2360
    %v2710 = vunpack.c.h.b16 %v2360
    %v2711 = vunpack.c.l.b16 %v2361
    %v2712 = vunpack.c.h.b16 %v2361
    %v2713 = vunpack.c.l.b16 %v2362
    %v2714 = vunpack.c.h.b16 %v2362
    %v2715 = vunpack.c.l.b16 %v2363
    %v2716 = vunpack.c.h.b16 %v2363
    %v2717 = vunpack.c.l.b16 %v2364
    %v2718 = vunpack.c.h.b16 %v2364
    %v2719 = vunpack.c.l.b16 %v2365
    %v2720 = vunpack.c.h.b16 %v2365
    %v2721 = vunpack.c.l.b16 %v2366
    %v2722 = vunpack.c.h.b16 %v2366
    %v2723 = vunpack.c.l.b16 %v2367
    %v2724 = vunpack.c.h.b16 %v2367
    %v2725 = vunpack.c.l.b16 %v2368
    %v2726 = vunpack.c.h.b16 %v2368
    %v2727 = vunpack.c.l.b16 %v2369
    %v2728 = vunpack.c.h.b16 %v2369
    %v2729 = vunpack.c.l.b16 %v2370
    %v2730 = vunpack.c.h.b16 %v2370
    %v2731 = vunpack.c.l.b16 %v2371
    %v2732 = vunpack.c.h.b16 %v2371
    %v2733 = vunpack.c.l.b16 %v2372
    %v2734 = vunpack.c.h.b16 %v2372
    %v2735 = vunpack.c.l.b16 %v2373
    %v2736 = vunpack.c.h.b16 %v2373
    %v2737 = vunpack.c.l.b16 %v2374
    %v2738 = vunpack.c.h.b16 %v2374
    %v2739 = vunpack.c.l.b16 %v2375
    %v2740 = vunpack.c.h.b16 %v2375
    %v2741 = vunpack.c.l.b16 %v2376
    %v2742 = vunpack.c.h.b16 %v2376
    %v2743 = vunpack.c.l.b16 %v2377
    %v2744 = vunpack.c.h.b16 %v2377
    %v2745 = vunpack.c.l.b16 %v2378
    %v2746 = vunpack.c.h.b16 %v2378
    %v2747 = vunpack.c.l.b16 %v2379
    %v2748 = vunpack.c.h.b16 %v2379
    %v2749 = vunpack.c.l.b16 %v2380
    %v2750 = vunpack.c.h.b16 %v2380
    %v2751 = vunpack.c.l.b16 %v2381
    %v2752 = vunpack.c.h.b16 %v2381
    %v2753 = vunpack.c.l.b16 %v2382
    %v2754 = vunpack.c.h.b16 %v2382
    %v2755 = vunpack.c.l.b16 %v2383
    %v2756 = vunpack.c.h.b16 %v2383
    %v2757 = vunpack.c.l.b16 %v2384
    %v2758 = vunpack.c.h.b16 %v2384
    %v2759 = vunpack.c.l.b16 %v2385
    %v2760 = vunpack.c.h.b16 %v2385
    %v2761 = vunpack.c.l.b16 %v2386
    %v2762 = vunpack.c.h.b16 %v2386
    %v2763 = vunpack.c.l.b16 %v2387
    %v2764 = vunpack.c.h.b16 %v2387
    %v2765 = vunpack.c.l.b16 %v2388
    %v2766 = vunpack.c.h.b16 %v2388
    %v2767 = vunpack.c.l.b16 %v2389
    %v2768 = vunpack.c.h.b16 %v2389
    %v2769 = vunpack.c.l.b16 %v2390
    %v2770 = vunpack.c.h.b16 %v2390
    %v2771 = vunpack.c.l.b16 %v2391
    %v2772 = vunpack.c.h.b16 %v2391
    %v2773 = vunpack.c.l.b16 %v2392
    %v2774 = vunpack.c.h.b16 %v2392
    %v2775 = vunpack.c.l.b16 %v2393
    %v2776 = vunpack.c.h.b16 %v2393
    %v2777 = vunpack.c.l.b16 %v2394
    %v2778 = vunpack.c.h.b16 %v2394
    %v2779 = vunpack.c.l.b16 %v2395
    %v2780 = vunpack.c.h.b16 %v2395
    %v2781 = vunpack.c.l.b16 %v2396
    %v2782 = vunpack.c.h.b16 %v2396
    %v2783 = vunpack.c.l.b16 %v2397
    %v2784 = vunpack.c.h.b16 %v2397
    %v2785 = vunpack.c.l.b16 %v2398
    %v2786 = vunpack.c.h.b16 %v2398
    %v2787 = vunpack.c.l.b16 %v2399
    %v2788 = vunpack.c.h.b16 %v2399
    %v2789 = vunpack.c.l.b16 %v2400
    %v2790 = vunpack.c.h.b16 %v2400
    %v2791 = vunpack.c.l.b16 %v2401
    %v2792 = vunpack.c.h.b16 %v2401
    %v2793 = vunpack.c.l.b16 %v2402
    %v2794 = vunpack.c.h.b16 %v2402
    %v2795 = vunpack.c.l.b16 %v2403
    %v2796 = vunpack.c.h.b16 %v2403
    %v2797 = vunpack.c.l.b16 %v2404
    %v2798 = vunpack.c.h.b16 %v2404
    %v2799 = vunpack.c.l.b16 %v2405
    %v2800 = vunpack.c.h.b16 %v2405
    %v2801 = vunpack.c.l.b16 %v2406
    %v2802 = vunpack.c.h.b16 %v2406
    %v2803 = vunpack.c.l.b16 %v2407
    %v2804 = vunpack.c.h.b16 %v2407
    %v2805 = vunpack.c.l.b16 %v2408
    %v2806 = vunpack.c.h.b16 %v2408
    %v2807 = vunpack.c.l.b16 %v2409
    %v2808 = vunpack.c.h.b16 %v2409
    %v2809 = vunpack.c.l.b16 %v2410
    %v2810 = vunpack.c.h.b16 %v2410
    %v2811 = vunpack.c.l.b16 %v2411
    %v2812 = vunpack.c.h.b16 %v2411
    %v2813 = vunpack.c.l.b16 %v2412
    %v2814 = vunpack.c.h.b16 %v2412
    %v2815 = vunpack.c.l.b16 %v2413
    %v2816 = vunpack.c.h.b16 %v2413
    %v2817 = vunpack.c.l.b16 %v2414
    %v2818 = vunpack.c.h.b16 %v2414
    %v2819 = vunpack.c.l.b16 %v2415
    %v2820 = vunpack.c.h.b16 %v2415
    %v2821 = vunpack.c.l.b16 %v2416
    %v2822 = vunpack.c.h.b16 %v2416
    %v2823 = vpack.c.b16 %v2571, %v2567
    %v2824 = vpack.c.b16 %v2572, %v2568
    %v2825 = vpack.c.b16 %v2573, %v2569
    %v2826 = vpack.c.b16 %v2574, %v2570
    %v2827 = vpack.c.b16 %v2579, %v2575
    %v2828 = vpack.c.b16 %v2580, %v2576
    %v2829 = vpack.c.b16 %v2581, %v2577
    %v2830 = vpack.c.b16 %v2582, %v2578
    %v2831 = vpack.c.b16 %v2587, %v2583
    %v2832 = vpack.c.b16 %v2588, %v2584
    %v2833 = vpack.c.b16 %v2589, %v2585
    %v2834 = vpack.c.b16 %v2590, %v2586
    %v2835 = vpack.c.b16 %v2595, %v2591
    %v2836 = vpack.c.b16 %v2596, %v2592
    %v2837 = vpack.c.b16 %v2597, %v2593
    %v2838 = vpack.c.b16 %v2598, %v2594
    %v2839 = vpack.c.b16 %v2603, %v2599
    %v2840 = vpack.c.b16 %v2604, %v2600
    %v2841 = vpack.c.b16 %v2605, %v2601
    %v2842 = vpack.c.b16 %v2606, %v2602
    %v2843 = vpack.c.b16 %v2611, %v2607
    %v2844 = vpack.c.b16 %v2612, %v2608
    %v2845 = vpack.c.b16 %v2613, %v2609
    %v2846 = vpack.c.b16 %v2614, %v2610
    %v2847 = vpack.c.b16 %v2619, %v2615
    %v2848 = vpack.c.b16 %v2620, %v2616
    %v2849 = vpack.c.b16 %v2621, %v2617
    %v2850 = vpack.c.b16 %v2622, %v2618
    %v2851 = vpack.c.b16 %v2627, %v2623
    %v2852 = vpack.c.b16 %v2628, %v2624
    %v2853 = vpack.c.b16 %v2629, %v2625
    %v2854 = vpack.c.b16 %v2630, %v2626
    %v2855 = vpack.c.b16 %v2635, %v2631
    %v2856 = vpack.c.b16 %v2636, %v2632
    %v2857 = vpack.c.b16 %v2637, %v2633
    %v2858 = vpack.c.b16 %v2638, %v2634
    %v2859 = vpack.c.b16 %v2643, %v2639
    %v2860 = vpack.c.b16 %v2644, %v2640
    %v2861 = vpack.c.b16 %v2645, %v2641
    %v2862 = vpack.c.b16 %v2646, %v2642
    %v2863 = vpack.c.b16 %v2651, %v2647
    %v2864 = vpack.c.b16 %v2652, %v2648
    %v2865 = vpack.c.b16 %v2653, %v2649
    %v2866 = vpack.c.b16 %v2654, %v2650
    %v2867 = vpack.c.b16 %v2659, %v2655
    %v2868 = vpack.c.b16 %v2660, %v2656
    %v2869 = vpack.c.b16 %v2661, %v2657
    %v2870 = vpack.c.b16 %v2662, %v2658
    %v2871 = vpack.c.b16 %v2667, %v2663
    %v2872 = vpack.c.b16 %v2668, %v2664
    %v2873 = vpack.c.b16 %v2669, %v2665
    %v2874 = vpack.c.b16 %v2670, %v2666
    %v2875 = vpack.c.b16 %v2675, %v2671
    %v2876 = vpack.c.b16 %v2676, %v2672
    %v2877 = vpack.c.b16 %v2677, %v2673
    %v2878 = vpack.c.b16 %v2678, %v2674
    %v2879 = vpack.c.b16 %v2683, %v2679
    %v2880 = vpack.c.b16 %v2684, %v2680
    %v2881 = vpack.c.b16 %v2685, %v2681
    %v2882 = vpack.c.b16 %v2686, %v2682
    %v2883 = vpack.c.b16 %v2691, %v2687
    %v2884 = vpack.c.b16 %v2692, %v2688
    %v2885 = vpack.c.b16 %v2693, %v2689
    %v2886 = vpack.c.b16 %v2694, %v2690
    %v2887 = vpack.c.b16 %v2699, %v2695
    %v2888 = vpack.c.b16 %v2700, %v2696
    %v2889 = vpack.c.b16 %v2701, %v2697
    %v2890 = vpack.c.b16 %v2702, %v2698
    %v2891 = vpack.c.b16 %v2707, %v2703
    %v2892 = vpack.c.b16 %v2708, %v2704
    %v2893 = vpack.c.b16 %v2709, %v2705
    %v2894 = vpack.c.b16 %v2710, %v2706
    %v2895 = vpack.c.b16 %v2715, %v2711
    %v2896 = vpack.c.b16 %v2716, %v2712
    %v2897 = vpack.c.b16 %v2717, %v2713
    %v2898 = vpack.c.b16 %v2718, %v2714
    %v2899 = vpack.c.b16 %v2723, %v2719
    %v2900 = vpack.c.b16 %v2724, %v2720
    %v2901 = vpack.c.b16 %v2725, %v2721
    %v2902 = vpack.c.b16 %v2726, %v2722
    %v2903 = vpack.c.b16 %v2731, %v2727
    %v2904 = vpack.c.b16 %v2732, %v2728
    %v2905 = vpack.c.b16 %v2733, %v2729
    %v2906 = vpack.c.b16 %v2734, %v2730
    %v2907 = vpack.c.b16 %v2739, %v2735
    %v2908 = vpack.c.b16 %v2740, %v2736
    %v2909 = vpack.c.b16 %v2741, %v2737
    %v2910 = vpack.c.b16 %v2742, %v2738
    %v2911 = vpack.c.b16 %v2747, %v2743
    %v2912 = vpack.c.b16 %v2748, %v2744
    %v2913 = vpack.c.b16 %v2749, %v2745
    %v2914 = vpack.c.b16 %v2750, %v2746
    %v2915 = vpack.c.b16 %v2755, %v2751
    %v2916 = vpack.c.b16 %v2756, %v2752
    %v2917 = vpack.c.b16 %v2757, %v2753
    %v2918 = vpack.c.b16 %v2758, %v2754
    %v2919 = vpack.c.b16 %v2763, %v2759
    %v2920 = vpack.c.b16 %v2764, %v2760
    %v2921 = vpack.c.b16 %v2765, %v2761
    %v2922 = vpack.c.b16 %v2766, %v2762
    %v2923 = vpack.c.b16 %v2771, %v2767
    %v2924 = vpack.c.b16 %v2772, %v2768
    %v2925 = vpack.c.b16 %v2773, %v2769
    %v2926 = vpack.c.b16 %v2774, %v2770
    %v2927 = vpack.c.b16 %v2779, %v2775
    %v2928 = vpack.c.b16 %v2780, %v2776
    %v2929 = vpack.c.b16 %v2781, %v2777
    %v2930 = vpack.c.b16 %v2782, %v2778
    %v2931 = vpack.c.b16 %v2787, %v2783
    %v2932 = vpack.c.b16 %v2788, %v2784
    %v2933 = vpack.c.b16 %v2789, %v2785
    %v2934 = vpack.c.b16 %v2790, %v2786
    %v2935 = vpack.c.b16 %v2795, %v2791
    %v2936 = vpack.c.b16 %v2796, %v2792
    %v2937 = vpack.c.b16 %v2797, %v2793
    %v2938 = vpack.c.b16 %v2798, %v2794
    %v2939 = vpack.c.b16 %v2803, %v2799
    %v2940 = vpack.c.b16 %v2804, %v2800
    %v2941 = vpack.c.b16 %v2805, %v2801
    %v2942 = vpack.c.b16 %v2806, %v2802
    %v2943 = vpack.c.b16 %v2811, %v2807
    %v2944 = vpack.c.b16 %v2812, %v2808
    %v2945 = vpack.c.b16 %v2813, %v2809
    %v2946 = vpack.c.b16 %v2814, %v2810
    %v2947 = vpack.c.b16 %v2819, %v2815
    %v2948 = vpack.c.b16 %v2820, %v2816
    %v2949 = vpack.c.b16 %v2821, %v2817
    %v2950 = vpack.c.b16 %v2822, %v2818
    %3079 = vmatprep.subr.bf16.mxu0 %v2852
    %3080 = vmatpush1.bf16.msra.mxu0 %v2851
    %3081 = vmatprep.subr.bf16.mxu0 %v2848
    %3082 = vmatpush1.bf16.msra.mxu0 %v2847
    %3083 = vmatprep.subr.bf16.mxu0 %v2844
    %3084 = vmatpush1.bf16.msra.mxu0 %v2843
    %3085 = vmatprep.subr.bf16.mxu0 %v2840
    %3086 = vmatpush1.bf16.msra.mxu0 %v2839
    %3087 = vmatprep.subr.bf16.mxu0 %v2836
    %3088 = vmatpush1.bf16.msra.mxu0 %v2835
    %3089 = vmatprep.subr.bf16.mxu0 %v2832
    %3090 = vmatpush1.bf16.msra.mxu0 %v2831
    %3091 = vmatprep.subr.bf16.mxu0 %v2828
    %3092 = vmatpush1.bf16.msra.mxu0 %v2827
    %3093 = vmatprep.subr.bf16.mxu0 %v2824
    %3094 = vmatpush1.bf16.msra.mxu0 %v2823
    %3095 = vmatprep.subr.bf16.mxu0 %v2884
    %3096 = vmatpush2.bf16.msra.mxu0 %v2883
    %3097 = vmatprep.subr.bf16.mxu0 %v2880
    %3098 = vmatpush2.bf16.msra.mxu0 %v2879
    %3099 = vmatprep.subr.bf16.mxu0 %v2876
    %3100 = vmatpush2.bf16.msra.mxu0 %v2875
    %3101 = vmatprep.subr.bf16.mxu0 %v2872
    %3102 = vmatpush2.bf16.msra.mxu0 %v2871
    %3103 = vmatprep.subr.bf16.mxu0 %v2868
    %3104 = vmatpush2.bf16.msra.mxu0 %v2867
    %3105 = vmatprep.subr.bf16.mxu0 %v2864
    %3106 = vmatpush2.bf16.msra.mxu0 %v2863
    %3107 = vmatprep.subr.bf16.mxu0 %v2860
    %3108 = vmatpush2.bf16.msra.mxu0 %v2859
    %3109 = vmatprep.subr.bf16.mxu0 %v2856
    %3110 = vmatpush2.bf16.msra.mxu0 %v2855
    %3111 = vmatprep.mubr.bf16.mxu0 %v2282
    %3112 = vmatmul.mubr.bf16.gmra.mxu0 %v2281
    %v3113 = vpop.f32.mrf.mxu0
    %v3114 = vadd.f32 %v2422, %v3113
    %v3115 = vpop.f32.mrf.mxu0
    %v3116 = vadd.f32 %v2426, %v3115
    %v3117 = vpop.f32.mrf.mxu0
    %v3118 = vpop.f32.mrf.mxu0
    %3119 = vdwg.mxu0
    %3120 = vmatprep.subr.bf16.mxu0 %v2916
    %3121 = vmatpush1.bf16.msra.mxu0 %v2915
    %3122 = vmatprep.subr.bf16.mxu0 %v2912
    %3123 = vmatpush1.bf16.msra.mxu0 %v2911
    %3124 = vmatprep.subr.bf16.mxu0 %v2908
    %3125 = vmatpush1.bf16.msra.mxu0 %v2907
    %3126 = vmatprep.subr.bf16.mxu0 %v2904
    %3127 = vmatpush1.bf16.msra.mxu0 %v2903
    %3128 = vmatprep.subr.bf16.mxu0 %v2900
    %3129 = vmatpush1.bf16.msra.mxu0 %v2899
    %3130 = vmatprep.subr.bf16.mxu0 %v2896
    %3131 = vmatpush1.bf16.msra.mxu0 %v2895
    %3132 = vmatprep.subr.bf16.mxu0 %v2892
    %3133 = vmatpush1.bf16.msra.mxu0 %v2891
    %3134 = vmatprep.subr.bf16.mxu0 %v2888
    %3135 = vmatpush1.bf16.msra.mxu0 %v2887
    %3136 = vmatprep.subr.bf16.mxu0 %v2948
    %3137 = vmatpush2.bf16.msra.mxu0 %v2947
    %3138 = vmatprep.subr.bf16.mxu0 %v2944
    %3139 = vmatpush2.bf16.msra.mxu0 %v2943
    %3140 = vmatprep.subr.bf16.mxu0 %v2940
    %3141 = vmatpush2.bf16.msra.mxu0 %v2939
    %3142 = vmatprep.subr.bf16.mxu0 %v2936
    %3143 = vmatpush2.bf16.msra.mxu0 %v2935
    %3144 = vmatprep.subr.bf16.mxu0 %v2932
    %3145 = vmatpush2.bf16.msra.mxu0 %v2931
    %3146 = vmatprep.subr.bf16.mxu0 %v2928
    %3147 = vmatpush2.bf16.msra.mxu0 %v2927
    %3148 = vmatprep.subr.bf16.mxu0 %v2924
    %3149 = vmatpush2.bf16.msra.mxu0 %v2923
    %3150 = vmatprep.subr.bf16.mxu0 %v2920
    %3151 = vmatpush2.bf16.msra.mxu0 %v2919
    %3152 = vmatprep.mubr.bf16.mxu0 %v2284
    %3153 = vmatmul.mubr.bf16.gmra.mxu0 %v2283
    %v3154 = vpop.f32.mrf.mxu0
    %v3155 = vadd.f32 %v3114, %v3154
    %v3156 = vpop.f32.mrf.mxu0
    %v3157 = vadd.f32 %v3116, %v3156
    %v3158 = vpop.f32.mrf.mxu0
    %v3159 = vpop.f32.mrf.mxu0
    %3160 = vdwg.mxu0
    %3161 = vmatprep.subr.bf16.mxu0 %v2854
    %3162 = vmatpush1.bf16.msra.mxu0 %v2853
    %3163 = vmatprep.subr.bf16.mxu0 %v2850
    %3164 = vmatpush1.bf16.msra.mxu0 %v2849
    %3165 = vmatprep.subr.bf16.mxu0 %v2846
    %3166 = vmatpush1.bf16.msra.mxu0 %v2845
    %3167 = vmatprep.subr.bf16.mxu0 %v2842
    %3168 = vmatpush1.bf16.msra.mxu0 %v2841
    %3169 = vmatprep.subr.bf16.mxu0 %v2838
    %3170 = vmatpush1.bf16.msra.mxu0 %v2837
    %3171 = vmatprep.subr.bf16.mxu0 %v2834
    %3172 = vmatpush1.bf16.msra.mxu0 %v2833
    %3173 = vmatprep.subr.bf16.mxu0 %v2830
    %3174 = vmatpush1.bf16.msra.mxu0 %v2829
    %3175 = vmatprep.subr.bf16.mxu0 %v2826
    %3176 = vmatpush1.bf16.msra.mxu0 %v2825
    %3177 = vmatprep.subr.bf16.mxu0 %v2886
    %3178 = vmatpush2.bf16.msra.mxu0 %v2885
    %3179 = vmatprep.subr.bf16.mxu0 %v2882
    %3180 = vmatpush2.bf16.msra.mxu0 %v2881
    %3181 = vmatprep.subr.bf16.mxu0 %v2878
    %3182 = vmatpush2.bf16.msra.mxu0 %v2877
    %3183 = vmatprep.subr.bf16.mxu0 %v2874
    %3184 = vmatpush2.bf16.msra.mxu0 %v2873
    %3185 = vmatprep.subr.bf16.mxu0 %v2870
    %3186 = vmatpush2.bf16.msra.mxu0 %v2869
    %3187 = vmatprep.subr.bf16.mxu0 %v2866
    %3188 = vmatpush2.bf16.msra.mxu0 %v2865
    %3189 = vmatprep.subr.bf16.mxu0 %v2862
    %3190 = vmatpush2.bf16.msra.mxu0 %v2861
    %3191 = vmatprep.subr.bf16.mxu0 %v2858
    %3192 = vmatpush2.bf16.msra.mxu0 %v2857
    %3193 = vmatprep.mubr.bf16.mxu0 %v2282
    %3194 = vmatmul.mubr.bf16.gmra.mxu0 %v2281
    %v3195 = vpop.f32.mrf.mxu0
    %v3196 = vadd.f32 %v2430, %v3195
    %v3197 = vpop.f32.mrf.mxu0
    %v3198 = vadd.f32 %v2434, %v3197
    %v3199 = vpop.f32.mrf.mxu0
    %v3200 = vpop.f32.mrf.mxu0
    %3201 = vdwg.mxu0
    %3202 = vmatprep.subr.bf16.mxu0 %v2918
    %3203 = vmatpush1.bf16.msra.mxu0 %v2917
    %3204 = vmatprep.subr.bf16.mxu0 %v2914
    %3205 = vmatpush1.bf16.msra.mxu0 %v2913
    %3206 = vmatprep.subr.bf16.mxu0 %v2910
    %3207 = vmatpush1.bf16.msra.mxu0 %v2909
    %3208 = vmatprep.subr.bf16.mxu0 %v2906
    %3209 = vmatpush1.bf16.msra.mxu0 %v2905
    %3210 = vmatprep.subr.bf16.mxu0 %v2902
    %3211 = vmatpush1.bf16.msra.mxu0 %v2901
    %3212 = vmatprep.subr.bf16.mxu0 %v2898
    %3213 = vmatpush1.bf16.msra.mxu0 %v2897
    %3214 = vmatprep.subr.bf16.mxu0 %v2894
    %3215 = vmatpush1.bf16.msra.mxu0 %v2893
    %3216 = vmatprep.subr.bf16.mxu0 %v2890
    %3217 = vmatpush1.bf16.msra.mxu0 %v2889
    %3218 = vmatprep.subr.bf16.mxu0 %v2950
    %3219 = vmatpush2.bf16.msra.mxu0 %v2949
    %3220 = vmatprep.subr.bf16.mxu0 %v2946
    %3221 = vmatpush2.bf16.msra.mxu0 %v2945
    %3222 = vmatprep.subr.bf16.mxu0 %v2942
    %3223 = vmatpush2.bf16.msra.mxu0 %v2941
    %3224 = vmatprep.subr.bf16.mxu0 %v2938
    %3225 = vmatpush2.bf16.msra.mxu0 %v2937
    %3226 = vmatprep.subr.bf16.mxu0 %v2934
    %3227 = vmatpush2.bf16.msra.mxu0 %v2933
    %3228 = vmatprep.subr.bf16.mxu0 %v2930
    %3229 = vmatpush2.bf16.msra.mxu0 %v2929
    %3230 = vmatprep.subr.bf16.mxu0 %v2926
    %3231 = vmatpush2.bf16.msra.mxu0 %v2925
    %3232 = vmatprep.subr.bf16.mxu0 %v2922
    %3233 = vmatpush2.bf16.msra.mxu0 %v2921
    %3234 = vmatprep.mubr.bf16.mxu0 %v2284
    %3235 = vmatmul.mubr.bf16.gmra.mxu0 %v2283
    %v3236 = vpop.f32.mrf.mxu0
    %v3237 = vadd.f32 %v3196, %v3236
    %v3238 = vpop.f32.mrf.mxu0
    %v3239 = vadd.f32 %v3198, %v3238
    %v3240 = vpop.f32.mrf.mxu0
    %v3241 = vpop.f32.mrf.mxu0
    %3242 = vdwg.mxu0
    %v3243 = vld [vmem:[%s7] sm:$0xf]
    %v3244 = vld [vmem:[%s7 + $0x4] sm:$0xf]
    %v3245 = vld [vmem:[%s7 + $0x8] sm:$0xf]
    %v3246 = vld [vmem:[%s7 + $0xc] sm:$0xf]
    %v3247 = vld [vmem:[%s7 + $0x10] sm:$0xf]
    %v3248 = vld [vmem:[%s7 + $0x14] sm:$0xf]
    %v3249 = vld [vmem:[%s7 + $0x18] sm:$0xf]
    %v3250 = vld [vmem:[%s7 + $0x1c] sm:$0xf]
    %v3251 = vld [vmem:[%s7 + $0x20] sm:$0xf]
    %v3252 = vld [vmem:[%s7 + $0x24] sm:$0xf]
    %v3253 = vld [vmem:[%s7 + $0x28] sm:$0xf]
    %v3254 = vld [vmem:[%s7 + $0x2c] sm:$0xf]
    %v3255 = vld [vmem:[%s7 + $0x30] sm:$0xf]
    %v3256 = vld [vmem:[%s7 + $0x34] sm:$0xf]
    %v3257 = vld [vmem:[%s7 + $0x38] sm:$0xf]
    %v3258 = vld [vmem:[%s7 + $0x3c] sm:$0xf]
    %v3259 = vld [vmem:[%s7 + $0x40] sm:$0xf]
    %v3260 = vld [vmem:[%s7 + $0x44] sm:$0xf]
    %v3261 = vld [vmem:[%s7 + $0x48] sm:$0xf]
    %v3262 = vld [vmem:[%s7 + $0x4c] sm:$0xf]
    %v3263 = vld [vmem:[%s7 + $0x50] sm:$0xf]
    %v3264 = vld [vmem:[%s7 + $0x54] sm:$0xf]
    %v3265 = vld [vmem:[%s7 + $0x58] sm:$0xf]
    %v3266 = vld [vmem:[%s7 + $0x5c] sm:$0xf]
    %v3267 = vld [vmem:[%s7 + $0x60] sm:$0xf]
    %v3268 = vld [vmem:[%s7 + $0x64] sm:$0xf]
    %v3269 = vld [vmem:[%s7 + $0x68] sm:$0xf]
    %v3270 = vld [vmem:[%s7 + $0x6c] sm:$0xf]
    %v3271 = vld [vmem:[%s7 + $0x70] sm:$0xf]
    %v3272 = vld [vmem:[%s7 + $0x74] sm:$0xf]
    %v3273 = vld [vmem:[%s7 + $0x78] sm:$0xf]
    %v3274 = vld [vmem:[%s7 + $0x7c] sm:$0xf]
    %v3275 = vld [vmem:[%s7 + $0x80] sm:$0xf]
    %v3276 = vld [vmem:[%s7 + $0x84] sm:$0xf]
    %v3277 = vld [vmem:[%s7 + $0x88] sm:$0xf]
    %v3278 = vld [vmem:[%s7 + $0x8c] sm:$0xf]
    %v3279 = vld [vmem:[%s7 + $0x90] sm:$0xf]
    %v3280 = vld [vmem:[%s7 + $0x94] sm:$0xf]
    %v3281 = vld [vmem:[%s7 + $0x98] sm:$0xf]
    %v3282 = vld [vmem:[%s7 + $0x9c] sm:$0xf]
    %v3283 = vld [vmem:[%s7 + $0xa0] sm:$0xf]
    %v3284 = vld [vmem:[%s7 + $0xa4] sm:$0xf]
    %v3285 = vld [vmem:[%s7 + $0xa8] sm:$0xf]
    %v3286 = vld [vmem:[%s7 + $0xac] sm:$0xf]
    %v3287 = vld [vmem:[%s7 + $0xb0] sm:$0xf]
    %v3288 = vld [vmem:[%s7 + $0xb4] sm:$0xf]
    %v3289 = vld [vmem:[%s7 + $0xb8] sm:$0xf]
    %v3290 = vld [vmem:[%s7 + $0xbc] sm:$0xf]
    %v3291 = vld [vmem:[%s7 + $0xc0] sm:$0xf]
    %v3292 = vld [vmem:[%s7 + $0xc4] sm:$0xf]
    %v3293 = vld [vmem:[%s7 + $0xc8] sm:$0xf]
    %v3294 = vld [vmem:[%s7 + $0xcc] sm:$0xf]
    %v3295 = vld [vmem:[%s7 + $0xd0] sm:$0xf]
    %v3296 = vld [vmem:[%s7 + $0xd4] sm:$0xf]
    %v3297 = vld [vmem:[%s7 + $0xd8] sm:$0xf]
    %v3298 = vld [vmem:[%s7 + $0xdc] sm:$0xf]
    %v3299 = vld [vmem:[%s7 + $0xe0] sm:$0xf]
    %v3300 = vld [vmem:[%s7 + $0xe4] sm:$0xf]
    %v3301 = vld [vmem:[%s7 + $0xe8] sm:$0xf]
    %v3302 = vld [vmem:[%s7 + $0xec] sm:$0xf]
    %v3303 = vld [vmem:[%s7 + $0xf0] sm:$0xf]
    %v3304 = vld [vmem:[%s7 + $0xf4] sm:$0xf]
    %v3305 = vld [vmem:[%s7 + $0xf8] sm:$0xf]
    %v3306 = vld [vmem:[%s7 + $0xfc] sm:$0xf]
    %v3307 = vld [vmem:[%s8] sm:$0x1]
    %v3309 = vlaneseq
    %v3310 = vshrl.u32 %v3309, 7
    %v3311 = vsub.s32 0, %v3310
    %v3312 = vrot.slane %v3307, %v3311
    %v3378 = vunpack.c.l.b16 %v3243
    %v3379 = vunpack.c.l.b16 %v3244
    %v3380 = vunpack.c.l.b16 %v3245
    %v3381 = vunpack.c.l.b16 %v3246
    %v3382 = vunpack.c.l.b16 %v3247
    %v3383 = vunpack.c.l.b16 %v3248
    %v3384 = vunpack.c.l.b16 %v3249
    %v3385 = vunpack.c.l.b16 %v3250
    %v3386 = vunpack.c.l.b16 %v3251
    %v3387 = vunpack.c.l.b16 %v3252
    %v3388 = vunpack.c.l.b16 %v3253
    %v3389 = vunpack.c.l.b16 %v3254
    %v3390 = vunpack.c.l.b16 %v3255
    %v3391 = vunpack.c.l.b16 %v3256
    %v3392 = vunpack.c.l.b16 %v3257
    %v3393 = vunpack.c.l.b16 %v3258
    %v3394 = vunpack.c.l.b16 %v3259
    %v3395 = vunpack.c.l.b16 %v3260
    %v3396 = vunpack.c.l.b16 %v3261
    %v3397 = vunpack.c.l.b16 %v3262
    %v3398 = vunpack.c.l.b16 %v3263
    %v3399 = vunpack.c.l.b16 %v3264
    %v3400 = vunpack.c.l.b16 %v3265
    %v3401 = vunpack.c.l.b16 %v3266
    %v3402 = vunpack.c.l.b16 %v3267
    %v3403 = vunpack.c.l.b16 %v3268
    %v3404 = vunpack.c.l.b16 %v3269
    %v3405 = vunpack.c.l.b16 %v3270
    %v3406 = vunpack.c.l.b16 %v3271
    %v3407 = vunpack.c.l.b16 %v3272
    %v3408 = vunpack.c.l.b16 %v3273
    %v3409 = vunpack.c.l.b16 %v3274
    %v3410 = vunpack.c.l.b16 %v3275
    %v3411 = vunpack.c.l.b16 %v3276
    %v3412 = vunpack.c.l.b16 %v3277
    %v3413 = vunpack.c.l.b16 %v3278
    %v3414 = vunpack.c.l.b16 %v3279
    %v3415 = vunpack.c.l.b16 %v3280
    %v3416 = vunpack.c.l.b16 %v3281
    %v3417 = vunpack.c.l.b16 %v3282
    %v3418 = vunpack.c.l.b16 %v3283
    %v3419 = vunpack.c.l.b16 %v3284
    %v3420 = vunpack.c.l.b16 %v3285
    %v3421 = vunpack.c.l.b16 %v3286
    %v3422 = vunpack.c.l.b16 %v3287
    %v3423 = vunpack.c.l.b16 %v3288
    %v3424 = vunpack.c.l.b16 %v3289
    %v3425 = vunpack.c.l.b16 %v3290
    %v3426 = vunpack.c.l.b16 %v3291
    %v3427 = vunpack.c.l.b16 %v3292
    %v3428 = vunpack.c.l.b16 %v3293
    %v3429 = vunpack.c.l.b16 %v3294
    %v3430 = vunpack.c.l.b16 %v3295
    %v3431 = vunpack.c.l.b16 %v3296
    %v3432 = vunpack.c.l.b16 %v3297
    %v3433 = vunpack.c.l.b16 %v3298
    %v3434 = vunpack.c.l.b16 %v3299
    %v3435 = vunpack.c.l.b16 %v3300
    %v3436 = vunpack.c.l.b16 %v3301
    %v3437 = vunpack.c.l.b16 %v3302
    %v3438 = vunpack.c.l.b16 %v3303
    %v3439 = vunpack.c.l.b16 %v3304
    %v3440 = vunpack.c.l.b16 %v3305
    %v3441 = vunpack.c.l.b16 %v3306
    %v3442 = vpack.c.b16 %v3379, %v3378
    %v3443 = vpack.c.b16 %v3381, %v3380
    %v3444 = vpack.c.b16 %v3383, %v3382
    %v3445 = vpack.c.b16 %v3385, %v3384
    %v3446 = vpack.c.b16 %v3387, %v3386
    %v3447 = vpack.c.b16 %v3389, %v3388
    %v3448 = vpack.c.b16 %v3391, %v3390
    %v3449 = vpack.c.b16 %v3393, %v3392
    %v3450 = vpack.c.b16 %v3395, %v3394
    %v3451 = vpack.c.b16 %v3397, %v3396
    %v3452 = vpack.c.b16 %v3399, %v3398
    %v3453 = vpack.c.b16 %v3401, %v3400
    %v3454 = vpack.c.b16 %v3403, %v3402
    %v3455 = vpack.c.b16 %v3405, %v3404
    %v3456 = vpack.c.b16 %v3407, %v3406
    %v3457 = vpack.c.b16 %v3409, %v3408
    %v3458 = vpack.c.b16 %v3411, %v3410
    %v3459 = vpack.c.b16 %v3413, %v3412
    %v3460 = vpack.c.b16 %v3415, %v3414
    %v3461 = vpack.c.b16 %v3417, %v3416
    %v3462 = vpack.c.b16 %v3419, %v3418
    %v3463 = vpack.c.b16 %v3421, %v3420
    %v3464 = vpack.c.b16 %v3423, %v3422
    %v3465 = vpack.c.b16 %v3425, %v3424
    %v3466 = vpack.c.b16 %v3427, %v3426
    %v3467 = vpack.c.b16 %v3429, %v3428
    %v3468 = vpack.c.b16 %v3431, %v3430
    %v3469 = vpack.c.b16 %v3433, %v3432
    %v3470 = vpack.c.b16 %v3435, %v3434
    %v3471 = vpack.c.b16 %v3437, %v3436
    %v3472 = vpack.c.b16 %v3439, %v3438
    %v3473 = vpack.c.b16 %v3441, %v3440
    %3506 = vmatprep.subr.bf16.mxu0 0
    %3507 = vmatpush1.bf16.msra.mxu0 %v3449
    %3508 = vmatprep.subr.bf16.mxu0 0
    %3509 = vmatpush1.bf16.msra.mxu0 %v3448
    %3510 = vmatprep.subr.bf16.mxu0 0
    %3511 = vmatpush1.bf16.msra.mxu0 %v3447
    %3512 = vmatprep.subr.bf16.mxu0 0
    %3513 = vmatpush1.bf16.msra.mxu0 %v3446
    %3514 = vmatprep.subr.bf16.mxu0 0
    %3515 = vmatpush1.bf16.msra.mxu0 %v3445
    %3516 = vmatprep.subr.bf16.mxu0 0
    %3517 = vmatpush1.bf16.msra.mxu0 %v3444
    %3518 = vmatprep.subr.bf16.mxu0 0
    %3519 = vmatpush1.bf16.msra.mxu0 %v3443
    %3520 = vmatprep.subr.bf16.mxu0 0
    %3521 = vmatpush1.bf16.msra.mxu0 %v3442
    %3522 = vmatprep.subr.bf16.mxu0 0
    %3523 = vmatpush2.bf16.msra.mxu0 %v3457
    %3524 = vmatprep.subr.bf16.mxu0 0
    %3525 = vmatpush2.bf16.msra.mxu0 %v3456
    %3526 = vmatprep.subr.bf16.mxu0 0
    %3527 = vmatpush2.bf16.msra.mxu0 %v3455
    %3528 = vmatprep.subr.bf16.mxu0 0
    %3529 = vmatpush2.bf16.msra.mxu0 %v3454
    %3530 = vmatprep.subr.bf16.mxu0 0
    %3531 = vmatpush2.bf16.msra.mxu0 %v3453
    %3532 = vmatprep.subr.bf16.mxu0 0
    %3533 = vmatpush2.bf16.msra.mxu0 %v3452
    %3534 = vmatprep.subr.bf16.mxu0 0
    %3535 = vmatpush2.bf16.msra.mxu0 %v3451
    %3536 = vmatprep.subr.bf16.mxu0 0
    %3537 = vmatpush2.bf16.msra.mxu0 %v3450
    %3538 = vmatprep.mubr.bf16.mxu0 %v2286
    %3539 = vmatmul.mubr.bf16.gmra.mxu0 %v2285
    %v3540 = vpop.f32.mrf.mxu0
    %v3541 = vadd.f32 %v3312, %v3540
    %v3542 = vpop.f32.mrf.mxu0
    %v3543 = vpop.f32.mrf.mxu0
    %v3544 = vpop.f32.mrf.mxu0
    %3545 = vdwg.mxu0
    %3546 = vmatprep.subr.bf16.mxu0 0
    %3547 = vmatpush1.bf16.msra.mxu0 %v3465
    %3548 = vmatprep.subr.bf16.mxu0 0
    %3549 = vmatpush1.bf16.msra.mxu0 %v3464
    %3550 = vmatprep.subr.bf16.mxu0 0
    %3551 = vmatpush1.bf16.msra.mxu0 %v3463
    %3552 = vmatprep.subr.bf16.mxu0 0
    %3553 = vmatpush1.bf16.msra.mxu0 %v3462
    %3554 = vmatprep.subr.bf16.mxu0 0
    %3555 = vmatpush1.bf16.msra.mxu0 %v3461
    %3556 = vmatprep.subr.bf16.mxu0 0
    %3557 = vmatpush1.bf16.msra.mxu0 %v3460
    %3558 = vmatprep.subr.bf16.mxu0 0
    %3559 = vmatpush1.bf16.msra.mxu0 %v3459
    %3560 = vmatprep.subr.bf16.mxu0 0
    %3561 = vmatpush1.bf16.msra.mxu0 %v3458
    %3562 = vmatprep.subr.bf16.mxu0 0
    %3563 = vmatpush2.bf16.msra.mxu0 %v3473
    %3564 = vmatprep.subr.bf16.mxu0 0
    %3565 = vmatpush2.bf16.msra.mxu0 %v3472
    %3566 = vmatprep.subr.bf16.mxu0 0
    %3567 = vmatpush2.bf16.msra.mxu0 %v3471
    %3568 = vmatprep.subr.bf16.mxu0 0
    %3569 = vmatpush2.bf16.msra.mxu0 %v3470
    %3570 = vmatprep.subr.bf16.mxu0 0
    %3571 = vmatpush2.bf16.msra.mxu0 %v3469
    %3572 = vmatprep.subr.bf16.mxu0 0
    %3573 = vmatpush2.bf16.msra.mxu0 %v3468
    %3574 = vmatprep.subr.bf16.mxu0 0
    %3575 = vmatpush2.bf16.msra.mxu0 %v3467
    %3576 = vmatprep.subr.bf16.mxu0 0
    %3577 = vmatpush2.bf16.msra.mxu0 %v3466
    %3578 = vmatprep.mubr.bf16.mxu0 %v2288
    %3579 = vmatmul.mubr.bf16.gmra.mxu0 %v2287
    %v3580 = vpop.f32.mrf.mxu0
    %v3581 = vadd.f32 %v3541, %v3580
    %v3582 = vpop.f32.mrf.mxu0
    %v3583 = vpop.f32.mrf.mxu0
    %v3584 = vpop.f32.mrf.mxu0
    %3585 = vdwg.mxu0
    %3587 = vrot.lane.b32.xlu0 %v3155, 64
    %v3588 = vpop.permute.xlu0 %3587
    %v3590 = vadd.f32 %v3155, %v3588
    %v3591 = vadd.f32 %v3590, %v3157
    %3593 = vrot.lane.b32.xlu0 %v3157, 64
    %v3594 = vpop.permute.xlu0 %3593
    %v3596 = vadd.f32 %v3591, %v3594
    %v3597 = vadd.f32 %v3596, %v3237
    %3599 = vrot.lane.b32.xlu0 %v3237, 64
    %v3600 = vpop.permute.xlu0 %3599
    %v3602 = vadd.f32 %v3597, %v3600
    %v3603 = vadd.f32 %v3602, %v3239
    %3605 = vrot.lane.b32.xlu0 %v3239, 64
    %v3606 = vpop.permute.xlu0 %3605
    %v3608 = vadd.f32 %v3603, %v3606
    %v3609 = vmul.f32 %v3608, 0.125
    %v3610 = vsub.f32 %v3581, %v3609
    %v3611 = vlaneseq
    %v3612 = vand.u32 %v3611, 127
    %vm3613 = vcmp.lt.s32.totalorder %v3612, 51
    %v3614 = vadd.f32 %v3155, %v3610
    %vm3615 = vcmask 523264
    %v3616 = vsel %vm3615, %v3614, -inf
    %3617 = vmax.xlane.f32.xlu0 %v3616
    %v3618 = vpop.xlane.xlu0 %3617
    %v3619 = vsub.f32 %v3614, %v3618
    %v3620 = vmul.f32 %v3619, 1.442695
    %v3621 = vpow.pop %v3620
    %v3622 = vsel %vm3613, %v3621, 0.0
    %v3623 = vsel %vm3615, %v3622, 0.0
    %3624 = vadd.xlane.f32.xlu0 %v3623
    %v3625 = vpop.xlane.xlu0 %3624
    %v3626 = vrcp.pop %v3625
    %v3627 = vmul.f32 %v3622, %v3626
    %3628 = vst.msk [vmem:[#allocation7] sm:$0xff] %vm3615, %v3627
    %3630 = vrot.lane.b32.xlu0 %v3610, 64
    %v3631 = vpop.permute.xlu0 %3630
    %v3633 = vadd.f32 %v3155, %v3631
    %vm3634 = vcmask 1048064
    %v3635 = vsel %vm3634, %v3633, -inf
    %3636 = vmax.xlane.f32.xlu0 %v3635
    %v3637 = vpop.xlane.xlu0 %3636
    %v3638 = vsub.f32 %v3633, %v3637
    %v3639 = vmul.f32 %v3638, 1.442695
    %v3640 = vpow.pop %v3639
    %3642 = vrot.lane.b32.xlu0 %v3640, 64
    %v3643 = vpop.permute.xlu0 %3642
    %v3645 = vsel %vm3613, %v3643, 0.0
    %v3646 = vsel %vm3615, %v3645, 0.0
    %3647 = vadd.xlane.f32.xlu0 %v3646
    %v3648 = vpop.xlane.xlu0 %3647
    %v3649 = vrcp.pop %v3648
    %v3650 = vmul.f32 %v3645, %v3649
    %3652 = vrot.lane.b32.xlu0 %v3650, 64
    %v3653 = vpop.permute.xlu0 %3652
    %3655 = vst.msk [vmem:[#allocation7] sm:$0xff] %vm3634, %v3653
    %v3656 = vadd.f32 %v3157, %v3610
    %v3657 = vsel %vm3615, %v3656, -inf
    %3658 = vmax.xlane.f32.xlu0 %v3657
    %v3659 = vpop.xlane.xlu0 %3658
    %v3660 = vsub.f32 %v3656, %v3659
    %v3661 = vmul.f32 %v3660, 1.442695
    %v3662 = vpow.pop %v3661
    %v3663 = vsel %vm3613, %v3662, 0.0
    %v3664 = vsel %vm3615, %v3663, 0.0
    %3665 = vadd.xlane.f32.xlu0 %v3664
    %v3666 = vpop.xlane.xlu0 %3665
    %v3667 = vrcp.pop %v3666
    %v3668 = vmul.f32 %v3663, %v3667
    %3669 = vst.msk [vmem:[#allocation7 + $0x8] sm:$0xff] %vm3615, %v3668
    %v3670 = vadd.f32 %v3157, %v3631
    %v3671 = vsel %vm3634, %v3670, -inf
    %3672 = vmax.xlane.f32.xlu0 %v3671
    %v3673 = vpop.xlane.xlu0 %3672
    %v3674 = vsub.f32 %v3670, %v3673
    %v3675 = vmul.f32 %v3674, 1.442695
    %v3676 = vpow.pop %v3675
    %3678 = vrot.lane.b32.xlu0 %v3676, 64
    %v3679 = vpop.permute.xlu0 %3678
    %v3681 = vsel %vm3613, %v3679, 0.0
    %v3682 = vsel %vm3615, %v3681, 0.0
    %3683 = vadd.xlane.f32.xlu0 %v3682
    %v3684 = vpop.xlane.xlu0 %3683
    %v3685 = vrcp.pop %v3684
    %v3686 = vmul.f32 %v3681, %v3685
    %3688 = vrot.lane.b32.xlu0 %v3686, 64
    %v3689 = vpop.permute.xlu0 %3688
    %3691 = vst.msk [vmem:[#allocation7 + $0x8] sm:$0xff] %vm3634, %v3689
    %v3692 = vadd.f32 %v3237, %v3610
    %v3693 = vsel %vm3615, %v3692, -inf
    %3694 = vmax.xlane.f32.xlu0 %v3693
    %v3695 = vpop.xlane.xlu0 %3694
    %v3696 = vsub.f32 %v3692, %v3695
    %v3697 = vmul.f32 %v3696, 1.442695
    %v3698 = vpow.pop %v3697
    %v3699 = vsel %vm3613, %v3698, 0.0
    %v3700 = vsel %vm3615, %v3699, 0.0
    %3701 = vadd.xlane.f32.xlu0 %v3700
    %v3702 = vpop.xlane.xlu0 %3701
    %v3703 = vrcp.pop %v3702
    %v3704 = vmul.f32 %v3699, %v3703
    %3705 = vst.msk [vmem:[#allocation7 + $0x10] sm:$0xff] %vm3615, %v3704
    %v3706 = vadd.f32 %v3237, %v3631
    %v3707 = vsel %vm3634, %v3706, -inf
    %3708 = vmax.xlane.f32.xlu0 %v3707
    %v3709 = vpop.xlane.xlu0 %3708
    %v3710 = vsub.f32 %v3706, %v3709
    %v3711 = vmul.f32 %v3710, 1.442695
    %v3712 = vpow.pop %v3711
    %3714 = vrot.lane.b32.xlu0 %v3712, 64
    %v3715 = vpop.permute.xlu0 %3714
    %v3717 = vsel %vm3613, %v3715, 0.0
    %v3718 = vsel %vm3615, %v3717, 0.0
    %3719 = vadd.xlane.f32.xlu0 %v3718
    %v3720 = vpop.xlane.xlu0 %3719
    %v3721 = vrcp.pop %v3720
    %v3722 = vmul.f32 %v3717, %v3721
    %3724 = vrot.lane.b32.xlu0 %v3722, 64
    %v3725 = vpop.permute.xlu0 %3724
    %3727 = vst.msk [vmem:[#allocation7 + $0x10] sm:$0xff] %vm3634, %v3725
    %v3728 = vadd.f32 %v3239, %v3610
    %v3729 = vsel %vm3615, %v3728, -inf
    %3730 = vmax.xlane.f32.xlu0 %v3729
    %v3731 = vpop.xlane.xlu0 %3730
    %v3732 = vsub.f32 %v3728, %v3731
    %v3733 = vmul.f32 %v3732, 1.442695
    %v3734 = vpow.pop %v3733
    %v3735 = vsel %vm3613, %v3734, 0.0
    %v3736 = vsel %vm3615, %v3735, 0.0
    %3737 = vadd.xlane.f32.xlu0 %v3736
    %v3738 = vpop.xlane.xlu0 %3737
    %v3739 = vrcp.pop %v3738
    %v3740 = vmul.f32 %v3735, %v3739
    %3741 = vst.msk [vmem:[#allocation7 + $0x18] sm:$0xff] %vm3615, %v3740
    %v3742 = vadd.f32 %v3239, %v3631
    %v3743 = vsel %vm3634, %v3742, -inf
    %3744 = vmax.xlane.f32.xlu0 %v3743
    %v3745 = vpop.xlane.xlu0 %3744
    %v3746 = vsub.f32 %v3742, %v3745
    %v3747 = vmul.f32 %v3746, 1.442695
    %v3748 = vpow.pop %v3747
    %3750 = vrot.lane.b32.xlu0 %v3748, 64
    %v3751 = vpop.permute.xlu0 %3750
    %v3753 = vsel %vm3613, %v3751, 0.0
    %v3754 = vsel %vm3615, %v3753, 0.0
    %3755 = vadd.xlane.f32.xlu0 %v3754
    %v3756 = vpop.xlane.xlu0 %3755
    %v3757 = vrcp.pop %v3756
    %v3758 = vmul.f32 %v3753, %v3757
    %3760 = vrot.lane.b32.xlu0 %v3758, 64
    %v3761 = vpop.permute.xlu0 %3760
    %3763 = vst.msk [vmem:[#allocation7 + $0x18] sm:$0xff] %vm3634, %v3761
    // Predicated region
    $region46: #{tpu_custom_call.1} parent=1 // pred_check
      _
    $region47: #{tpu_custom_call.1} parent=1 // pred_check_branch
      %3765 = sbr.rel (0) target = $region49
    $region48: #{tpu_custom_call.1} parent=1 // pred_region
      %s3767 = ssub.s32 512, 512
      %3768 = vsyncadd [#allocation4], %s3767
      %s3770 = sshll.u32 [#allocation7], 4
      %s3771 = int_to_ptr.vmem [resolvable:$true] %s3770
      %3773 = dma.vmem_to_hbm [thread:$0]  %s3771, 512, %s9, [#allocation4]
    $region49: #{tpu_custom_call.1} parent=1 // pred_fallthru
      _
    // Predicated region
    $region50: #{tpu_custom_call.1} parent=1 // pred_check
      _
    $region51: #{tpu_custom_call.1} parent=1 // pred_check_branch
      %3775 = sbr.rel (0) target = $region53
    $region52: #{tpu_custom_call.1} parent=1 // pred_region
      %3776 = dma.done [#allocation4], 512
    $region53: #{tpu_custom_call.1} parent=1 // pred_fallthru
      _
    %3777 = vsyncpa [#allocation3], 1
    %3778 = vsyncpa [#allocation6], 1
    %3779 = vsyncpa [#allocation4], 1

</llo_original>
